<compile_context>
chip_gen: v7x
topology: tpu7x:2x2x1
jax: 0.10.0
libtpu: 0.0.40
codegen_flags: <defaults>
</compile_context>

<pallas_src>
import functools

import numpy as np

import jax
import jax.numpy as jnp
from jax import lax
from jax.experimental import pallas as pl
from jax.experimental.pallas import tpu as pltpu

_HIGHEST = lax.Precision.HIGHEST
_VMEM_LIMIT = 48 * 1024 * 1024   # above default scoped limits, below v7x 64 MiB


# ----------------------------------------------------------------------------
# Kernel: one CGConv(+eval BatchNorm)+ReLU layer, grid = (sample, source tile)
# ----------------------------------------------------------------------------
def _cgconv_kernel(tile_j, counts_ref,
                   x_ref, c_ref,
                   wdst_ref, wsrc_ref, we_ref, bias_ref, scale_ref, shift_ref,
                   out_ref,
                   a_sc, g_sc, acc_ref):
    b = pl.program_id(0)
    j = pl.program_id(1)
    n_j = pl.num_programs(1)
    a_pad, h = acc_ref.shape

    @pl.when(j == 0)
    def _init():
        # Per-node projections hoisted out of the O(k^2) pairwise stage,
        # computed once per sample.  Columns are [lin_f | lin_s] packed (2H).
        x = x_ref[0]                                             # (A, H)
        c = c_ref[0]                                             # (A, 2)
        ce = jnp.dot(c, we_ref[...], preferred_element_type=jnp.float32,
                     precision=_HIGHEST)                         # (A, 2H)
        # lin(z_ij) = a[i] + g[j]   (edge_attr = c_i - c_j folds into +/- ce)
        a_sc[...] = (jnp.dot(x, wdst_ref[...],
                             preferred_element_type=jnp.float32,
                             precision=_HIGHEST) + ce + bias_ref[...])
        g_sc[...] = (jnp.dot(x, wsrc_ref[...],
                             preferred_element_type=jnp.float32,
                             precision=_HIGHEST) - ce)
        acc_ref[...] = jnp.zeros_like(acc_ref)

    k = counts_ref[b]                                            # valid agents
    jj = pl.multiple_of(j * tile_j, tile_j)                      # first source col

    @pl.when(jj < k)  # skip source tiles that are pure padding
    def _compute():
        # Source side for this tile, transposed so j lands on the lane axis.
        g_tile = g_sc[pl.ds(jj, tile_j), :]                      # (TJ, 2H)
        gates = a_sc[...][:, :, None] + g_tile.T[None, :, :]     # (A, 2H, TJ)

        f_in = gates[:, :h, :]
        s_in = gates[:, h:, :]
        # sigmoid via tanh: one EUP push instead of exp + reciprocal
        f = 0.5 * jnp.tanh(0.5 * f_in) + 0.5
        # softplus with PyTorch threshold=20 semantics
        s = jnp.where(s_in > 20.0, s_in,
                      jnp.log(1.0 + jnp.exp(jnp.minimum(s_in, 20.0))))

        # Block-diagonal adjacency rebuilt in-kernel: same sample, both valid,
        # i != j (no self loops).
        rows = lax.broadcasted_iota(jnp.int32, (a_pad, tile_j), 0)
        cols = lax.broadcasted_iota(jnp.int32, (a_pad, tile_j), 1) + jj
        mask = ((rows < k) & (cols < k) & (rows != cols)).astype(jnp.float32)

        acc_ref[...] += jnp.sum((f * s) * mask[:, None, :], axis=-1)  # lane reduce

    @pl.when(j == n_j - 1)
    def _finalize():
        # eval-mode BatchNorm folded into scale/shift, then residual + ReLU
        y = acc_ref[...] * scale_ref[...] + shift_ref[...] + x_ref[0]
        out_ref[0] = jnp.maximum(y, 0.0).astype(out_ref.dtype)


def _cgconv_layer(x_pad, c_pad, counts, params, tile_j):
    b, a_pad, h = x_pad.shape
    w_dst, w_src, w_e, bias, scale, shift = params
    n_j = a_pad // tile_j

    const2 = lambda i, j, cnt: (0, 0)

    return pl.pallas_call(
        functools.partial(_cgconv_kernel, tile_j),
        out_shape=jax.ShapeDtypeStruct((b, a_pad, h), jnp.float32),
        grid_spec=pltpu.PrefetchScalarGridSpec(
            num_scalar_prefetch=1,                # per-sample agent counts -> SMEM
            grid=(b, n_j),
            in_specs=[
                pl.BlockSpec((1, a_pad, h), lambda i, j, cnt: (i, 0, 0)),
                pl.BlockSpec((1, a_pad, 2), lambda i, j, cnt: (i, 0, 0)),
                pl.BlockSpec(w_dst.shape, const2),   # weights resident across grid
                pl.BlockSpec(w_src.shape, const2),
                pl.BlockSpec(w_e.shape, const2),
                pl.BlockSpec(bias.shape, const2),
                pl.BlockSpec(scale.shape, const2),
                pl.BlockSpec(shift.shape, const2),
            ],
            out_specs=pl.BlockSpec((1, a_pad, h), lambda i, j, cnt: (i, 0, 0)),
            scratch_shapes=[
                pltpu.VMEM((a_pad, 2 * h), jnp.float32),   # a (target-side proj)
                pltpu.VMEM((a_pad, 2 * h), jnp.float32),   # g (source-side proj)
                pltpu.VMEM((a_pad, h), jnp.float32),       # accumulator
            ],
        ),
        compiler_params=pltpu.CompilerParams(
            dimension_semantics=("parallel", "arbitrary"),
            vmem_limit_bytes=_VMEM_LIMIT,
        ),
    )(counts, x_pad, c_pad, w_dst, w_src, w_e, bias, scale, shift)


@functools.partial(jax.jit, static_argnames=("tile_j",))
def agent_gnn_forward(x_pad, c_pad, counts, layer1_params, layer2_params, *,
                      tile_j):
    """x_pad: (B, A_pad, H), c_pad: (B, A_pad, 2), counts: (B,) int32."""
    x1 = _cgconv_layer(x_pad, c_pad, counts, layer1_params, tile_j)
    x2 = _cgconv_layer(x1, c_pad, counts, layer2_params, tile_j)
    return x2


# ----------------------------------------------------------------------------
# Wrapper helpers
# ----------------------------------------------------------------------------
def _round_up(x, m):
    return -(-x // m) * m


def pad_inputs(gnn_in, centers, agents_per_sample):
    """Pack the flat node list into a (B, A_pad, .) per-sample padded layout."""
    counts = np.asarray(agents_per_sample, np.int32)
    b = len(agents_per_sample)
    a_max = int(counts.max())
    a_pad8 = _round_up(a_max, 8)
    if a_pad8 <= 128:
        tile_j = a_pad8
        a_pad = a_pad8
    else:
        tile_j = 128
        a_pad = _round_up(a_max, 128)

    h = gnn_in.shape[-1]
    d = centers.shape[-1]
    x_pad = np.zeros((b, a_pad, h), np.float32)
    c_pad = np.zeros((b, a_pad, d), np.float32)
    x_np = np.asarray(gnn_in)
    c_np = np.asarray(centers)
    off = 0
    for s, k in enumerate(counts):
        x_pad[s, :k] = x_np[off:off + k]
        c_pad[s, :k] = c_np[off:off + k]
        off += k
    return (jnp.asarray(x_pad), jnp.asarray(c_pad), jnp.asarray(counts),
            int(tile_j))


def unpad_output(out_pad, agents_per_sample):
    parts = [out_pad[s, :k] for s, k in enumerate(agents_per_sample)]
    return jnp.concatenate(parts, axis=0)


def prep_cgconv_params(w_f, b_f, w_s, b_s, gamma, beta, run_mean, run_var,
                       eps=1e-5):
    """Repack PyTorch-layout CGConv params for the kernel.

    w_f / w_s: (H, 2H+dim), input column order [x_i (target) | x_j (source) | e].
    Returns (w_dst (H,2H), w_src (H,2H), w_e (dim,2H), bias (1,2H),
             bn_scale (1,H), bn_shift (1,H)) with f|s packed along the last axis.
    """
    # TODO(synk): training-mode BatchNorm (batch statistics) not implemented;
    # eval-mode running stats are folded here.
    H = w_f.shape[0]
    wf_t = jnp.transpose(w_f)             # (2H+dim, H)
    ws_t = jnp.transpose(w_s)
    w_dst = jnp.concatenate([wf_t[:H], ws_t[:H]], axis=1)                # (H, 2H)
    w_src = jnp.concatenate([wf_t[H:2 * H], ws_t[H:2 * H]], axis=1)      # (H, 2H)
    w_e = jnp.concatenate([wf_t[2 * H:], ws_t[2 * H:]], axis=1)          # (dim, 2H)
    bias = jnp.concatenate([b_f, b_s]).reshape(1, 2 * H)
    scale = (gamma / jnp.sqrt(run_var + eps)).reshape(1, H)
    shift = (beta - run_mean * gamma / jnp.sqrt(run_var + eps)).reshape(1, H)
    return (w_dst, w_src, w_e, bias, scale, shift)


# ----------------------------------------------------------------------------
# Plain-JAX reference (edge-list formulation, PyG CGConv semantics)
# ----------------------------------------------------------------------------
def _build_edge_index(agents_per_sample):
    rows, cols = [], []   # edge_index[0] = rows = source, [1] = cols = target
    off = 0
    for k in agents_per_sample:
        for i in range(k):
            for j in range(k):
                if i != j:
                    rows.append(off + i)
                    cols.append(off + j)
        off += k
    return np.asarray(rows, np.int32), np.asarray(cols, np.int32)


def _reference_agent_gnn(gnn_in, centers, agents_per_sample, raw1, raw2,
                         eps=1e-5):
    src_np, dst_np = _build_edge_index(agents_per_sample)
    src = jnp.asarray(src_np)
    dst = jnp.asarray(dst_np)

    def cgconv_relu(x, w_f, b_f, w_s, b_s, gamma, beta, run_mean, run_var):
        x_i = x[dst]                         # target node features
        x_j = x[src]                         # source node features
        e = centers[dst] - centers[src]      # edge_attr = data[cols] - data[rows]
        z = jnp.concatenate([x_i, x_j, e], axis=-1)
        f = jax.nn.sigmoid(jnp.dot(z, w_f.T, precision=_HIGHEST) + b_f)
        s = jax.nn.softplus(jnp.dot(z, w_s.T, precision=_HIGHEST) + b_s)
        agg = jnp.zeros_like(x).at[dst].add(f * s)
        bn = (agg - run_mean) / jnp.sqrt(run_var + eps) * gamma + beta
        return jnp.maximum(bn + x, 0.0)

    x1 = cgconv_relu(gnn_in, *raw1)
    x2 = cgconv_relu(x1, *raw2)
    return x2


# ----------------------------------------------------------------------------
if __name__ == "__main__":
    latent_size = 32                 # args.latent_size
    edge_dim = 2
    agents_per_sample = [3, 5]       # two samples -> N = 8 agents total
    n_agents = int(sum(agents_per_sample))

    key = jax.random.PRNGKey(0)
    (k_x, k_c,
     k_wf1, k_bf1, k_ws1, k_bs1,
     k_wf2, k_bf2, k_ws2, k_bs2) = jax.random.split(key, 10)

    in_features = 2 * latent_size + edge_dim
    bound = 1.0 / np.sqrt(in_features)   # PyTorch Linear init

    def lin_init(kw, kb):
        w = jax.random.uniform(kw, (latent_size, in_features), jnp.float32,
                               -bound, bound)
        b = jax.random.uniform(kb, (latent_size,), jnp.float32, -bound, bound)
        return w, b

    w_f1, b_f1 = lin_init(k_wf1, k_bf1)
    w_s1, b_s1 = lin_init(k_ws1, k_bs1)
    w_f2, b_f2 = lin_init(k_wf2, k_bf2)
    w_s2, b_s2 = lin_init(k_ws2, k_bs2)

    # BatchNorm1d parameters at PyTorch init (eval-mode running stats).
    gamma = jnp.ones((latent_size,), jnp.float32)
    beta = jnp.zeros((latent_size,), jnp.float32)
    run_mean = jnp.zeros((latent_size,), jnp.float32)
    run_var = jnp.ones((latent_size,), jnp.float32)

    # Inputs: node features from the upstream encoder and agent center positions.
    gnn_in = jax.random.normal(k_x, (n_agents, latent_size), jnp.float32)
    centers = jax.random.normal(k_c, (n_agents, edge_dim), jnp.float32)

    p1 = prep_cgconv_params(w_f1, b_f1, w_s1, b_s1, gamma, beta, run_mean, run_var)
    p2 = prep_cgconv_params(w_f2, b_f2, w_s2, b_s2, gamma, beta, run_mean, run_var)

    x_pad, c_pad, counts, tile_j = pad_inputs(gnn_in, centers, agents_per_sample)
    out_pad = agent_gnn_forward(x_pad, c_pad, counts, p1, p2, tile_j=tile_j)
    out_pad = jax.block_until_ready(out_pad)
    out = unpad_output(out_pad, agents_per_sample)

    ref = _reference_agent_gnn(
        gnn_in, centers, agents_per_sample,
        (w_f1, b_f1, w_s1, b_s1, gamma, beta, run_mean, run_var),
        (w_f2, b_f2, w_s2, b_s2, gamma, beta, run_mean, run_var))

    assert out.shape == (n_agents, latent_size)
    assert jnp.allclose(out, ref, atol=1e-4, rtol=1e-4), "mismatch vs reference"

    print("KERNEL_OK")
</pallas_src>

<mosaic_0001>
module attributes {stable_mosaic.version = 11 : i64} {
  func.func @_cgconv_kernel(%arg0: i32, %arg1: i32, %arg2: memref<2xi32, #tpu.memory_space<smem>>, %arg3: memref<1x8x32xf32, #tpu.memory_space<vmem>>, %arg4: memref<1x8x2xf32, #tpu.memory_space<vmem>>, %arg5: memref<32x64xf32, #tpu.memory_space<vmem>>, %arg6: memref<32x64xf32, #tpu.memory_space<vmem>>, %arg7: memref<2x64xf32, #tpu.memory_space<vmem>>, %arg8: memref<1x64xf32, #tpu.memory_space<vmem>>, %arg9: memref<1x32xf32, #tpu.memory_space<vmem>>, %arg10: memref<1x32xf32, #tpu.memory_space<vmem>>, %arg11: memref<1x8x32xf32, #tpu.memory_space<vmem>>, %arg12: memref<8x64xf32, #tpu.memory_space<vmem>>, %arg13: memref<8x64xf32, #tpu.memory_space<vmem>>, %arg14: memref<8x32xf32, #tpu.memory_space<vmem>>) attributes {dimension_semantics = [#tpu.dimension_semantics<parallel>, #tpu.dimension_semantics<arbitrary>], iteration_bounds = array<i64: 2, 1>, scalar_prefetch = 1 : i64, scratch_operands = 3 : i64, tpu.core_type = #tpu.core_type<tc>, window_params = [{transform_indices = @transform_0, window_bounds = array<i64: 1, 8, 32>}, {transform_indices = @transform_1, window_bounds = array<i64: 1, 8, 2>}, {pipeline_mode = #tpu.pipeline_mode<synchronous>, transform_indices = @transform_2, window_bounds = array<i64: 32, 64>}, {pipeline_mode = #tpu.pipeline_mode<synchronous>, transform_indices = @transform_3, window_bounds = array<i64: 32, 64>}, {pipeline_mode = #tpu.pipeline_mode<synchronous>, transform_indices = @transform_4, window_bounds = array<i64: 2, 64>}, {pipeline_mode = #tpu.pipeline_mode<synchronous>, transform_indices = @transform_5, window_bounds = array<i64: 1, 64>}, {pipeline_mode = #tpu.pipeline_mode<synchronous>, transform_indices = @transform_6, window_bounds = array<i64: 1, 32>}, {pipeline_mode = #tpu.pipeline_mode<synchronous>, transform_indices = @transform_7, window_bounds = array<i64: 1, 32>}, {transform_indices = @transform_8, window_bounds = array<i64: 1, 8, 32>}]} {
    %c0_i32 = arith.constant 0 : i32
    %0 = arith.cmpi eq, %arg1, %c0_i32 : i32
    %1 = arith.extui %0 : i1 to i32
    %c0_i32_0 = arith.constant 0 : i32
    %2 = arith.cmpi ne, %1, %c0_i32_0 : i32
    scf.if %2 {
      %c0 = arith.constant 0 : index
      %c0_4 = arith.constant 0 : index
      %c0_5 = arith.constant 0 : index
      %13 = vector.load %arg3[%c0, %c0_4, %c0_5] : memref<1x8x32xf32, #tpu.memory_space<vmem>>, vector<1x8x32xf32>
      %14 = vector.shape_cast %13 : vector<1x8x32xf32> to vector<8x32xf32>
      %c0_6 = arith.constant 0 : index
      %c0_7 = arith.constant 0 : index
      %c0_8 = arith.constant 0 : index
      %15 = vector.load %arg4[%c0_6, %c0_7, %c0_8] : memref<1x8x2xf32, #tpu.memory_space<vmem>>, vector<1x8x2xf32>
      %16 = vector.shape_cast %15 : vector<1x8x2xf32> to vector<8x2xf32>
      %c0_9 = arith.constant 0 : index
      %c0_10 = arith.constant 0 : index
      %17 = vector.load %arg7[%c0_9, %c0_10] : memref<2x64xf32, #tpu.memory_space<vmem>>, vector<2x64xf32>
      %cst = arith.constant dense<0.000000e+00> : vector<8x64xf32>
      %18 = tpu.matmul %16, %17, %cst {dimension_numbers = #tpu.dot_dimension_numbers<[1], [0], [0], [1], [0, 0, 1, 1], [], []>, precision = #tpu.contract_precision<fp32>} : vector<8x2xf32>, vector<2x64xf32>, vector<8x64xf32> -> vector<8x64xf32>
      %c0_11 = arith.constant 0 : index
      %c0_12 = arith.constant 0 : index
      %19 = vector.load %arg5[%c0_11, %c0_12] : memref<32x64xf32, #tpu.memory_space<vmem>>, vector<32x64xf32>
      %cst_13 = arith.constant dense<0.000000e+00> : vector<8x64xf32>
      %20 = tpu.matmul %14, %19, %cst_13 {dimension_numbers = #tpu.dot_dimension_numbers<[1], [0], [0], [1], [0, 0, 1, 1], [], []>, precision = #tpu.contract_precision<fp32>} : vector<8x32xf32>, vector<32x64xf32>, vector<8x64xf32> -> vector<8x64xf32>
      %21 = arith.addf %20, %18 : vector<8x64xf32>
      %c0_14 = arith.constant 0 : index
      %c0_15 = arith.constant 0 : index
      %22 = vector.load %arg8[%c0_14, %c0_15] : memref<1x64xf32, #tpu.memory_space<vmem>>, vector<1x64xf32>
      %23 = vector.broadcast %22 : vector<1x64xf32> to vector<8x64xf32>
      %24 = arith.addf %21, %23 : vector<8x64xf32>
      %c0_16 = arith.constant 0 : index
      %c0_17 = arith.constant 0 : index
      %25 = vector.load %arg12[%c0_16, %c0_17] : memref<8x64xf32, #tpu.memory_space<vmem>>, vector<8x64xf32>
      tpu.vector_store %arg12[%c0_16, %c0_17], %24 {strides = array<i32>} : memref<8x64xf32, #tpu.memory_space<vmem>>, vector<8x64xf32>,
      %c0_18 = arith.constant 0 : index
      %c0_19 = arith.constant 0 : index
      %26 = vector.load %arg6[%c0_18, %c0_19] : memref<32x64xf32, #tpu.memory_space<vmem>>, vector<32x64xf32>
      %cst_20 = arith.constant dense<0.000000e+00> : vector<8x64xf32>
      %27 = tpu.matmul %14, %26, %cst_20 {dimension_numbers = #tpu.dot_dimension_numbers<[1], [0], [0], [1], [0, 0, 1, 1], [], []>, precision = #tpu.contract_precision<fp32>} : vector<8x32xf32>, vector<32x64xf32>, vector<8x64xf32> -> vector<8x64xf32>
      %28 = arith.subf %27, %18 : vector<8x64xf32>
      %c0_21 = arith.constant 0 : index
      %c0_22 = arith.constant 0 : index
      %29 = vector.load %arg13[%c0_21, %c0_22] : memref<8x64xf32, #tpu.memory_space<vmem>>, vector<8x64xf32>
      tpu.vector_store %arg13[%c0_21, %c0_22], %28 {strides = array<i32>} : memref<8x64xf32, #tpu.memory_space<vmem>>, vector<8x64xf32>,
      %cst_23 = arith.constant 0.000000e+00 : f32
      %30 = vector.broadcast %cst_23 : f32 to vector<8x32xf32>
      %c0_24 = arith.constant 0 : index
      %c0_25 = arith.constant 0 : index
      %31 = vector.load %arg14[%c0_24, %c0_25] : memref<8x32xf32, #tpu.memory_space<vmem>>, vector<8x32xf32>
      tpu.vector_store %arg14[%c0_24, %c0_25], %30 {strides = array<i32>} : memref<8x32xf32, #tpu.memory_space<vmem>>, vector<8x32xf32>,
    } else {
    }
    %3 = arith.index_cast %arg0 : i32 to index
    %4 = memref.load %arg2[%3] : memref<2xi32, #tpu.memory_space<smem>>
    %c8_i32 = arith.constant 8 : i32
    %5 = arith.muli %arg1, %c8_i32 : i32
    %6 = tpu.assume_multiple %5, 8 : i32
    %7 = arith.cmpi slt, %6, %4 : i32
    %8 = arith.extui %7 : i1 to i32
    %c0_i32_1 = arith.constant 0 : i32
    %9 = arith.cmpi ne, %8, %c0_i32_1 : i32
    scf.if %9 {
      %13 = arith.index_cast %6 : i32 to index
      %c0 = arith.constant 0 : index
      %14 = vector.load %arg13[%13, %c0] : memref<8x64xf32, #tpu.memory_space<vmem>>, vector<8x64xf32>
      %c0_4 = arith.constant 0 : index
      %c0_5 = arith.constant 0 : index
      %15 = vector.load %arg12[%c0_4, %c0_5] : memref<8x64xf32, #tpu.memory_space<vmem>>, vector<8x64xf32>
      %16 = vector.shape_cast %15 : vector<8x64xf32> to vector<8x64x1xf32>
      %17 = tpu.transpose %14, [1, 0] : vector<8x64xf32> -> vector<64x8xf32>
      %18 = vector.shape_cast %17 : vector<64x8xf32> to vector<1x64x8xf32>
      %19 = vector.broadcast %16 : vector<8x64x1xf32> to vector<8x64x8xf32>
      %20 = vector.broadcast %18 : vector<1x64x8xf32> to vector<8x64x8xf32>
      %21 = arith.addf %19, %20 : vector<8x64x8xf32>
      %22 = vector.extract_strided_slice %21 {offsets = [0, 0, 0], sizes = [8, 32, 8], strides = [1, 1, 1]} : vector<8x64x8xf32> to vector<8x32x8xf32>
      %23 = vector.extract_strided_slice %21 {offsets = [0, 32, 0], sizes = [8, 32, 8], strides = [1, 1, 1]} : vector<8x64x8xf32> to vector<8x32x8xf32>
      %cst = arith.constant 5.000000e-01 : f32
      %24 = vector.broadcast %cst : f32 to vector<8x32x8xf32>
      %25 = arith.mulf %24, %22 : vector<8x32x8xf32>
      %26 = math.tanh %25 : vector<8x32x8xf32>
      %cst_6 = arith.constant 5.000000e-01 : f32
      %27 = vector.broadcast %cst_6 : f32 to vector<8x32x8xf32>
      %28 = arith.mulf %27, %26 : vector<8x32x8xf32>
      %cst_7 = arith.constant 5.000000e-01 : f32
      %29 = vector.broadcast %cst_7 : f32 to vector<8x32x8xf32>
      %30 = arith.addf %28, %29 : vector<8x32x8xf32>
      %cst_8 = arith.constant 2.000000e+01 : f32
      %31 = vector.broadcast %cst_8 : f32 to vector<8x32x8xf32>
      %32 = arith.cmpf ogt, %23, %31 : vector<8x32x8xf32>
      %cst_9 = arith.constant 2.000000e+01 : f32
      %33 = vector.broadcast %cst_9 : f32 to vector<8x32x8xf32>
      %34 = arith.minimumf %23, %33 : vector<8x32x8xf32>
      %35 = math.exp %34 : vector<8x32x8xf32>
      %cst_10 = arith.constant 1.000000e+00 : f32
      %36 = vector.broadcast %cst_10 : f32 to vector<8x32x8xf32>
      %37 = arith.addf %36, %35 : vector<8x32x8xf32>
      %38 = math.log %37 : vector<8x32x8xf32>
      %39 = arith.select %32, %23, %38 : vector<8x32x8xi1>, vector<8x32x8xf32>
      %40 = tpu.iota {dimensions = array<i32: 0>} : vector<8x8xi32>
      %41 = tpu.iota {dimensions = array<i32: 1>} : vector<8x8xi32>
      %42 = vector.broadcast %6 : i32 to vector<8x8xi32>
      %43 = arith.addi %41, %42 : vector<8x8xi32>
      %44 = vector.broadcast %4 : i32 to vector<8x8xi32>
      %45 = arith.cmpi slt, %40, %44 : vector<8x8xi32>
      %46 = vector.broadcast %4 : i32 to vector<8x8xi32>
      %47 = arith.cmpi slt, %43, %46 : vector<8x8xi32>
      %48 = arith.andi %45, %47 : vector<8x8xi1>
      %49 = arith.cmpi ne, %40, %43 : vector<8x8xi32>
      %50 = arith.andi %48, %49 : vector<8x8xi1>
      %51 = arith.extui %50 : vector<8x8xi1> to vector<8x8xi32>
      %52 = arith.sitofp %51 : vector<8x8xi32> to vector<8x8xf32>
      %c0_11 = arith.constant 0 : index
      %c0_12 = arith.constant 0 : index
      %53 = vector.load %arg14[%c0_11, %c0_12] : memref<8x32xf32, #tpu.memory_space<vmem>>, vector<8x32xf32>
      %54 = arith.mulf %30, %39 : vector<8x32x8xf32>
      %55 = vector.shape_cast %52 : vector<8x8xf32> to vector<8x1x8xf32>
      %56 = vector.broadcast %55 : vector<8x1x8xf32> to vector<8x32x8xf32>
      %57 = arith.mulf %54, %56 : vector<8x32x8xf32>
      %cst_13 = arith.constant dense<0.000000e+00> : vector<8x32xf32>
      %58 = vector.multi_reduction <add>, %57, %cst_13 [2] : vector<8x32x8xf32> to vector<8x32xf32>
      %59 = arith.addf %53, %58 : vector<8x32xf32>
      %c0_14 = arith.constant 0 : index
      %c0_15 = arith.constant 0 : index
      %60 = vector.load %arg14[%c0_14, %c0_15] : memref<8x32xf32, #tpu.memory_space<vmem>>, vector<8x32xf32>
      tpu.vector_store %arg14[%c0_14, %c0_15], %59 {strides = array<i32>} : memref<8x32xf32, #tpu.memory_space<vmem>>, vector<8x32xf32>,
    } else {
    }
    %c0_i32_2 = arith.constant 0 : i32
    %10 = arith.cmpi eq, %arg1, %c0_i32_2 : i32
    %11 = arith.extui %10 : i1 to i32
    %c0_i32_3 = arith.constant 0 : i32
    %12 = arith.cmpi ne, %11, %c0_i32_3 : i32
    scf.if %12 {
      %c0 = arith.constant 0 : index
      %c0_4 = arith.constant 0 : index
      %13 = vector.load %arg14[%c0, %c0_4] : memref<8x32xf32, #tpu.memory_space<vmem>>, vector<8x32xf32>
      %c0_5 = arith.constant 0 : index
      %c0_6 = arith.constant 0 : index
      %14 = vector.load %arg9[%c0_5, %c0_6] : memref<1x32xf32, #tpu.memory_space<vmem>>, vector<1x32xf32>
      %15 = vector.broadcast %14 : vector<1x32xf32> to vector<8x32xf32>
      %16 = arith.mulf %13, %15 : vector<8x32xf32>
      %c0_7 = arith.constant 0 : index
      %c0_8 = arith.constant 0 : index
      %17 = vector.load %arg10[%c0_7, %c0_8] : memref<1x32xf32, #tpu.memory_space<vmem>>, vector<1x32xf32>
      %18 = vector.broadcast %17 : vector<1x32xf32> to vector<8x32xf32>
      %19 = arith.addf %16, %18 : vector<8x32xf32>
      %c0_9 = arith.constant 0 : index
      %c0_10 = arith.constant 0 : index
      %c0_11 = arith.constant 0 : index
      %20 = vector.load %arg3[%c0_9, %c0_10, %c0_11] : memref<1x8x32xf32, #tpu.memory_space<vmem>>, vector<1x8x32xf32>
      %21 = vector.shape_cast %20 : vector<1x8x32xf32> to vector<8x32xf32>
      %22 = arith.addf %19, %21 : vector<8x32xf32>
      %cst = arith.constant 0.000000e+00 : f32
      %23 = vector.broadcast %cst : f32 to vector<8x32xf32>
      %24 = arith.maximumf %22, %23 : vector<8x32xf32>
      %c0_12 = arith.constant 0 : index
      %c0_13 = arith.constant 0 : index
      %c0_14 = arith.constant 0 : index
      %25 = vector.load %arg11[%c0_12, %c0_13, %c0_14] : memref<1x8x32xf32, #tpu.memory_space<vmem>>, vector<1x8x32xf32>
      %26 = vector.shape_cast %25 : vector<1x8x32xf32> to vector<8x32xf32>
      %27 = vector.shape_cast %24 : vector<8x32xf32> to vector<1x8x32xf32>
      tpu.vector_store %arg11[%c0_12, %c0_13, %c0_14], %27 {strides = array<i32>} : memref<1x8x32xf32, #tpu.memory_space<vmem>>, vector<1x8x32xf32>,
    } else {
    }
    return
  }
  func.func @transform_0(%arg0: i32, %arg1: i32, %arg2: memref<2xi32, #tpu.memory_space<smem>>) -> (i32, i32, i32) {
    %c0_i32 = arith.constant 0 : i32
    %c0_i32_0 = arith.constant 0 : i32
    %c0_i32_1 = arith.constant 0 : i32
    return %arg0, %c0_i32, %c0_i32_0 : i32, i32, i32
  }
  func.func @transform_1(%arg0: i32, %arg1: i32, %arg2: memref<2xi32, #tpu.memory_space<smem>>) -> (i32, i32, i32) {
    %c0_i32 = arith.constant 0 : i32
    %c0_i32_0 = arith.constant 0 : i32
    %c0_i32_1 = arith.constant 0 : i32
    return %arg0, %c0_i32, %c0_i32_0 : i32, i32, i32
  }
  func.func @transform_2(%arg0: i32, %arg1: i32, %arg2: memref<2xi32, #tpu.memory_space<smem>>) -> (i32, i32) {
    %c0_i32 = arith.constant 0 : i32
    %c0_i32_0 = arith.constant 0 : i32
    %c0_i32_1 = arith.constant 0 : i32
    return %c0_i32, %c0_i32_0 : i32, i32
  }
  func.func @transform_3(%arg0: i32, %arg1: i32, %arg2: memref<2xi32, #tpu.memory_space<smem>>) -> (i32, i32) {
    %c0_i32 = arith.constant 0 : i32
    %c0_i32_0 = arith.constant 0 : i32
    %c0_i32_1 = arith.constant 0 : i32
    return %c0_i32, %c0_i32_0 : i32, i32
  }
  func.func @transform_4(%arg0: i32, %arg1: i32, %arg2: memref<2xi32, #tpu.memory_space<smem>>) -> (i32, i32) {
    %c0_i32 = arith.constant 0 : i32
    %c0_i32_0 = arith.constant 0 : i32
    %c0_i32_1 = arith.constant 0 : i32
    return %c0_i32, %c0_i32_0 : i32, i32
  }
  func.func @transform_5(%arg0: i32, %arg1: i32, %arg2: memref<2xi32, #tpu.memory_space<smem>>) -> (i32, i32) {
    %c0_i32 = arith.constant 0 : i32
    %c0_i32_0 = arith.constant 0 : i32
    %c0_i32_1 = arith.constant 0 : i32
    return %c0_i32, %c0_i32_0 : i32, i32
  }
  func.func @transform_6(%arg0: i32, %arg1: i32, %arg2: memref<2xi32, #tpu.memory_space<smem>>) -> (i32, i32) {
    %c0_i32 = arith.constant 0 : i32
    %c0_i32_0 = arith.constant 0 : i32
    %c0_i32_1 = arith.constant 0 : i32
    return %c0_i32, %c0_i32_0 : i32, i32
  }
  func.func @transform_7(%arg0: i32, %arg1: i32, %arg2: memref<2xi32, #tpu.memory_space<smem>>) -> (i32, i32) {
    %c0_i32 = arith.constant 0 : i32
    %c0_i32_0 = arith.constant 0 : i32
    %c0_i32_1 = arith.constant 0 : i32
    return %c0_i32, %c0_i32_0 : i32, i32
  }
  func.func @transform_8(%arg0: i32, %arg1: i32, %arg2: memref<2xi32, #tpu.memory_space<smem>>) -> (i32, i32, i32) {
    %c0_i32 = arith.constant 0 : i32
    %c0_i32_0 = arith.constant 0 : i32
    %c0_i32_1 = arith.constant 0 : i32
    return %arg0, %c0_i32, %c0_i32_0 : i32, i32, i32
  }
}

module attributes {stable_mosaic.version = 11 : i64} {
  func.func @_cgconv_kernel(%arg0: i32, %arg1: i32, %arg2: memref<2xi32, #tpu.memory_space<smem>>, %arg3: memref<1x8x32xf32, #tpu.memory_space<vmem>>, %arg4: memref<1x8x2xf32, #tpu.memory_space<vmem>>, %arg5: memref<32x64xf32, #tpu.memory_space<vmem>>, %arg6: memref<32x64xf32, #tpu.memory_space<vmem>>, %arg7: memref<2x64xf32, #tpu.memory_space<vmem>>, %arg8: memref<1x64xf32, #tpu.memory_space<vmem>>, %arg9: memref<1x32xf32, #tpu.memory_space<vmem>>, %arg10: memref<1x32xf32, #tpu.memory_space<vmem>>, %arg11: memref<1x8x32xf32, #tpu.memory_space<vmem>>, %arg12: memref<8x64xf32, #tpu.memory_space<vmem>>, %arg13: memref<8x64xf32, #tpu.memory_space<vmem>>, %arg14: memref<8x32xf32, #tpu.memory_space<vmem>>) attributes {dimension_semantics = [#tpu.dimension_semantics<parallel>, #tpu.dimension_semantics<arbitrary>], iteration_bounds = array<i64: 2, 1>, scalar_prefetch = 1 : i64, scratch_operands = 3 : i64, tpu.core_type = #tpu.core_type<tc>, window_params = [{transform_indices = @transform_0, window_bounds = array<i64: 1, 8, 32>}, {transform_indices = @transform_1, window_bounds = array<i64: 1, 8, 2>}, {pipeline_mode = #tpu.pipeline_mode<synchronous>, transform_indices = @transform_2, window_bounds = array<i64: 32, 64>}, {pipeline_mode = #tpu.pipeline_mode<synchronous>, transform_indices = @transform_3, window_bounds = array<i64: 32, 64>}, {pipeline_mode = #tpu.pipeline_mode<synchronous>, transform_indices = @transform_4, window_bounds = array<i64: 2, 64>}, {pipeline_mode = #tpu.pipeline_mode<synchronous>, transform_indices = @transform_5, window_bounds = array<i64: 1, 64>}, {pipeline_mode = #tpu.pipeline_mode<synchronous>, transform_indices = @transform_6, window_bounds = array<i64: 1, 32>}, {pipeline_mode = #tpu.pipeline_mode<synchronous>, transform_indices = @transform_7, window_bounds = array<i64: 1, 32>}, {transform_indices = @transform_8, window_bounds = array<i64: 1, 8, 32>}]} {
    %c0_i32 = arith.constant 0 : i32
    %0 = arith.cmpi eq, %arg1, %c0_i32 : i32
    %1 = arith.extui %0 : i1 to i32
    %c0_i32_0 = arith.constant 0 : i32
    %2 = arith.cmpi ne, %1, %c0_i32_0 : i32
    scf.if %2 {
      %c0 = arith.constant 0 : index
      %c0_4 = arith.constant 0 : index
      %c0_5 = arith.constant 0 : index
      %13 = vector.load %arg3[%c0, %c0_4, %c0_5] : memref<1x8x32xf32, #tpu.memory_space<vmem>>, vector<1x8x32xf32>
      %14 = vector.shape_cast %13 : vector<1x8x32xf32> to vector<8x32xf32>
      %c0_6 = arith.constant 0 : index
      %c0_7 = arith.constant 0 : index
      %c0_8 = arith.constant 0 : index
      %15 = vector.load %arg4[%c0_6, %c0_7, %c0_8] : memref<1x8x2xf32, #tpu.memory_space<vmem>>, vector<1x8x2xf32>
      %16 = vector.shape_cast %15 : vector<1x8x2xf32> to vector<8x2xf32>
      %c0_9 = arith.constant 0 : index
      %c0_10 = arith.constant 0 : index
      %17 = vector.load %arg7[%c0_9, %c0_10] : memref<2x64xf32, #tpu.memory_space<vmem>>, vector<2x64xf32>
      %cst = arith.constant dense<0.000000e+00> : vector<8x64xf32>
      %18 = tpu.matmul %16, %17, %cst {dimension_numbers = #tpu.dot_dimension_numbers<[1], [0], [0], [1], [0, 0, 1, 1], [], []>, precision = #tpu.contract_precision<fp32>} : vector<8x2xf32>, vector<2x64xf32>, vector<8x64xf32> -> vector<8x64xf32>
      %c0_11 = arith.constant 0 : index
      %c0_12 = arith.constant 0 : index
      %19 = vector.load %arg5[%c0_11, %c0_12] : memref<32x64xf32, #tpu.memory_space<vmem>>, vector<32x64xf32>
      %cst_13 = arith.constant dense<0.000000e+00> : vector<8x64xf32>
      %20 = tpu.matmul %14, %19, %cst_13 {dimension_numbers = #tpu.dot_dimension_numbers<[1], [0], [0], [1], [0, 0, 1, 1], [], []>, precision = #tpu.contract_precision<fp32>} : vector<8x32xf32>, vector<32x64xf32>, vector<8x64xf32> -> vector<8x64xf32>
      %21 = arith.addf %20, %18 : vector<8x64xf32>
      %c0_14 = arith.constant 0 : index
      %c0_15 = arith.constant 0 : index
      %22 = vector.load %arg8[%c0_14, %c0_15] : memref<1x64xf32, #tpu.memory_space<vmem>>, vector<1x64xf32>
      %23 = vector.broadcast %22 : vector<1x64xf32> to vector<8x64xf32>
      %24 = arith.addf %21, %23 : vector<8x64xf32>
      %c0_16 = arith.constant 0 : index
      %c0_17 = arith.constant 0 : index
      %25 = vector.load %arg12[%c0_16, %c0_17] : memref<8x64xf32, #tpu.memory_space<vmem>>, vector<8x64xf32>
      tpu.vector_store %arg12[%c0_16, %c0_17], %24 {strides = array<i32>} : memref<8x64xf32, #tpu.memory_space<vmem>>, vector<8x64xf32>,
      %c0_18 = arith.constant 0 : index
      %c0_19 = arith.constant 0 : index
      %26 = vector.load %arg6[%c0_18, %c0_19] : memref<32x64xf32, #tpu.memory_space<vmem>>, vector<32x64xf32>
      %cst_20 = arith.constant dense<0.000000e+00> : vector<8x64xf32>
      %27 = tpu.matmul %14, %26, %cst_20 {dimension_numbers = #tpu.dot_dimension_numbers<[1], [0], [0], [1], [0, 0, 1, 1], [], []>, precision = #tpu.contract_precision<fp32>} : vector<8x32xf32>, vector<32x64xf32>, vector<8x64xf32> -> vector<8x64xf32>
      %28 = arith.subf %27, %18 : vector<8x64xf32>
      %c0_21 = arith.constant 0 : index
      %c0_22 = arith.constant 0 : index
      %29 = vector.load %arg13[%c0_21, %c0_22] : memref<8x64xf32, #tpu.memory_space<vmem>>, vector<8x64xf32>
      tpu.vector_store %arg13[%c0_21, %c0_22], %28 {strides = array<i32>} : memref<8x64xf32, #tpu.memory_space<vmem>>, vector<8x64xf32>,
      %cst_23 = arith.constant 0.000000e+00 : f32
      %30 = vector.broadcast %cst_23 : f32 to vector<8x32xf32>
      %c0_24 = arith.constant 0 : index
      %c0_25 = arith.constant 0 : index
      %31 = vector.load %arg14[%c0_24, %c0_25] : memref<8x32xf32, #tpu.memory_space<vmem>>, vector<8x32xf32>
      tpu.vector_store %arg14[%c0_24, %c0_25], %30 {strides = array<i32>} : memref<8x32xf32, #tpu.memory_space<vmem>>, vector<8x32xf32>,
    } else {
    }
    %3 = arith.index_cast %arg0 : i32 to index
    %4 = memref.load %arg2[%3] : memref<2xi32, #tpu.memory_space<smem>>
    %c8_i32 = arith.constant 8 : i32
    %5 = arith.muli %arg1, %c8_i32 : i32
    %6 = tpu.assume_multiple %5, 8 : i32
    %7 = arith.cmpi slt, %6, %4 : i32
    %8 = arith.extui %7 : i1 to i32
    %c0_i32_1 = arith.constant 0 : i32
    %9 = arith.cmpi ne, %8, %c0_i32_1 : i32
    scf.if %9 {
      %13 = arith.index_cast %6 : i32 to index
      %c0 = arith.constant 0 : index
      %14 = vector.load %arg13[%13, %c0] : memref<8x64xf32, #tpu.memory_space<vmem>>, vector<8x64xf32>
      %c0_4 = arith.constant 0 : index
      %c0_5 = arith.constant 0 : index
      %15 = vector.load %arg12[%c0_4, %c0_5] : memref<8x64xf32, #tpu.memory_space<vmem>>, vector<8x64xf32>
      %16 = vector.shape_cast %15 : vector<8x64xf32> to vector<8x64x1xf32>
      %17 = tpu.transpose %14, [1, 0] : vector<8x64xf32> -> vector<64x8xf32>
      %18 = vector.shape_cast %17 : vector<64x8xf32> to vector<1x64x8xf32>
      %19 = vector.broadcast %16 : vector<8x64x1xf32> to vector<8x64x8xf32>
      %20 = vector.broadcast %18 : vector<1x64x8xf32> to vector<8x64x8xf32>
      %21 = arith.addf %19, %20 : vector<8x64x8xf32>
      %22 = vector.extract_strided_slice %21 {offsets = [0, 0, 0], sizes = [8, 32, 8], strides = [1, 1, 1]} : vector<8x64x8xf32> to vector<8x32x8xf32>
      %23 = vector.extract_strided_slice %21 {offsets = [0, 32, 0], sizes = [8, 32, 8], strides = [1, 1, 1]} : vector<8x64x8xf32> to vector<8x32x8xf32>
      %cst = arith.constant 5.000000e-01 : f32
      %24 = vector.broadcast %cst : f32 to vector<8x32x8xf32>
      %25 = arith.mulf %24, %22 : vector<8x32x8xf32>
      %26 = math.tanh %25 : vector<8x32x8xf32>
      %cst_6 = arith.constant 5.000000e-01 : f32
      %27 = vector.broadcast %cst_6 : f32 to vector<8x32x8xf32>
      %28 = arith.mulf %27, %26 : vector<8x32x8xf32>
      %cst_7 = arith.constant 5.000000e-01 : f32
      %29 = vector.broadcast %cst_7 : f32 to vector<8x32x8xf32>
      %30 = arith.addf %28, %29 : vector<8x32x8xf32>
      %cst_8 = arith.constant 2.000000e+01 : f32
      %31 = vector.broadcast %cst_8 : f32 to vector<8x32x8xf32>
      %32 = arith.cmpf ogt, %23, %31 : vector<8x32x8xf32>
      %cst_9 = arith.constant 2.000000e+01 : f32
      %33 = vector.broadcast %cst_9 : f32 to vector<8x32x8xf32>
      %34 = arith.minimumf %23, %33 : vector<8x32x8xf32>
      %35 = math.exp %34 : vector<8x32x8xf32>
      %cst_10 = arith.constant 1.000000e+00 : f32
      %36 = vector.broadcast %cst_10 : f32 to vector<8x32x8xf32>
      %37 = arith.addf %36, %35 : vector<8x32x8xf32>
      %38 = math.log %37 : vector<8x32x8xf32>
      %39 = arith.select %32, %23, %38 : vector<8x32x8xi1>, vector<8x32x8xf32>
      %40 = tpu.iota {dimensions = array<i32: 0>} : vector<8x8xi32>
      %41 = tpu.iota {dimensions = array<i32: 1>} : vector<8x8xi32>
      %42 = vector.broadcast %6 : i32 to vector<8x8xi32>
      %43 = arith.addi %41, %42 : vector<8x8xi32>
      %44 = vector.broadcast %4 : i32 to vector<8x8xi32>
      %45 = arith.cmpi slt, %40, %44 : vector<8x8xi32>
      %46 = vector.broadcast %4 : i32 to vector<8x8xi32>
      %47 = arith.cmpi slt, %43, %46 : vector<8x8xi32>
      %48 = arith.andi %45, %47 : vector<8x8xi1>
      %49 = arith.cmpi ne, %40, %43 : vector<8x8xi32>
      %50 = arith.andi %48, %49 : vector<8x8xi1>
      %51 = arith.extui %50 : vector<8x8xi1> to vector<8x8xi32>
      %52 = arith.sitofp %51 : vector<8x8xi32> to vector<8x8xf32>
      %c0_11 = arith.constant 0 : index
      %c0_12 = arith.constant 0 : index
      %53 = vector.load %arg14[%c0_11, %c0_12] : memref<8x32xf32, #tpu.memory_space<vmem>>, vector<8x32xf32>
      %54 = arith.mulf %30, %39 : vector<8x32x8xf32>
      %55 = vector.shape_cast %52 : vector<8x8xf32> to vector<8x1x8xf32>
      %56 = vector.broadcast %55 : vector<8x1x8xf32> to vector<8x32x8xf32>
      %57 = arith.mulf %54, %56 : vector<8x32x8xf32>
      %cst_13 = arith.constant dense<0.000000e+00> : vector<8x32xf32>
      %58 = vector.multi_reduction <add>, %57, %cst_13 [2] : vector<8x32x8xf32> to vector<8x32xf32>
      %59 = arith.addf %53, %58 : vector<8x32xf32>
      %c0_14 = arith.constant 0 : index
      %c0_15 = arith.constant 0 : index
      %60 = vector.load %arg14[%c0_14, %c0_15] : memref<8x32xf32, #tpu.memory_space<vmem>>, vector<8x32xf32>
      tpu.vector_store %arg14[%c0_14, %c0_15], %59 {strides = array<i32>} : memref<8x32xf32, #tpu.memory_space<vmem>>, vector<8x32xf32>,
    } else {
    }
    %c0_i32_2 = arith.constant 0 : i32
    %10 = arith.cmpi eq, %arg1, %c0_i32_2 : i32
    %11 = arith.extui %10 : i1 to i32
    %c0_i32_3 = arith.constant 0 : i32
    %12 = arith.cmpi ne, %11, %c0_i32_3 : i32
    scf.if %12 {
      %c0 = arith.constant 0 : index
      %c0_4 = arith.constant 0 : index
      %13 = vector.load %arg14[%c0, %c0_4] : memref<8x32xf32, #tpu.memory_space<vmem>>, vector<8x32xf32>
      %c0_5 = arith.constant 0 : index
      %c0_6 = arith.constant 0 : index
      %14 = vector.load %arg9[%c0_5, %c0_6] : memref<1x32xf32, #tpu.memory_space<vmem>>, vector<1x32xf32>
      %15 = vector.broadcast %14 : vector<1x32xf32> to vector<8x32xf32>
      %16 = arith.mulf %13, %15 : vector<8x32xf32>
      %c0_7 = arith.constant 0 : index
      %c0_8 = arith.constant 0 : index
      %17 = vector.load %arg10[%c0_7, %c0_8] : memref<1x32xf32, #tpu.memory_space<vmem>>, vector<1x32xf32>
      %18 = vector.broadcast %17 : vector<1x32xf32> to vector<8x32xf32>
      %19 = arith.addf %16, %18 : vector<8x32xf32>
      %c0_9 = arith.constant 0 : index
      %c0_10 = arith.constant 0 : index
      %c0_11 = arith.constant 0 : index
      %20 = vector.load %arg3[%c0_9, %c0_10, %c0_11] : memref<1x8x32xf32, #tpu.memory_space<vmem>>, vector<1x8x32xf32>
      %21 = vector.shape_cast %20 : vector<1x8x32xf32> to vector<8x32xf32>
      %22 = arith.addf %19, %21 : vector<8x32xf32>
      %cst = arith.constant 0.000000e+00 : f32
      %23 = vector.broadcast %cst : f32 to vector<8x32xf32>
      %24 = arith.maximumf %22, %23 : vector<8x32xf32>
      %c0_12 = arith.constant 0 : index
      %c0_13 = arith.constant 0 : index
      %c0_14 = arith.constant 0 : index
      %25 = vector.load %arg11[%c0_12, %c0_13, %c0_14] : memref<1x8x32xf32, #tpu.memory_space<vmem>>, vector<1x8x32xf32>
      %26 = vector.shape_cast %25 : vector<1x8x32xf32> to vector<8x32xf32>
      %27 = vector.shape_cast %24 : vector<8x32xf32> to vector<1x8x32xf32>
      tpu.vector_store %arg11[%c0_12, %c0_13, %c0_14], %27 {strides = array<i32>} : memref<1x8x32xf32, #tpu.memory_space<vmem>>, vector<1x8x32xf32>,
    } else {
    }
    return
  }
  func.func @transform_0(%arg0: i32, %arg1: i32, %arg2: memref<2xi32, #tpu.memory_space<smem>>) -> (i32, i32, i32) {
    %c0_i32 = arith.constant 0 : i32
    %c0_i32_0 = arith.constant 0 : i32
    %c0_i32_1 = arith.constant 0 : i32
    return %arg0, %c0_i32, %c0_i32_0 : i32, i32, i32
  }
  func.func @transform_1(%arg0: i32, %arg1: i32, %arg2: memref<2xi32, #tpu.memory_space<smem>>) -> (i32, i32, i32) {
    %c0_i32 = arith.constant 0 : i32
    %c0_i32_0 = arith.constant 0 : i32
    %c0_i32_1 = arith.constant 0 : i32
    return %arg0, %c0_i32, %c0_i32_0 : i32, i32, i32
  }
  func.func @transform_2(%arg0: i32, %arg1: i32, %arg2: memref<2xi32, #tpu.memory_space<smem>>) -> (i32, i32) {
    %c0_i32 = arith.constant 0 : i32
    %c0_i32_0 = arith.constant 0 : i32
    %c0_i32_1 = arith.constant 0 : i32
    return %c0_i32, %c0_i32_0 : i32, i32
  }
  func.func @transform_3(%arg0: i32, %arg1: i32, %arg2: memref<2xi32, #tpu.memory_space<smem>>) -> (i32, i32) {
    %c0_i32 = arith.constant 0 : i32
    %c0_i32_0 = arith.constant 0 : i32
    %c0_i32_1 = arith.constant 0 : i32
    return %c0_i32, %c0_i32_0 : i32, i32
  }
  func.func @transform_4(%arg0: i32, %arg1: i32, %arg2: memref<2xi32, #tpu.memory_space<smem>>) -> (i32, i32) {
    %c0_i32 = arith.constant 0 : i32
    %c0_i32_0 = arith.constant 0 : i32
    %c0_i32_1 = arith.constant 0 : i32
    return %c0_i32, %c0_i32_0 : i32, i32
  }
  func.func @transform_5(%arg0: i32, %arg1: i32, %arg2: memref<2xi32, #tpu.memory_space<smem>>) -> (i32, i32) {
    %c0_i32 = arith.constant 0 : i32
    %c0_i32_0 = arith.constant 0 : i32
    %c0_i32_1 = arith.constant 0 : i32
    return %c0_i32, %c0_i32_0 : i32, i32
  }
  func.func @transform_6(%arg0: i32, %arg1: i32, %arg2: memref<2xi32, #tpu.memory_space<smem>>) -> (i32, i32) {
    %c0_i32 = arith.constant 0 : i32
    %c0_i32_0 = arith.constant 0 : i32
    %c0_i32_1 = arith.constant 0 : i32
    return %c0_i32, %c0_i32_0 : i32, i32
  }
  func.func @transform_7(%arg0: i32, %arg1: i32, %arg2: memref<2xi32, #tpu.memory_space<smem>>) -> (i32, i32) {
    %c0_i32 = arith.constant 0 : i32
    %c0_i32_0 = arith.constant 0 : i32
    %c0_i32_1 = arith.constant 0 : i32
    return %c0_i32, %c0_i32_0 : i32, i32
  }
  func.func @transform_8(%arg0: i32, %arg1: i32, %arg2: memref<2xi32, #tpu.memory_space<smem>>) -> (i32, i32, i32) {
    %c0_i32 = arith.constant 0 : i32
    %c0_i32_0 = arith.constant 0 : i32
    %c0_i32_1 = arith.constant 0 : i32
    return %arg0, %c0_i32, %c0_i32_0 : i32, i32, i32
  }
}

</mosaic_0001>

<llo_original>
// kernel: agent_gnn_forward.3
$region0: #{agent_gnn_forward.3}
  #allocation0 [shape = 'u32[]', space=smem, size = 0x4, offset = 0x4, fixed_abs, tag = 'smem constant byte address 0x4 - core index']
  #allocation1 [shape = 'u32[144,128]{1,0:T(1,128)}', space=vmem, size = 0x12000, scoped, tag = 'internal scratch']
  #allocation2 [shape = 'f32[8,64]{1,0:T(8,128)}', space=vmem, size = 0x1000, scoped, tag = 'scratch operand']
  #allocation3 [shape = 'f32[8,64]{1,0:T(8,128)}', space=vmem, size = 0x1000, scoped, tag = 'scratch operand']
  #allocation4 [shape = 'f32[8,32]{1,0:T(8,128)}', space=vmem, size = 0x1000, scoped, tag = 'scratch operand']
  #allocation5 [shape = 's32[1]{0}', space=sflag, size = 0x4, scoped, tag = 'scoped memory for agent_gnn_forward.3']
  #allocation6 [shape = 'u8[512]{0}', space=smem, size = 0x200, scoped, tag = 'prefetched SMEM operand 0']
  %s0 = inlined_call_operand.vmem [shape: s32[2], index: 0, kind: input, shape index: {}]
  %s1 = inlined_call_operand.vmem [shape: f32[2,8,32], index: 1, kind: input, shape index: {}]
  %s2 = inlined_call_operand.vmem [shape: f32[2,8,2], index: 2, kind: input, shape index: {}]
  %s3 = inlined_call_operand.vmem [shape: f32[32,64], index: 3, kind: input, shape index: {}]
  %s4 = inlined_call_operand.vmem [shape: f32[32,64], index: 4, kind: input, shape index: {}]
  %s5 = inlined_call_operand.vmem [shape: f32[2,64], index: 5, kind: input, shape index: {}]
  %s6 = inlined_call_operand.vmem [shape: f32[1,64], index: 6, kind: input, shape index: {}]
  %s7 = inlined_call_operand.vmem [shape: f32[1,32], index: 7, kind: input, shape index: {}]
  %s8 = inlined_call_operand.vmem [shape: f32[1,32], index: 8, kind: input, shape index: {}]
  %s9 = inlined_call_operand.hbm [shape: f32[2,8,32], index: 9, kind: output, shape index: {}]
  %s10 = sld [smem:[#allocation0]]
  $region77: #{agent_gnn_forward.3} parent=0
    _
  %s12 = ssub.s32 1, %s10
  %s13 = scalar_select 0, %s12, %s10
  %s14 = sshll.u32 %s0, 4
  %s15 = int_to_ptr.vmem [resolvable:$true] %s14
  %17 = dma.vmem_to_smem %s15, 16, [#allocation6], [#allocation5]
  %18 = dma.done [#allocation5], 16
  %19 = sfence
  $region1: #{agent_gnn_forward.3} parent=0
    #allocation7 [shape = 'u8[8192]{0}', space=vmem, size = 0x2000, scoped, tag = 'output window, operand 0']
    #allocation8 [shape = 's32[2]{0}', space=sflag, size = 0x8, scoped, tag = 'scoped memory for agent_gnn_forward.3']
    %20 = vsyncpa [#allocation8], 0
    %s21 = scalar_lea.sflag [#allocation8], 1
    %22 = vsyncpa %s21, 0
    loop: start=0, step=1, limit=4
    $region2: #{agent_gnn_forward.3} parent=1 // loop_pre_header
      _
    $region3: #{agent_gnn_forward.3} parent=1 // loop_header
      %s24 = sphi 0, %s28
      %p25 = scmp.ge.s32.totalorder %s24, 4
      %s31 = sphi 0, %s43
      %s32 = sphi 0, %s39
      %s33 = sphi 0, %s31
      %s34 = sphi 0, %s32
      %s35 = sphi 0, %s33
      %s36 = sphi 0, %s34
      %s46 = sphi 0, %s48
      %s49 = sphi 0, %s46
      %s50 = sphi 0, %s49
      %s66 = sphi 0, %s50
      %s72 = sphi 0, %s74
      %s75 = sphi 0, %s72
      %s76 = sphi 0, %s75
      %s92 = sphi 0, %s76
      %s96 = sphi 0, %s96
      %s98 = sphi 0, %s96
      %s99 = sphi 0, %s98
      %s113 = sphi 0, %s99
      %s117 = sphi 0, %s117
      %s119 = sphi 0, %s117
      %s120 = sphi 0, %s119
      %s134 = sphi 0, %s120
      %s138 = sphi 0, %s138
      %s140 = sphi 0, %s138
      %s141 = sphi 0, %s140
      %s155 = sphi 0, %s141
      %s159 = sphi 0, %s159
      %s161 = sphi 0, %s159
      %s162 = sphi 0, %s161
      %s176 = sphi 0, %s162
      %s180 = sphi 0, %s180
      %s182 = sphi 0, %s180
      %s183 = sphi 0, %s182
      %s197 = sphi 0, %s183
      %s201 = sphi 0, %s201
      %s203 = sphi 0, %s201
      %s204 = sphi 0, %s203
      %s218 = sphi 0, %s204
      %s224 = sphi 0, %s226
      %s227 = sphi 0, %s224
      %s228 = sphi 0, %s227
      %s244 = sphi 0, %s228
    $region4: #{agent_gnn_forward.3} parent=1 // loop_header_branch
      %27 = sbr.rel (%p25) target = $region8
    $region5: #{agent_gnn_forward.3} parent=1 // loop_body
      %s29 = ssub.s32 %s24, 1
      %s30 = ssub.s32 %s24, 2
      %s37 = sadd.s32 1, %s32
      %p38 = scmp.ge.s32.totalorder %s37, 1
      %s39 = scalar_select %p38, 0, %s37
      %s40 = sadd.s32 1, %s31
      %s41 = scalar_select %p38, %s40, %s31
      %p42 = scmp.ge.s32.totalorder %s41, 2
      %s43 = scalar_select %p42, 0, %s41
      %s44 = ssub.s32 %s31, %s43
      %p45 = scmp.eq.s32.totalorder %s44, 0
      %s47 = sadd.s32 %s46, 1
      %s48 = scalar_select %p45, %s46, %s47
      %p51 = pneg %p45
      %p52 = scmp.eq.s32.totalorder %s24, 1
      %p53 = por %p51, %p52
      %p54 = scmp.ne.s32.totalorder %s46, %s49
      %p55 = scmp.eq.s32.totalorder %s24, 0
      %p56 = por %p54, %p55
      %p57 = scmp.ne.s32.totalorder %s46, %s49
      %p58 = scmp.eq.s32.totalorder %s29, 1
      %p59 = por %p57, %p58
      %p60 = scmp.ne.s32.totalorder %s49, %s50
      %p61 = scmp.eq.s32.totalorder %s29, 0
      %p62 = por %p60, %p61
      %p63 = scmp.ne.s32.totalorder %s49, %s50
      %p64 = scmp.eq.s32.totalorder %s30, 1
      %p65 = por %p63, %p64
      %p67 = scmp.ne.s32.totalorder %s50, %s66
      %p68 = scmp.eq.s32.totalorder %s30, 0
      %p69 = por %p67, %p68
      %s70 = ssub.s32 %s31, %s43
      %p71 = scmp.eq.s32.totalorder %s70, 0
      %s73 = sadd.s32 %s72, 1
      %s74 = scalar_select %p71, %s72, %s73
      %p77 = pneg %p71
      %p78 = scmp.eq.s32.totalorder %s24, 1
      %p79 = por %p77, %p78
      %p80 = scmp.ne.s32.totalorder %s72, %s75
      %p81 = scmp.eq.s32.totalorder %s24, 0
      %p82 = por %p80, %p81
      %p83 = scmp.ne.s32.totalorder %s72, %s75
      %p84 = scmp.eq.s32.totalorder %s29, 1
      %p85 = por %p83, %p84
      %p86 = scmp.ne.s32.totalorder %s75, %s76
      %p87 = scmp.eq.s32.totalorder %s29, 0
      %p88 = por %p86, %p87
      %p89 = scmp.ne.s32.totalorder %s75, %s76
      %p90 = scmp.eq.s32.totalorder %s30, 1
      %p91 = por %p89, %p90
      %p93 = scmp.ne.s32.totalorder %s76, %s92
      %p94 = scmp.eq.s32.totalorder %s30, 0
      %p95 = por %p93, %p94
      %s97 = sadd.s32 %s96, 1
      %p100 = scmp.eq.s32.totalorder %s24, 1
      %p101 = scmp.ne.s32.totalorder %s96, %s98
      %p102 = scmp.eq.s32.totalorder %s24, 0
      %p103 = por %p101, %p102
      %p104 = scmp.ne.s32.totalorder %s96, %s98
      %p105 = scmp.eq.s32.totalorder %s29, 1
      %p106 = por %p104, %p105
      %p107 = scmp.ne.s32.totalorder %s98, %s99
      %p108 = scmp.eq.s32.totalorder %s29, 0
      %p109 = por %p107, %p108
      %p110 = scmp.ne.s32.totalorder %s98, %s99
      %p111 = scmp.eq.s32.totalorder %s30, 1
      %p112 = por %p110, %p111
      %p114 = scmp.ne.s32.totalorder %s99, %s113
      %p115 = scmp.eq.s32.totalorder %s30, 0
      %p116 = por %p114, %p115
      %s118 = sadd.s32 %s117, 1
      %p121 = scmp.eq.s32.totalorder %s24, 1
      %p122 = scmp.ne.s32.totalorder %s117, %s119
      %p123 = scmp.eq.s32.totalorder %s24, 0
      %p124 = por %p122, %p123
      %p125 = scmp.ne.s32.totalorder %s117, %s119
      %p126 = scmp.eq.s32.totalorder %s29, 1
      %p127 = por %p125, %p126
      %p128 = scmp.ne.s32.totalorder %s119, %s120
      %p129 = scmp.eq.s32.totalorder %s29, 0
      %p130 = por %p128, %p129
      %p131 = scmp.ne.s32.totalorder %s119, %s120
      %p132 = scmp.eq.s32.totalorder %s30, 1
      %p133 = por %p131, %p132
      %p135 = scmp.ne.s32.totalorder %s120, %s134
      %p136 = scmp.eq.s32.totalorder %s30, 0
      %p137 = por %p135, %p136
      %s139 = sadd.s32 %s138, 1
      %p142 = scmp.eq.s32.totalorder %s24, 1
      %p143 = scmp.ne.s32.totalorder %s138, %s140
      %p144 = scmp.eq.s32.totalorder %s24, 0
      %p145 = por %p143, %p144
      %p146 = scmp.ne.s32.totalorder %s138, %s140
      %p147 = scmp.eq.s32.totalorder %s29, 1
      %p148 = por %p146, %p147
      %p149 = scmp.ne.s32.totalorder %s140, %s141
      %p150 = scmp.eq.s32.totalorder %s29, 0
      %p151 = por %p149, %p150
      %p152 = scmp.ne.s32.totalorder %s140, %s141
      %p153 = scmp.eq.s32.totalorder %s30, 1
      %p154 = por %p152, %p153
      %p156 = scmp.ne.s32.totalorder %s141, %s155
      %p157 = scmp.eq.s32.totalorder %s30, 0
      %p158 = por %p156, %p157
      %s160 = sadd.s32 %s159, 1
      %p163 = scmp.eq.s32.totalorder %s24, 1
      %p164 = scmp.ne.s32.totalorder %s159, %s161
      %p165 = scmp.eq.s32.totalorder %s24, 0
      %p166 = por %p164, %p165
      %p167 = scmp.ne.s32.totalorder %s159, %s161
      %p168 = scmp.eq.s32.totalorder %s29, 1
      %p169 = por %p167, %p168
      %p170 = scmp.ne.s32.totalorder %s161, %s162
      %p171 = scmp.eq.s32.totalorder %s29, 0
      %p172 = por %p170, %p171
      %p173 = scmp.ne.s32.totalorder %s161, %s162
      %p174 = scmp.eq.s32.totalorder %s30, 1
      %p175 = por %p173, %p174
      %p177 = scmp.ne.s32.totalorder %s162, %s176
      %p178 = scmp.eq.s32.totalorder %s30, 0
      %p179 = por %p177, %p178
      %s181 = sadd.s32 %s180, 1
      %p184 = scmp.eq.s32.totalorder %s24, 1
      %p185 = scmp.ne.s32.totalorder %s180, %s182
      %p186 = scmp.eq.s32.totalorder %s24, 0
      %p187 = por %p185, %p186
      %p188 = scmp.ne.s32.totalorder %s180, %s182
      %p189 = scmp.eq.s32.totalorder %s29, 1
      %p190 = por %p188, %p189
      %p191 = scmp.ne.s32.totalorder %s182, %s183
      %p192 = scmp.eq.s32.totalorder %s29, 0
      %p193 = por %p191, %p192
      %p194 = scmp.ne.s32.totalorder %s182, %s183
      %p195 = scmp.eq.s32.totalorder %s30, 1
      %p196 = por %p194, %p195
      %p198 = scmp.ne.s32.totalorder %s183, %s197
      %p199 = scmp.eq.s32.totalorder %s30, 0
      %p200 = por %p198, %p199
      %s202 = sadd.s32 %s201, 1
      %p205 = scmp.eq.s32.totalorder %s24, 1
      %p206 = scmp.ne.s32.totalorder %s201, %s203
      %p207 = scmp.eq.s32.totalorder %s24, 0
      %p208 = por %p206, %p207
      %p209 = scmp.ne.s32.totalorder %s201, %s203
      %p210 = scmp.eq.s32.totalorder %s29, 1
      %p211 = por %p209, %p210
      %p212 = scmp.ne.s32.totalorder %s203, %s204
      %p213 = scmp.eq.s32.totalorder %s29, 0
      %p214 = por %p212, %p213
      %p215 = scmp.ne.s32.totalorder %s203, %s204
      %p216 = scmp.eq.s32.totalorder %s30, 1
      %p217 = por %p215, %p216
      %p219 = scmp.ne.s32.totalorder %s204, %s218
      %p220 = scmp.eq.s32.totalorder %s30, 0
      %p221 = por %p219, %p220
      %s222 = ssub.s32 %s31, %s43
      %p223 = scmp.eq.s32.totalorder %s222, 0
      %s225 = sadd.s32 %s224, 1
      %s226 = scalar_select %p223, %s224, %s225
      %p229 = pneg %p223
      %p230 = scmp.eq.s32.totalorder %s24, 1
      %p231 = por %p229, %p230
      %p232 = scmp.ne.s32.totalorder %s224, %s227
      %p233 = scmp.eq.s32.totalorder %s24, 0
      %p234 = por %p232, %p233
      %p235 = scmp.ne.s32.totalorder %s224, %s227
      %p236 = scmp.eq.s32.totalorder %s29, 1
      %p237 = por %p235, %p236
      %p238 = scmp.ne.s32.totalorder %s227, %s228
      %p239 = scmp.eq.s32.totalorder %s29, 0
      %p240 = por %p238, %p239
      %p241 = scmp.ne.s32.totalorder %s227, %s228
      %p242 = scmp.eq.s32.totalorder %s30, 1
      %p243 = por %p241, %p242
      %p245 = scmp.ne.s32.totalorder %s228, %s244
      %p246 = scmp.eq.s32.totalorder %s30, 0
      %p247 = por %p245, %p246
      %p248 = scmp.le.s32.totalorder 1, %s24
      %p249 = scmp.lt.s32.totalorder %s24, 3
      %p250 = pnand %p248, %p249
      %p251 = pneg %p250
      // Predicated region
      $region9: #{agent_gnn_forward.3} parent=5 // pred_check
        _
      $region10: #{agent_gnn_forward.3} parent=5 // pred_check_branch
        %253 = sbr.rel (%p250) target = $region12
      $region11: #{agent_gnn_forward.3} parent=5 // pred_region
        %s254 = ssub.s32 %s24, 1
        // Predicated region
        $region13: #{agent_gnn_forward.3} parent=11 // pred_check
          %p255 = pneg %p109
        $region14: #{agent_gnn_forward.3} parent=11 // pred_check_branch
          %257 = sbr.rel (%p255) target = $region16
        $region15: #{agent_gnn_forward.3} parent=11 // pred_region
          _
        $region16: #{agent_gnn_forward.3} parent=11 // pred_fallthru
          _
        // Predicated region
        $region17: #{agent_gnn_forward.3} parent=11 // pred_check
          %p258 = pneg %p130
        $region18: #{agent_gnn_forward.3} parent=11 // pred_check_branch
          %260 = sbr.rel (%p258) target = $region20
        $region19: #{agent_gnn_forward.3} parent=11 // pred_region
          _
        $region20: #{agent_gnn_forward.3} parent=11 // pred_fallthru
          _
        // Predicated region
        $region21: #{agent_gnn_forward.3} parent=11 // pred_check
          %p261 = pneg %p151
        $region22: #{agent_gnn_forward.3} parent=11 // pred_check_branch
          %263 = sbr.rel (%p261) target = $region24
        $region23: #{agent_gnn_forward.3} parent=11 // pred_region
          _
        $region24: #{agent_gnn_forward.3} parent=11 // pred_fallthru
          _
        // Predicated region
        $region25: #{agent_gnn_forward.3} parent=11 // pred_check
          %p264 = pneg %p172
        $region26: #{agent_gnn_forward.3} parent=11 // pred_check_branch
          %266 = sbr.rel (%p264) target = $region28
        $region27: #{agent_gnn_forward.3} parent=11 // pred_region
          _
        $region28: #{agent_gnn_forward.3} parent=11 // pred_fallthru
          _
        // Predicated region
        $region29: #{agent_gnn_forward.3} parent=11 // pred_check
          %p267 = pneg %p193
        $region30: #{agent_gnn_forward.3} parent=11 // pred_check_branch
          %269 = sbr.rel (%p267) target = $region32
        $region31: #{agent_gnn_forward.3} parent=11 // pred_region
          _
        $region32: #{agent_gnn_forward.3} parent=11 // pred_fallthru
          _
        // Predicated region
        $region33: #{agent_gnn_forward.3} parent=11 // pred_check
          %p270 = pneg %p214
        $region34: #{agent_gnn_forward.3} parent=11 // pred_check_branch
          %272 = sbr.rel (%p270) target = $region36
        $region35: #{agent_gnn_forward.3} parent=11 // pred_region
          _
        $region36: #{agent_gnn_forward.3} parent=11 // pred_fallthru
          _
      $region12: #{agent_gnn_forward.3} parent=5 // pred_fallthru
        _
      %p273 = scmp.lt.s32.totalorder %s24, 2
      // Predicated region
      $region37: #{agent_gnn_forward.3} parent=5 // pred_check
        %p274 = pneg %p273
      $region38: #{agent_gnn_forward.3} parent=5 // pred_check_branch
        %276 = sbr.rel (%p274) target = $region40
      $region39: #{agent_gnn_forward.3} parent=5 // pred_region
        // Predicated region
        $region41: #{agent_gnn_forward.3} parent=39 // pred_check
          %p277 = pneg %p56
        $region42: #{agent_gnn_forward.3} parent=39 // pred_check_branch
          %279 = sbr.rel (%p277) target = $region44
        $region43: #{agent_gnn_forward.3} parent=39 // pred_region
          %p280 = scmp.lt.s32.totalorder %s31, 1
          %s281 = scalar_select %p280, %s31, 1
          %s282 = smul.addr %s281, 8
          %s283 = scalar_lea.vmem %s1, %s282
        $region44: #{agent_gnn_forward.3} parent=39 // pred_fallthru
          _
        // Predicated region
        $region45: #{agent_gnn_forward.3} parent=39 // pred_check
          %p284 = pneg %p82
        $region46: #{agent_gnn_forward.3} parent=39 // pred_check_branch
          %286 = sbr.rel (%p284) target = $region48
        $region47: #{agent_gnn_forward.3} parent=39 // pred_region
          %p287 = scmp.lt.s32.totalorder %s31, 1
          %s288 = scalar_select %p287, %s31, 1
          %s289 = smul.addr %s288, 8
          %s290 = scalar_lea.vmem %s2, %s289
        $region48: #{agent_gnn_forward.3} parent=39 // pred_fallthru
          _
      $region40: #{agent_gnn_forward.3} parent=5 // pred_fallthru
        _
      %p291 = scmp.le.s32.totalorder 1, %s24
      %p292 = scmp.lt.s32.totalorder %s24, 3
      %p293 = pnand %p291, %p292
      %p294 = pneg %p293
      // Predicated region
      $region49: #{agent_gnn_forward.3} parent=5 // pred_check
        _
      $region50: #{agent_gnn_forward.3} parent=5 // pred_check_branch
        %296 = sbr.rel (%p293) target = $region52
      $region51: #{agent_gnn_forward.3} parent=5 // pred_region
        %s297 = ssub.s32 %s24, 1
        %p298 = scmp.lt.s32.totalorder %s33, 1
        %s299 = scalar_select %p298, %s33, 1
        %s300 = smul.addr %s299, 8
        %s301 = scalar_lea.vmem %s1, %s300
        %p302 = pneg %p62
        %p303 = pneg %p59
        %p304 = scmp.lt.s32.totalorder %s33, 1
        %s305 = scalar_select %p304, %s33, 1
        %s306 = smul.addr %s305, 8
        %s307 = scalar_lea.vmem %s2, %s306
        %p308 = pneg %p88
        %p309 = pneg %p85
        %p310 = pneg %p109
        %p311 = pneg %p106
        %p312 = pneg %p130
        %p313 = pneg %p127
        %p314 = pneg %p151
        %p315 = pneg %p148
        %p316 = pneg %p172
        %p317 = pneg %p169
        %p318 = pneg %p193
        %p319 = pneg %p190
        %p320 = pneg %p214
        %p321 = pneg %p211
        %p322 = pneg %p240
        %p323 = pneg %p237
        %s324 = sand.u32 %s227, 1
        %s325 = scalar_lea.sflag [#allocation8], %s324
        %s326 = sand.u32 %s227, 1
        %s327 = smul.addr %s326, 8
        %s328 = scalar_lea.vmem [#allocation7], %s327
        %p329 = scmp.lt.s32.totalorder %s33, 1
        %s330 = scalar_select %p329, %s33, 1
        %s331 = smul.addr %s330, 8
        %s332 = scalar_lea.vmem %s1, %s331
        %p333 = scmp.lt.s32.totalorder %s33, 1
        %s334 = scalar_select %p333, %s33, 1
        %s335 = smul.addr %s334, 8
        %s336 = scalar_lea.vmem %s2, %s335
        %p337 = scmp.eq.s32.totalorder %s34, 0
        // Predicated region
        $region53: #{agent_gnn_forward.3} parent=51 // pred_check
          %p338 = pneg %p337
        $region54: #{agent_gnn_forward.3} parent=51 // pred_check_branch
          %340 = sbr.rel (%p338) target = $region56
        $region55: #{agent_gnn_forward.3} parent=51 // pred_region
          %v341 = vld [vmem:[%s332] sm:$0xff]
          %v342 = vld [vmem:[%s336] sm:$0xff]
          %v343 = vld [vmem:[%s5] sm:$0x3]
          %vm344 = vcmask 15360
          %v346 = vsel %vm344, %v342, 0
          %vm348 = vcmask 1041408
          %v350 = vsel %vm348, %v343, 0
          %352 = vmatprep.subr.mxu0 0.0
          %v353 = vand.u32 %v350, 4294901760
          %354 = vmatpush1.msra.mxu0 %v353
          %355 = vmatprep.subr.mxu0 0.0
          %356 = vmatpush1.msra.mxu0 0.0
          %357 = vmatprep.subr.mxu0 0.0
          %358 = vmatpush1.msra.mxu0 0.0
          %359 = vmatprep.subr.mxu0 0.0
          %360 = vmatpush1.msra.mxu0 0.0
          %361 = vmatprep.subr.mxu0 0.0
          %362 = vmatpush1.msra.mxu0 0.0
          %363 = vmatprep.subr.mxu0 0.0
          %364 = vmatpush1.msra.mxu0 0.0
          %365 = vmatprep.subr.mxu0 0.0
          %366 = vmatpush1.msra.mxu0 0.0
          %367 = vmatprep.subr.mxu0 0.0
          %368 = vmatpush1.msra.mxu0 0.0
          %369 = vmatprep.subr.mxu0 0.0
          %370 = vmatpush1.msra.mxu0 0.0
          %371 = vmatprep.subr.mxu0 0.0
          %372 = vmatpush1.msra.mxu0 0.0
          %373 = vmatprep.subr.mxu0 0.0
          %374 = vmatpush1.msra.mxu0 0.0
          %375 = vmatprep.subr.mxu0 0.0
          %376 = vmatpush1.msra.mxu0 0.0
          %377 = vmatprep.subr.mxu0 0.0
          %378 = vmatpush1.msra.mxu0 0.0
          %379 = vmatprep.subr.mxu0 0.0
          %380 = vmatpush1.msra.mxu0 0.0
          %381 = vmatprep.subr.mxu0 0.0
          %382 = vmatpush1.msra.mxu0 0.0
          %383 = vmatprep.subr.mxu0 0.0
          %384 = vmatpush1.msra.mxu0 0.0
          %385 = vmatprep.subr.mxu0 0.0
          %386 = vmatpush1.msra.mxu0 0.0
          %387 = vmatprep.subr.mxu0 0.0
          %388 = vmatpush1.msra.mxu0 0.0
          %389 = vmatprep.subr.mxu0 0.0
          %390 = vmatpush1.msra.mxu0 0.0
          %391 = vmatprep.subr.mxu0 0.0
          %392 = vmatpush1.msra.mxu0 0.0
          %393 = vmatprep.subr.mxu0 0.0
          %394 = vmatpush1.msra.mxu0 0.0
          %395 = vmatprep.subr.mxu0 0.0
          %396 = vmatpush1.msra.mxu0 0.0
          %397 = vmatprep.subr.mxu0 0.0
          %398 = vmatpush1.msra.mxu0 0.0
          %399 = vmatprep.subr.mxu0 0.0
          %400 = vmatpush1.msra.mxu0 0.0
          %401 = vmatprep.subr.mxu0 0.0
          %402 = vmatpush1.msra.mxu0 0.0
          %403 = vmatprep.subr.mxu0 0.0
          %404 = vmatpush1.msra.mxu0 0.0
          %405 = vmatprep.subr.mxu0 0.0
          %406 = vmatpush1.msra.mxu0 0.0
          %407 = vmatprep.subr.mxu0 0.0
          %408 = vmatpush1.msra.mxu0 0.0
          %409 = vmatprep.subr.mxu0 0.0
          %410 = vmatpush1.msra.mxu0 0.0
          %411 = vmatprep.subr.mxu0 0.0
          %412 = vmatpush1.msra.mxu0 0.0
          %413 = vmatprep.subr.mxu0 0.0
          %414 = vmatpush1.msra.mxu0 0.0
          %415 = vmatprep.subr.mxu0 0.0
          %416 = vmatpush1.msra.mxu0 0.0
          %417 = vmatprep.mubr.f32.mxu0 0.0
          %v418 = vand.u32 %v346, 4294901760
          %v419 = vsub.f32 %v346, %v418
          %v420 = vand.u32 %v419, 4294901760
          %v421 = vsub.f32 %v419, %v420
          %v422 = vand.u32 %v421, 4294901760
          %423 = vmatmul.mubr.f32.gmra.mrb[0].mxu0 %v422
          %v424 = vpop.f32.mrb[0].mxu0
          %v425 = vadd.f32 0.0, %v424
          %v426 = vpop.f32.mrb[0].mxu0
          %427 = vdwg.mxu0
          %428 = vmatprep.subr.mxu0 0.0
          %v429 = vand.u32 %v350, 4294901760
          %v430 = vsub.f32 %v350, %v429
          %v431 = vand.u32 %v430, 4294901760
          %v432 = vsub.f32 %v430, %v431
          %v433 = vand.u32 %v432, 4294901760
          %434 = vmatpush1.msra.mxu0 %v433
          %435 = vmatprep.subr.mxu0 0.0
          %436 = vmatpush1.msra.mxu0 0.0
          %437 = vmatprep.subr.mxu0 0.0
          %438 = vmatpush1.msra.mxu0 0.0
          %439 = vmatprep.subr.mxu0 0.0
          %440 = vmatpush1.msra.mxu0 0.0
          %441 = vmatprep.subr.mxu0 0.0
          %442 = vmatpush1.msra.mxu0 0.0
          %443 = vmatprep.subr.mxu0 0.0
          %444 = vmatpush1.msra.mxu0 0.0
          %445 = vmatprep.subr.mxu0 0.0
          %446 = vmatpush1.msra.mxu0 0.0
          %447 = vmatprep.subr.mxu0 0.0
          %448 = vmatpush1.msra.mxu0 0.0
          %449 = vmatprep.subr.mxu0 0.0
          %450 = vmatpush1.msra.mxu0 0.0
          %451 = vmatprep.subr.mxu0 0.0
          %452 = vmatpush1.msra.mxu0 0.0
          %453 = vmatprep.subr.mxu0 0.0
          %454 = vmatpush1.msra.mxu0 0.0
          %455 = vmatprep.subr.mxu0 0.0
          %456 = vmatpush1.msra.mxu0 0.0
          %457 = vmatprep.subr.mxu0 0.0
          %458 = vmatpush1.msra.mxu0 0.0
          %459 = vmatprep.subr.mxu0 0.0
          %460 = vmatpush1.msra.mxu0 0.0
          %461 = vmatprep.subr.mxu0 0.0
          %462 = vmatpush1.msra.mxu0 0.0
          %463 = vmatprep.subr.mxu0 0.0
          %464 = vmatpush1.msra.mxu0 0.0
          %465 = vmatprep.subr.mxu0 0.0
          %466 = vmatpush1.msra.mxu0 0.0
          %467 = vmatprep.subr.mxu0 0.0
          %468 = vmatpush1.msra.mxu0 0.0
          %469 = vmatprep.subr.mxu0 0.0
          %470 = vmatpush1.msra.mxu0 0.0
          %471 = vmatprep.subr.mxu0 0.0
          %472 = vmatpush1.msra.mxu0 0.0
          %473 = vmatprep.subr.mxu0 0.0
          %474 = vmatpush1.msra.mxu0 0.0
          %475 = vmatprep.subr.mxu0 0.0
          %476 = vmatpush1.msra.mxu0 0.0
          %477 = vmatprep.subr.mxu0 0.0
          %478 = vmatpush1.msra.mxu0 0.0
          %479 = vmatprep.subr.mxu0 0.0
          %480 = vmatpush1.msra.mxu0 0.0
          %481 = vmatprep.subr.mxu0 0.0
          %482 = vmatpush1.msra.mxu0 0.0
          %483 = vmatprep.subr.mxu0 0.0
          %484 = vmatpush1.msra.mxu0 0.0
          %485 = vmatprep.subr.mxu0 0.0
          %486 = vmatpush1.msra.mxu0 0.0
          %487 = vmatprep.subr.mxu0 0.0
          %488 = vmatpush1.msra.mxu0 0.0
          %489 = vmatprep.subr.mxu0 0.0
          %490 = vmatpush1.msra.mxu0 0.0
          %491 = vmatprep.subr.mxu0 0.0
          %492 = vmatpush1.msra.mxu0 0.0
          %493 = vmatprep.subr.mxu0 0.0
          %494 = vmatpush1.msra.mxu0 0.0
          %495 = vmatprep.subr.mxu0 0.0
          %496 = vmatpush1.msra.mxu0 0.0
          %497 = vmatprep.mubr.f32.mxu0 0.0
          %v498 = vand.u32 %v346, 4294901760
          %499 = vmatmul.mubr.f32.gmra.mrb[0].mxu0 %v498
          %v500 = vpop.f32.mrb[0].mxu0
          %v501 = vadd.f32 %v425, %v500
          %v502 = vpop.f32.mrb[0].mxu0
          %503 = vdwg.mxu0
          %504 = vmatprep.subr.mxu0 0.0
          %v505 = vand.u32 %v350, 4294901760
          %v506 = vsub.f32 %v350, %v505
          %507 = vmatpush1.msra.mxu0 %v506
          %508 = vmatprep.subr.mxu0 0.0
          %509 = vmatpush1.msra.mxu0 0.0
          %510 = vmatprep.subr.mxu0 0.0
          %511 = vmatpush1.msra.mxu0 0.0
          %512 = vmatprep.subr.mxu0 0.0
          %513 = vmatpush1.msra.mxu0 0.0
          %514 = vmatprep.subr.mxu0 0.0
          %515 = vmatpush1.msra.mxu0 0.0
          %516 = vmatprep.subr.mxu0 0.0
          %517 = vmatpush1.msra.mxu0 0.0
          %518 = vmatprep.subr.mxu0 0.0
          %519 = vmatpush1.msra.mxu0 0.0
          %520 = vmatprep.subr.mxu0 0.0
          %521 = vmatpush1.msra.mxu0 0.0
          %522 = vmatprep.subr.mxu0 0.0
          %523 = vmatpush1.msra.mxu0 0.0
          %524 = vmatprep.subr.mxu0 0.0
          %525 = vmatpush1.msra.mxu0 0.0
          %526 = vmatprep.subr.mxu0 0.0
          %527 = vmatpush1.msra.mxu0 0.0
          %528 = vmatprep.subr.mxu0 0.0
          %529 = vmatpush1.msra.mxu0 0.0
          %530 = vmatprep.subr.mxu0 0.0
          %531 = vmatpush1.msra.mxu0 0.0
          %532 = vmatprep.subr.mxu0 0.0
          %533 = vmatpush1.msra.mxu0 0.0
          %534 = vmatprep.subr.mxu0 0.0
          %535 = vmatpush1.msra.mxu0 0.0
          %536 = vmatprep.subr.mxu0 0.0
          %537 = vmatpush1.msra.mxu0 0.0
          %538 = vmatprep.subr.mxu0 0.0
          %539 = vmatpush1.msra.mxu0 0.0
          %540 = vmatprep.subr.mxu0 0.0
          %541 = vmatpush1.msra.mxu0 0.0
          %542 = vmatprep.subr.mxu0 0.0
          %543 = vmatpush1.msra.mxu0 0.0
          %544 = vmatprep.subr.mxu0 0.0
          %545 = vmatpush1.msra.mxu0 0.0
          %546 = vmatprep.subr.mxu0 0.0
          %547 = vmatpush1.msra.mxu0 0.0
          %548 = vmatprep.subr.mxu0 0.0
          %549 = vmatpush1.msra.mxu0 0.0
          %550 = vmatprep.subr.mxu0 0.0
          %551 = vmatpush1.msra.mxu0 0.0
          %552 = vmatprep.subr.mxu0 0.0
          %553 = vmatpush1.msra.mxu0 0.0
          %554 = vmatprep.subr.mxu0 0.0
          %555 = vmatpush1.msra.mxu0 0.0
          %556 = vmatprep.subr.mxu0 0.0
          %557 = vmatpush1.msra.mxu0 0.0
          %558 = vmatprep.subr.mxu0 0.0
          %559 = vmatpush1.msra.mxu0 0.0
          %560 = vmatprep.subr.mxu0 0.0
          %561 = vmatpush1.msra.mxu0 0.0
          %562 = vmatprep.subr.mxu0 0.0
          %563 = vmatpush1.msra.mxu0 0.0
          %564 = vmatprep.subr.mxu0 0.0
          %565 = vmatpush1.msra.mxu0 0.0
          %566 = vmatprep.subr.mxu0 0.0
          %567 = vmatpush1.msra.mxu0 0.0
          %568 = vmatprep.subr.mxu0 0.0
          %569 = vmatpush1.msra.mxu0 0.0
          %570 = vmatprep.mubr.f32.mxu0 0.0
          %v571 = vand.u32 %v346, 4294901760
          %v572 = vsub.f32 %v346, %v571
          %573 = vmatmul.mubr.f32.gmra.mrb[0].mxu0 %v572
          %v574 = vpop.f32.mrb[0].mxu0
          %v575 = vadd.f32 %v501, %v574
          %v576 = vpop.f32.mrb[0].mxu0
          %577 = vdwg.mxu0
          %578 = vmatprep.subr.mxu0 0.0
          %v579 = vand.u32 %v350, 4294901760
          %580 = vmatpush1.msra.mxu0 %v579
          %581 = vmatprep.subr.mxu0 0.0
          %582 = vmatpush1.msra.mxu0 0.0
          %583 = vmatprep.subr.mxu0 0.0
          %584 = vmatpush1.msra.mxu0 0.0
          %585 = vmatprep.subr.mxu0 0.0
          %586 = vmatpush1.msra.mxu0 0.0
          %587 = vmatprep.subr.mxu0 0.0
          %588 = vmatpush1.msra.mxu0 0.0
          %589 = vmatprep.subr.mxu0 0.0
          %590 = vmatpush1.msra.mxu0 0.0
          %591 = vmatprep.subr.mxu0 0.0
          %592 = vmatpush1.msra.mxu0 0.0
          %593 = vmatprep.subr.mxu0 0.0
          %594 = vmatpush1.msra.mxu0 0.0
          %595 = vmatprep.subr.mxu0 0.0
          %596 = vmatpush1.msra.mxu0 0.0
          %597 = vmatprep.subr.mxu0 0.0
          %598 = vmatpush1.msra.mxu0 0.0
          %599 = vmatprep.subr.mxu0 0.0
          %600 = vmatpush1.msra.mxu0 0.0
          %601 = vmatprep.subr.mxu0 0.0
          %602 = vmatpush1.msra.mxu0 0.0
          %603 = vmatprep.subr.mxu0 0.0
          %604 = vmatpush1.msra.mxu0 0.0
          %605 = vmatprep.subr.mxu0 0.0
          %606 = vmatpush1.msra.mxu0 0.0
          %607 = vmatprep.subr.mxu0 0.0
          %608 = vmatpush1.msra.mxu0 0.0
          %609 = vmatprep.subr.mxu0 0.0
          %610 = vmatpush1.msra.mxu0 0.0
          %611 = vmatprep.subr.mxu0 0.0
          %612 = vmatpush1.msra.mxu0 0.0
          %613 = vmatprep.subr.mxu0 0.0
          %614 = vmatpush1.msra.mxu0 0.0
          %615 = vmatprep.subr.mxu0 0.0
          %616 = vmatpush1.msra.mxu0 0.0
          %617 = vmatprep.subr.mxu0 0.0
          %618 = vmatpush1.msra.mxu0 0.0
          %619 = vmatprep.subr.mxu0 0.0
          %620 = vmatpush1.msra.mxu0 0.0
          %621 = vmatprep.subr.mxu0 0.0
          %622 = vmatpush1.msra.mxu0 0.0
          %623 = vmatprep.subr.mxu0 0.0
          %624 = vmatpush1.msra.mxu0 0.0
          %625 = vmatprep.subr.mxu0 0.0
          %626 = vmatpush1.msra.mxu0 0.0
          %627 = vmatprep.subr.mxu0 0.0
          %628 = vmatpush1.msra.mxu0 0.0
          %629 = vmatprep.subr.mxu0 0.0
          %630 = vmatpush1.msra.mxu0 0.0
          %631 = vmatprep.subr.mxu0 0.0
          %632 = vmatpush1.msra.mxu0 0.0
          %633 = vmatprep.subr.mxu0 0.0
          %634 = vmatpush1.msra.mxu0 0.0
          %635 = vmatprep.subr.mxu0 0.0
          %636 = vmatpush1.msra.mxu0 0.0
          %637 = vmatprep.subr.mxu0 0.0
          %638 = vmatpush1.msra.mxu0 0.0
          %639 = vmatprep.subr.mxu0 0.0
          %640 = vmatpush1.msra.mxu0 0.0
          %641 = vmatprep.subr.mxu0 0.0
          %642 = vmatpush1.msra.mxu0 0.0
          %643 = vmatprep.mubr.f32.mxu0 0.0
          %v644 = vand.u32 %v346, 4294901760
          %v645 = vsub.f32 %v346, %v644
          %v646 = vand.u32 %v645, 4294901760
          %647 = vmatmul.mubr.f32.gmra.mrb[0].mxu0 %v646
          %v648 = vpop.f32.mrb[0].mxu0
          %v649 = vadd.f32 %v575, %v648
          %v650 = vpop.f32.mrb[0].mxu0
          %651 = vdwg.mxu0
          %652 = vmatprep.subr.mxu0 0.0
          %v653 = vand.u32 %v350, 4294901760
          %v654 = vsub.f32 %v350, %v653
          %v655 = vand.u32 %v654, 4294901760
          %656 = vmatpush1.msra.mxu0 %v655
          %657 = vmatprep.subr.mxu0 0.0
          %658 = vmatpush1.msra.mxu0 0.0
          %659 = vmatprep.subr.mxu0 0.0
          %660 = vmatpush1.msra.mxu0 0.0
          %661 = vmatprep.subr.mxu0 0.0
          %662 = vmatpush1.msra.mxu0 0.0
          %663 = vmatprep.subr.mxu0 0.0
          %664 = vmatpush1.msra.mxu0 0.0
          %665 = vmatprep.subr.mxu0 0.0
          %666 = vmatpush1.msra.mxu0 0.0
          %667 = vmatprep.subr.mxu0 0.0
          %668 = vmatpush1.msra.mxu0 0.0
          %669 = vmatprep.subr.mxu0 0.0
          %670 = vmatpush1.msra.mxu0 0.0
          %671 = vmatprep.subr.mxu0 0.0
          %672 = vmatpush1.msra.mxu0 0.0
          %673 = vmatprep.subr.mxu0 0.0
          %674 = vmatpush1.msra.mxu0 0.0
          %675 = vmatprep.subr.mxu0 0.0
          %676 = vmatpush1.msra.mxu0 0.0
          %677 = vmatprep.subr.mxu0 0.0
          %678 = vmatpush1.msra.mxu0 0.0
          %679 = vmatprep.subr.mxu0 0.0
          %680 = vmatpush1.msra.mxu0 0.0
          %681 = vmatprep.subr.mxu0 0.0
          %682 = vmatpush1.msra.mxu0 0.0
          %683 = vmatprep.subr.mxu0 0.0
          %684 = vmatpush1.msra.mxu0 0.0
          %685 = vmatprep.subr.mxu0 0.0
          %686 = vmatpush1.msra.mxu0 0.0
          %687 = vmatprep.subr.mxu0 0.0
          %688 = vmatpush1.msra.mxu0 0.0
          %689 = vmatprep.subr.mxu0 0.0
          %690 = vmatpush1.msra.mxu0 0.0
          %691 = vmatprep.subr.mxu0 0.0
          %692 = vmatpush1.msra.mxu0 0.0
          %693 = vmatprep.subr.mxu0 0.0
          %694 = vmatpush1.msra.mxu0 0.0
          %695 = vmatprep.subr.mxu0 0.0
          %696 = vmatpush1.msra.mxu0 0.0
          %697 = vmatprep.subr.mxu0 0.0
          %698 = vmatpush1.msra.mxu0 0.0
          %699 = vmatprep.subr.mxu0 0.0
          %700 = vmatpush1.msra.mxu0 0.0
          %701 = vmatprep.subr.mxu0 0.0
          %702 = vmatpush1.msra.mxu0 0.0
          %703 = vmatprep.subr.mxu0 0.0
          %704 = vmatpush1.msra.mxu0 0.0
          %705 = vmatprep.subr.mxu0 0.0
          %706 = vmatpush1.msra.mxu0 0.0
          %707 = vmatprep.subr.mxu0 0.0
          %708 = vmatpush1.msra.mxu0 0.0
          %709 = vmatprep.subr.mxu0 0.0
          %710 = vmatpush1.msra.mxu0 0.0
          %711 = vmatprep.subr.mxu0 0.0
          %712 = vmatpush1.msra.mxu0 0.0
          %713 = vmatprep.subr.mxu0 0.0
          %714 = vmatpush1.msra.mxu0 0.0
          %715 = vmatprep.subr.mxu0 0.0
          %716 = vmatpush1.msra.mxu0 0.0
          %717 = vmatprep.subr.mxu0 0.0
          %718 = vmatpush1.msra.mxu0 0.0
          %719 = vmatprep.mubr.f32.mxu0 0.0
          %v720 = vand.u32 %v346, 4294901760
          %721 = vmatmul.mubr.f32.gmra.mrb[0].mxu0 %v720
          %v722 = vpop.f32.mrb[0].mxu0
          %v723 = vadd.f32 %v649, %v722
          %v724 = vpop.f32.mrb[0].mxu0
          %725 = vdwg.mxu0
          %726 = vmatprep.subr.mxu0 0.0
          %v727 = vand.u32 %v350, 4294901760
          %728 = vmatpush1.msra.mxu0 %v727
          %729 = vmatprep.subr.mxu0 0.0
          %730 = vmatpush1.msra.mxu0 0.0
          %731 = vmatprep.subr.mxu0 0.0
          %732 = vmatpush1.msra.mxu0 0.0
          %733 = vmatprep.subr.mxu0 0.0
          %734 = vmatpush1.msra.mxu0 0.0
          %735 = vmatprep.subr.mxu0 0.0
          %736 = vmatpush1.msra.mxu0 0.0
          %737 = vmatprep.subr.mxu0 0.0
          %738 = vmatpush1.msra.mxu0 0.0
          %739 = vmatprep.subr.mxu0 0.0
          %740 = vmatpush1.msra.mxu0 0.0
          %741 = vmatprep.subr.mxu0 0.0
          %742 = vmatpush1.msra.mxu0 0.0
          %743 = vmatprep.subr.mxu0 0.0
          %744 = vmatpush1.msra.mxu0 0.0
          %745 = vmatprep.subr.mxu0 0.0
          %746 = vmatpush1.msra.mxu0 0.0
          %747 = vmatprep.subr.mxu0 0.0
          %748 = vmatpush1.msra.mxu0 0.0
          %749 = vmatprep.subr.mxu0 0.0
          %750 = vmatpush1.msra.mxu0 0.0
          %751 = vmatprep.subr.mxu0 0.0
          %752 = vmatpush1.msra.mxu0 0.0
          %753 = vmatprep.subr.mxu0 0.0
          %754 = vmatpush1.msra.mxu0 0.0
          %755 = vmatprep.subr.mxu0 0.0
          %756 = vmatpush1.msra.mxu0 0.0
          %757 = vmatprep.subr.mxu0 0.0
          %758 = vmatpush1.msra.mxu0 0.0
          %759 = vmatprep.subr.mxu0 0.0
          %760 = vmatpush1.msra.mxu0 0.0
          %761 = vmatprep.subr.mxu0 0.0
          %762 = vmatpush1.msra.mxu0 0.0
          %763 = vmatprep.subr.mxu0 0.0
          %764 = vmatpush1.msra.mxu0 0.0
          %765 = vmatprep.subr.mxu0 0.0
          %766 = vmatpush1.msra.mxu0 0.0
          %767 = vmatprep.subr.mxu0 0.0
          %768 = vmatpush1.msra.mxu0 0.0
          %769 = vmatprep.subr.mxu0 0.0
          %770 = vmatpush1.msra.mxu0 0.0
          %771 = vmatprep.subr.mxu0 0.0
          %772 = vmatpush1.msra.mxu0 0.0
          %773 = vmatprep.subr.mxu0 0.0
          %774 = vmatpush1.msra.mxu0 0.0
          %775 = vmatprep.subr.mxu0 0.0
          %776 = vmatpush1.msra.mxu0 0.0
          %777 = vmatprep.subr.mxu0 0.0
          %778 = vmatpush1.msra.mxu0 0.0
          %779 = vmatprep.subr.mxu0 0.0
          %780 = vmatpush1.msra.mxu0 0.0
          %781 = vmatprep.subr.mxu0 0.0
          %782 = vmatpush1.msra.mxu0 0.0
          %783 = vmatprep.subr.mxu0 0.0
          %784 = vmatpush1.msra.mxu0 0.0
          %785 = vmatprep.subr.mxu0 0.0
          %786 = vmatpush1.msra.mxu0 0.0
          %787 = vmatprep.subr.mxu0 0.0
          %788 = vmatpush1.msra.mxu0 0.0
          %789 = vmatprep.subr.mxu0 0.0
          %790 = vmatpush1.msra.mxu0 0.0
          %791 = vmatprep.mubr.f32.mxu0 0.0
          %v792 = vand.u32 %v346, 4294901760
          %793 = vmatmul.mubr.f32.gmra.mrb[0].mxu0 %v792
          %v794 = vpop.f32.mrb[0].mxu0
          %v795 = vadd.f32 %v723, %v794
          %v796 = vpop.f32.mrb[0].mxu0
          %797 = vdwg.mxu0
          %v798 = vld [vmem:[%s3] sm:$0xff]
          %v799 = vld [vmem:[%s3 + $0x8] sm:$0xff]
          %v800 = vld [vmem:[%s3 + $0x10] sm:$0xff]
          %v801 = vld [vmem:[%s3 + $0x18] sm:$0xff]
          %vm802 = vcmask 261120
          %v804 = vsel %vm802, %v341, 0
          %806 = vmatprep.subr.mxu0 0.0
          %v807 = vand.u32 %v798, 4294901760
          %808 = vmatpush1.msra.mxu0 %v807
          %809 = vmatprep.subr.mxu0 0.0
          %v810 = vand.u32 %v799, 4294901760
          %811 = vmatpush1.msra.mxu0 %v810
          %812 = vmatprep.subr.mxu0 0.0
          %v813 = vand.u32 %v800, 4294901760
          %814 = vmatpush1.msra.mxu0 %v813
          %815 = vmatprep.subr.mxu0 0.0
          %v816 = vand.u32 %v801, 4294901760
          %817 = vmatpush1.msra.mxu0 %v816
          %818 = vmatprep.subr.mxu0 0.0
          %819 = vmatpush1.msra.mxu0 0.0
          %820 = vmatprep.subr.mxu0 0.0
          %821 = vmatpush1.msra.mxu0 0.0
          %822 = vmatprep.subr.mxu0 0.0
          %823 = vmatpush1.msra.mxu0 0.0
          %824 = vmatprep.subr.mxu0 0.0
          %825 = vmatpush1.msra.mxu0 0.0
          %826 = vmatprep.subr.mxu0 0.0
          %827 = vmatpush1.msra.mxu0 0.0
          %828 = vmatprep.subr.mxu0 0.0
          %829 = vmatpush1.msra.mxu0 0.0
          %830 = vmatprep.subr.mxu0 0.0
          %831 = vmatpush1.msra.mxu0 0.0
          %832 = vmatprep.subr.mxu0 0.0
          %833 = vmatpush1.msra.mxu0 0.0
          %834 = vmatprep.subr.mxu0 0.0
          %835 = vmatpush1.msra.mxu0 0.0
          %836 = vmatprep.subr.mxu0 0.0
          %837 = vmatpush1.msra.mxu0 0.0
          %838 = vmatprep.subr.mxu0 0.0
          %839 = vmatpush1.msra.mxu0 0.0
          %840 = vmatprep.subr.mxu0 0.0
          %841 = vmatpush1.msra.mxu0 0.0
          %842 = vmatprep.subr.mxu0 0.0
          %843 = vmatpush1.msra.mxu0 0.0
          %844 = vmatprep.subr.mxu0 0.0
          %845 = vmatpush1.msra.mxu0 0.0
          %846 = vmatprep.subr.mxu0 0.0
          %847 = vmatpush1.msra.mxu0 0.0
          %848 = vmatprep.subr.mxu0 0.0
          %849 = vmatpush1.msra.mxu0 0.0
          %850 = vmatprep.subr.mxu0 0.0
          %851 = vmatpush1.msra.mxu0 0.0
          %852 = vmatprep.subr.mxu0 0.0
          %853 = vmatpush1.msra.mxu0 0.0
          %854 = vmatprep.subr.mxu0 0.0
          %855 = vmatpush1.msra.mxu0 0.0
          %856 = vmatprep.subr.mxu0 0.0
          %857 = vmatpush1.msra.mxu0 0.0
          %858 = vmatprep.subr.mxu0 0.0
          %859 = vmatpush1.msra.mxu0 0.0
          %860 = vmatprep.subr.mxu0 0.0
          %861 = vmatpush1.msra.mxu0 0.0
          %862 = vmatprep.subr.mxu0 0.0
          %863 = vmatpush1.msra.mxu0 0.0
          %864 = vmatprep.subr.mxu0 0.0
          %865 = vmatpush1.msra.mxu0 0.0
          %866 = vmatprep.subr.mxu0 0.0
          %867 = vmatpush1.msra.mxu0 0.0
          %868 = vmatprep.subr.mxu0 0.0
          %869 = vmatpush1.msra.mxu0 0.0
          %870 = vmatprep.subr.mxu0 0.0
          %871 = vmatpush1.msra.mxu0 0.0
          %872 = vmatprep.subr.mxu0 0.0
          %873 = vmatpush1.msra.mxu0 0.0
          %874 = vmatprep.mubr.f32.mxu0 0.0
          %v875 = vand.u32 %v804, 4294901760
          %v876 = vsub.f32 %v804, %v875
          %v877 = vand.u32 %v876, 4294901760
          %v878 = vsub.f32 %v876, %v877
          %v879 = vand.u32 %v878, 4294901760
          %880 = vmatmul.mubr.f32.gmra.mrb[0].mxu0 %v879
          %v881 = vpop.f32.mrb[0].mxu0
          %v882 = vadd.f32 %v795, %v881
          %v883 = vpop.f32.mrb[0].mxu0
          %884 = vdwg.mxu0
          %885 = vmatprep.subr.mxu0 0.0
          %v886 = vand.u32 %v798, 4294901760
          %v887 = vsub.f32 %v798, %v886
          %v888 = vand.u32 %v887, 4294901760
          %v889 = vsub.f32 %v887, %v888
          %v890 = vand.u32 %v889, 4294901760
          %891 = vmatpush1.msra.mxu0 %v890
          %892 = vmatprep.subr.mxu0 0.0
          %v893 = vand.u32 %v799, 4294901760
          %v894 = vsub.f32 %v799, %v893
          %v895 = vand.u32 %v894, 4294901760
          %v896 = vsub.f32 %v894, %v895
          %v897 = vand.u32 %v896, 4294901760
          %898 = vmatpush1.msra.mxu0 %v897
          %899 = vmatprep.subr.mxu0 0.0
          %v900 = vand.u32 %v800, 4294901760
          %v901 = vsub.f32 %v800, %v900
          %v902 = vand.u32 %v901, 4294901760
          %v903 = vsub.f32 %v901, %v902
          %v904 = vand.u32 %v903, 4294901760
          %905 = vmatpush1.msra.mxu0 %v904
          %906 = vmatprep.subr.mxu0 0.0
          %v907 = vand.u32 %v801, 4294901760
          %v908 = vsub.f32 %v801, %v907
          %v909 = vand.u32 %v908, 4294901760
          %v910 = vsub.f32 %v908, %v909
          %v911 = vand.u32 %v910, 4294901760
          %912 = vmatpush1.msra.mxu0 %v911
          %913 = vmatprep.subr.mxu0 0.0
          %914 = vmatpush1.msra.mxu0 0.0
          %915 = vmatprep.subr.mxu0 0.0
          %916 = vmatpush1.msra.mxu0 0.0
          %917 = vmatprep.subr.mxu0 0.0
          %918 = vmatpush1.msra.mxu0 0.0
          %919 = vmatprep.subr.mxu0 0.0
          %920 = vmatpush1.msra.mxu0 0.0
          %921 = vmatprep.subr.mxu0 0.0
          %922 = vmatpush1.msra.mxu0 0.0
          %923 = vmatprep.subr.mxu0 0.0
          %924 = vmatpush1.msra.mxu0 0.0
          %925 = vmatprep.subr.mxu0 0.0
          %926 = vmatpush1.msra.mxu0 0.0
          %927 = vmatprep.subr.mxu0 0.0
          %928 = vmatpush1.msra.mxu0 0.0
          %929 = vmatprep.subr.mxu0 0.0
          %930 = vmatpush1.msra.mxu0 0.0
          %931 = vmatprep.subr.mxu0 0.0
          %932 = vmatpush1.msra.mxu0 0.0
          %933 = vmatprep.subr.mxu0 0.0
          %934 = vmatpush1.msra.mxu0 0.0
          %935 = vmatprep.subr.mxu0 0.0
          %936 = vmatpush1.msra.mxu0 0.0
          %937 = vmatprep.subr.mxu0 0.0
          %938 = vmatpush1.msra.mxu0 0.0
          %939 = vmatprep.subr.mxu0 0.0
          %940 = vmatpush1.msra.mxu0 0.0
          %941 = vmatprep.subr.mxu0 0.0
          %942 = vmatpush1.msra.mxu0 0.0
          %943 = vmatprep.subr.mxu0 0.0
          %944 = vmatpush1.msra.mxu0 0.0
          %945 = vmatprep.subr.mxu0 0.0
          %946 = vmatpush1.msra.mxu0 0.0
          %947 = vmatprep.subr.mxu0 0.0
          %948 = vmatpush1.msra.mxu0 0.0
          %949 = vmatprep.subr.mxu0 0.0
          %950 = vmatpush1.msra.mxu0 0.0
          %951 = vmatprep.subr.mxu0 0.0
          %952 = vmatpush1.msra.mxu0 0.0
          %953 = vmatprep.subr.mxu0 0.0
          %954 = vmatpush1.msra.mxu0 0.0
          %955 = vmatprep.subr.mxu0 0.0
          %956 = vmatpush1.msra.mxu0 0.0
          %957 = vmatprep.subr.mxu0 0.0
          %958 = vmatpush1.msra.mxu0 0.0
          %959 = vmatprep.subr.mxu0 0.0
          %960 = vmatpush1.msra.mxu0 0.0
          %961 = vmatprep.subr.mxu0 0.0
          %962 = vmatpush1.msra.mxu0 0.0
          %963 = vmatprep.subr.mxu0 0.0
          %964 = vmatpush1.msra.mxu0 0.0
          %965 = vmatprep.subr.mxu0 0.0
          %966 = vmatpush1.msra.mxu0 0.0
          %967 = vmatprep.subr.mxu0 0.0
          %968 = vmatpush1.msra.mxu0 0.0
          %969 = vmatprep.mubr.f32.mxu0 0.0
          %v970 = vand.u32 %v804, 4294901760
          %971 = vmatmul.mubr.f32.gmra.mrb[0].mxu0 %v970
          %v972 = vpop.f32.mrb[0].mxu0
          %v973 = vadd.f32 %v882, %v972
          %v974 = vpop.f32.mrb[0].mxu0
          %975 = vdwg.mxu0
          %976 = vmatprep.subr.mxu0 0.0
          %v977 = vand.u32 %v798, 4294901760
          %v978 = vsub.f32 %v798, %v977
          %979 = vmatpush1.msra.mxu0 %v978
          %980 = vmatprep.subr.mxu0 0.0
          %v981 = vand.u32 %v799, 4294901760
          %v982 = vsub.f32 %v799, %v981
          %983 = vmatpush1.msra.mxu0 %v982
          %984 = vmatprep.subr.mxu0 0.0
          %v985 = vand.u32 %v800, 4294901760
          %v986 = vsub.f32 %v800, %v985
          %987 = vmatpush1.msra.mxu0 %v986
          %988 = vmatprep.subr.mxu0 0.0
          %v989 = vand.u32 %v801, 4294901760
          %v990 = vsub.f32 %v801, %v989
          %991 = vmatpush1.msra.mxu0 %v990
          %992 = vmatprep.subr.mxu0 0.0
          %993 = vmatpush1.msra.mxu0 0.0
          %994 = vmatprep.subr.mxu0 0.0
          %995 = vmatpush1.msra.mxu0 0.0
          %996 = vmatprep.subr.mxu0 0.0
          %997 = vmatpush1.msra.mxu0 0.0
          %998 = vmatprep.subr.mxu0 0.0
          %999 = vmatpush1.msra.mxu0 0.0
          %1000 = vmatprep.subr.mxu0 0.0
          %1001 = vmatpush1.msra.mxu0 0.0
          %1002 = vmatprep.subr.mxu0 0.0
          %1003 = vmatpush1.msra.mxu0 0.0
          %1004 = vmatprep.subr.mxu0 0.0
          %1005 = vmatpush1.msra.mxu0 0.0
          %1006 = vmatprep.subr.mxu0 0.0
          %1007 = vmatpush1.msra.mxu0 0.0
          %1008 = vmatprep.subr.mxu0 0.0
          %1009 = vmatpush1.msra.mxu0 0.0
          %1010 = vmatprep.subr.mxu0 0.0
          %1011 = vmatpush1.msra.mxu0 0.0
          %1012 = vmatprep.subr.mxu0 0.0
          %1013 = vmatpush1.msra.mxu0 0.0
          %1014 = vmatprep.subr.mxu0 0.0
          %1015 = vmatpush1.msra.mxu0 0.0
          %1016 = vmatprep.subr.mxu0 0.0
          %1017 = vmatpush1.msra.mxu0 0.0
          %1018 = vmatprep.subr.mxu0 0.0
          %1019 = vmatpush1.msra.mxu0 0.0
          %1020 = vmatprep.subr.mxu0 0.0
          %1021 = vmatpush1.msra.mxu0 0.0
          %1022 = vmatprep.subr.mxu0 0.0
          %1023 = vmatpush1.msra.mxu0 0.0
          %1024 = vmatprep.subr.mxu0 0.0
          %1025 = vmatpush1.msra.mxu0 0.0
          %1026 = vmatprep.subr.mxu0 0.0
          %1027 = vmatpush1.msra.mxu0 0.0
          %1028 = vmatprep.subr.mxu0 0.0
          %1029 = vmatpush1.msra.mxu0 0.0
          %1030 = vmatprep.subr.mxu0 0.0
          %1031 = vmatpush1.msra.mxu0 0.0
          %1032 = vmatprep.subr.mxu0 0.0
          %1033 = vmatpush1.msra.mxu0 0.0
          %1034 = vmatprep.subr.mxu0 0.0
          %1035 = vmatpush1.msra.mxu0 0.0
          %1036 = vmatprep.subr.mxu0 0.0
          %1037 = vmatpush1.msra.mxu0 0.0
          %1038 = vmatprep.subr.mxu0 0.0
          %1039 = vmatpush1.msra.mxu0 0.0
          %1040 = vmatprep.subr.mxu0 0.0
          %1041 = vmatpush1.msra.mxu0 0.0
          %1042 = vmatprep.subr.mxu0 0.0
          %1043 = vmatpush1.msra.mxu0 0.0
          %1044 = vmatprep.subr.mxu0 0.0
          %1045 = vmatpush1.msra.mxu0 0.0
          %1046 = vmatprep.subr.mxu0 0.0
          %1047 = vmatpush1.msra.mxu0 0.0
          %1048 = vmatprep.mubr.f32.mxu0 0.0
          %v1049 = vand.u32 %v804, 4294901760
          %v1050 = vsub.f32 %v804, %v1049
          %1051 = vmatmul.mubr.f32.gmra.mrb[0].mxu0 %v1050
          %v1052 = vpop.f32.mrb[0].mxu0
          %v1053 = vadd.f32 %v973, %v1052
          %v1054 = vpop.f32.mrb[0].mxu0
          %1055 = vdwg.mxu0
          %1056 = vmatprep.subr.mxu0 0.0
          %v1057 = vand.u32 %v798, 4294901760
          %1058 = vmatpush1.msra.mxu0 %v1057
          %1059 = vmatprep.subr.mxu0 0.0
          %v1060 = vand.u32 %v799, 4294901760
          %1061 = vmatpush1.msra.mxu0 %v1060
          %1062 = vmatprep.subr.mxu0 0.0
          %v1063 = vand.u32 %v800, 4294901760
          %1064 = vmatpush1.msra.mxu0 %v1063
          %1065 = vmatprep.subr.mxu0 0.0
          %v1066 = vand.u32 %v801, 4294901760
          %1067 = vmatpush1.msra.mxu0 %v1066
          %1068 = vmatprep.subr.mxu0 0.0
          %1069 = vmatpush1.msra.mxu0 0.0
          %1070 = vmatprep.subr.mxu0 0.0
          %1071 = vmatpush1.msra.mxu0 0.0
          %1072 = vmatprep.subr.mxu0 0.0
          %1073 = vmatpush1.msra.mxu0 0.0
          %1074 = vmatprep.subr.mxu0 0.0
          %1075 = vmatpush1.msra.mxu0 0.0
          %1076 = vmatprep.subr.mxu0 0.0
          %1077 = vmatpush1.msra.mxu0 0.0
          %1078 = vmatprep.subr.mxu0 0.0
          %1079 = vmatpush1.msra.mxu0 0.0
          %1080 = vmatprep.subr.mxu0 0.0
          %1081 = vmatpush1.msra.mxu0 0.0
          %1082 = vmatprep.subr.mxu0 0.0
          %1083 = vmatpush1.msra.mxu0 0.0
          %1084 = vmatprep.subr.mxu0 0.0
          %1085 = vmatpush1.msra.mxu0 0.0
          %1086 = vmatprep.subr.mxu0 0.0
          %1087 = vmatpush1.msra.mxu0 0.0
          %1088 = vmatprep.subr.mxu0 0.0
          %1089 = vmatpush1.msra.mxu0 0.0
          %1090 = vmatprep.subr.mxu0 0.0
          %1091 = vmatpush1.msra.mxu0 0.0
          %1092 = vmatprep.subr.mxu0 0.0
          %1093 = vmatpush1.msra.mxu0 0.0
          %1094 = vmatprep.subr.mxu0 0.0
          %1095 = vmatpush1.msra.mxu0 0.0
          %1096 = vmatprep.subr.mxu0 0.0
          %1097 = vmatpush1.msra.mxu0 0.0
          %1098 = vmatprep.subr.mxu0 0.0
          %1099 = vmatpush1.msra.mxu0 0.0
          %1100 = vmatprep.subr.mxu0 0.0
          %1101 = vmatpush1.msra.mxu0 0.0
          %1102 = vmatprep.subr.mxu0 0.0
          %1103 = vmatpush1.msra.mxu0 0.0
          %1104 = vmatprep.subr.mxu0 0.0
          %1105 = vmatpush1.msra.mxu0 0.0
          %1106 = vmatprep.subr.mxu0 0.0
          %1107 = vmatpush1.msra.mxu0 0.0
          %1108 = vmatprep.subr.mxu0 0.0
          %1109 = vmatpush1.msra.mxu0 0.0
          %1110 = vmatprep.subr.mxu0 0.0
          %1111 = vmatpush1.msra.mxu0 0.0
          %1112 = vmatprep.subr.mxu0 0.0
          %1113 = vmatpush1.msra.mxu0 0.0
          %1114 = vmatprep.subr.mxu0 0.0
          %1115 = vmatpush1.msra.mxu0 0.0
          %1116 = vmatprep.subr.mxu0 0.0
          %1117 = vmatpush1.msra.mxu0 0.0
          %1118 = vmatprep.subr.mxu0 0.0
          %1119 = vmatpush1.msra.mxu0 0.0
          %1120 = vmatprep.subr.mxu0 0.0
          %1121 = vmatpush1.msra.mxu0 0.0
          %1122 = vmatprep.subr.mxu0 0.0
          %1123 = vmatpush1.msra.mxu0 0.0
          %1124 = vmatprep.mubr.f32.mxu0 0.0
          %v1125 = vand.u32 %v804, 4294901760
          %v1126 = vsub.f32 %v804, %v1125
          %v1127 = vand.u32 %v1126, 4294901760
          %1128 = vmatmul.mubr.f32.gmra.mrb[0].mxu0 %v1127
          %v1129 = vpop.f32.mrb[0].mxu0
          %v1130 = vadd.f32 %v1053, %v1129
          %v1131 = vpop.f32.mrb[0].mxu0
          %1132 = vdwg.mxu0
          %1133 = vmatprep.subr.mxu0 0.0
          %v1134 = vand.u32 %v798, 4294901760
          %v1135 = vsub.f32 %v798, %v1134
          %v1136 = vand.u32 %v1135, 4294901760
          %1137 = vmatpush1.msra.mxu0 %v1136
          %1138 = vmatprep.subr.mxu0 0.0
          %v1139 = vand.u32 %v799, 4294901760
          %v1140 = vsub.f32 %v799, %v1139
          %v1141 = vand.u32 %v1140, 4294901760
          %1142 = vmatpush1.msra.mxu0 %v1141
          %1143 = vmatprep.subr.mxu0 0.0
          %v1144 = vand.u32 %v800, 4294901760
          %v1145 = vsub.f32 %v800, %v1144
          %v1146 = vand.u32 %v1145, 4294901760
          %1147 = vmatpush1.msra.mxu0 %v1146
          %1148 = vmatprep.subr.mxu0 0.0
          %v1149 = vand.u32 %v801, 4294901760
          %v1150 = vsub.f32 %v801, %v1149
          %v1151 = vand.u32 %v1150, 4294901760
          %1152 = vmatpush1.msra.mxu0 %v1151
          %1153 = vmatprep.subr.mxu0 0.0
          %1154 = vmatpush1.msra.mxu0 0.0
          %1155 = vmatprep.subr.mxu0 0.0
          %1156 = vmatpush1.msra.mxu0 0.0
          %1157 = vmatprep.subr.mxu0 0.0
          %1158 = vmatpush1.msra.mxu0 0.0
          %1159 = vmatprep.subr.mxu0 0.0
          %1160 = vmatpush1.msra.mxu0 0.0
          %1161 = vmatprep.subr.mxu0 0.0
          %1162 = vmatpush1.msra.mxu0 0.0
          %1163 = vmatprep.subr.mxu0 0.0
          %1164 = vmatpush1.msra.mxu0 0.0
          %1165 = vmatprep.subr.mxu0 0.0
          %1166 = vmatpush1.msra.mxu0 0.0
          %1167 = vmatprep.subr.mxu0 0.0
          %1168 = vmatpush1.msra.mxu0 0.0
          %1169 = vmatprep.subr.mxu0 0.0
          %1170 = vmatpush1.msra.mxu0 0.0
          %1171 = vmatprep.subr.mxu0 0.0
          %1172 = vmatpush1.msra.mxu0 0.0
          %1173 = vmatprep.subr.mxu0 0.0
          %1174 = vmatpush1.msra.mxu0 0.0
          %1175 = vmatprep.subr.mxu0 0.0
          %1176 = vmatpush1.msra.mxu0 0.0
          %1177 = vmatprep.subr.mxu0 0.0
          %1178 = vmatpush1.msra.mxu0 0.0
          %1179 = vmatprep.subr.mxu0 0.0
          %1180 = vmatpush1.msra.mxu0 0.0
          %1181 = vmatprep.subr.mxu0 0.0
          %1182 = vmatpush1.msra.mxu0 0.0
          %1183 = vmatprep.subr.mxu0 0.0
          %1184 = vmatpush1.msra.mxu0 0.0
          %1185 = vmatprep.subr.mxu0 0.0
          %1186 = vmatpush1.msra.mxu0 0.0
          %1187 = vmatprep.subr.mxu0 0.0
          %1188 = vmatpush1.msra.mxu0 0.0
          %1189 = vmatprep.subr.mxu0 0.0
          %1190 = vmatpush1.msra.mxu0 0.0
          %1191 = vmatprep.subr.mxu0 0.0
          %1192 = vmatpush1.msra.mxu0 0.0
          %1193 = vmatprep.subr.mxu0 0.0
          %1194 = vmatpush1.msra.mxu0 0.0
          %1195 = vmatprep.subr.mxu0 0.0
          %1196 = vmatpush1.msra.mxu0 0.0
          %1197 = vmatprep.subr.mxu0 0.0
          %1198 = vmatpush1.msra.mxu0 0.0
          %1199 = vmatprep.subr.mxu0 0.0
          %1200 = vmatpush1.msra.mxu0 0.0
          %1201 = vmatprep.subr.mxu0 0.0
          %1202 = vmatpush1.msra.mxu0 0.0
          %1203 = vmatprep.subr.mxu0 0.0
          %1204 = vmatpush1.msra.mxu0 0.0
          %1205 = vmatprep.subr.mxu0 0.0
          %1206 = vmatpush1.msra.mxu0 0.0
          %1207 = vmatprep.subr.mxu0 0.0
          %1208 = vmatpush1.msra.mxu0 0.0
          %1209 = vmatprep.mubr.f32.mxu0 0.0
          %v1210 = vand.u32 %v804, 4294901760
          %1211 = vmatmul.mubr.f32.gmra.mrb[0].mxu0 %v1210
          %v1212 = vpop.f32.mrb[0].mxu0
          %v1213 = vadd.f32 %v1130, %v1212
          %v1214 = vpop.f32.mrb[0].mxu0
          %1215 = vdwg.mxu0
          %1216 = vmatprep.subr.mxu0 0.0
          %v1217 = vand.u32 %v798, 4294901760
          %1218 = vmatpush1.msra.mxu0 %v1217
          %1219 = vmatprep.subr.mxu0 0.0
          %v1220 = vand.u32 %v799, 4294901760
          %1221 = vmatpush1.msra.mxu0 %v1220
          %1222 = vmatprep.subr.mxu0 0.0
          %v1223 = vand.u32 %v800, 4294901760
          %1224 = vmatpush1.msra.mxu0 %v1223
          %1225 = vmatprep.subr.mxu0 0.0
          %v1226 = vand.u32 %v801, 4294901760
          %1227 = vmatpush1.msra.mxu0 %v1226
          %1228 = vmatprep.subr.mxu0 0.0
          %1229 = vmatpush1.msra.mxu0 0.0
          %1230 = vmatprep.subr.mxu0 0.0
          %1231 = vmatpush1.msra.mxu0 0.0
          %1232 = vmatprep.subr.mxu0 0.0
          %1233 = vmatpush1.msra.mxu0 0.0
          %1234 = vmatprep.subr.mxu0 0.0
          %1235 = vmatpush1.msra.mxu0 0.0
          %1236 = vmatprep.subr.mxu0 0.0
          %1237 = vmatpush1.msra.mxu0 0.0
          %1238 = vmatprep.subr.mxu0 0.0
          %1239 = vmatpush1.msra.mxu0 0.0
          %1240 = vmatprep.subr.mxu0 0.0
          %1241 = vmatpush1.msra.mxu0 0.0
          %1242 = vmatprep.subr.mxu0 0.0
          %1243 = vmatpush1.msra.mxu0 0.0
          %1244 = vmatprep.subr.mxu0 0.0
          %1245 = vmatpush1.msra.mxu0 0.0
          %1246 = vmatprep.subr.mxu0 0.0
          %1247 = vmatpush1.msra.mxu0 0.0
          %1248 = vmatprep.subr.mxu0 0.0
          %1249 = vmatpush1.msra.mxu0 0.0
          %1250 = vmatprep.subr.mxu0 0.0
          %1251 = vmatpush1.msra.mxu0 0.0
          %1252 = vmatprep.subr.mxu0 0.0
          %1253 = vmatpush1.msra.mxu0 0.0
          %1254 = vmatprep.subr.mxu0 0.0
          %1255 = vmatpush1.msra.mxu0 0.0
          %1256 = vmatprep.subr.mxu0 0.0
          %1257 = vmatpush1.msra.mxu0 0.0
          %1258 = vmatprep.subr.mxu0 0.0
          %1259 = vmatpush1.msra.mxu0 0.0
          %1260 = vmatprep.subr.mxu0 0.0
          %1261 = vmatpush1.msra.mxu0 0.0
          %1262 = vmatprep.subr.mxu0 0.0
          %1263 = vmatpush1.msra.mxu0 0.0
          %1264 = vmatprep.subr.mxu0 0.0
          %1265 = vmatpush1.msra.mxu0 0.0
          %1266 = vmatprep.subr.mxu0 0.0
          %1267 = vmatpush1.msra.mxu0 0.0
          %1268 = vmatprep.subr.mxu0 0.0
          %1269 = vmatpush1.msra.mxu0 0.0
          %1270 = vmatprep.subr.mxu0 0.0
          %1271 = vmatpush1.msra.mxu0 0.0
          %1272 = vmatprep.subr.mxu0 0.0
          %1273 = vmatpush1.msra.mxu0 0.0
          %1274 = vmatprep.subr.mxu0 0.0
          %1275 = vmatpush1.msra.mxu0 0.0
          %1276 = vmatprep.subr.mxu0 0.0
          %1277 = vmatpush1.msra.mxu0 0.0
          %1278 = vmatprep.subr.mxu0 0.0
          %1279 = vmatpush1.msra.mxu0 0.0
          %1280 = vmatprep.subr.mxu0 0.0
          %1281 = vmatpush1.msra.mxu0 0.0
          %1282 = vmatprep.subr.mxu0 0.0
          %1283 = vmatpush1.msra.mxu0 0.0
          %1284 = vmatprep.mubr.f32.mxu0 0.0
          %v1285 = vand.u32 %v804, 4294901760
          %1286 = vmatmul.mubr.f32.gmra.mrb[0].mxu0 %v1285
          %v1287 = vpop.f32.mrb[0].mxu0
          %v1288 = vadd.f32 %v1213, %v1287
          %v1289 = vpop.f32.mrb[0].mxu0
          %1290 = vdwg.mxu0
          %v1291 = vld [vmem:[%s6] sm:$0x1]
          %v1293 = vlaneseq
          %v1294 = vshrl.u32 %v1293, 7
          %v1295 = vsub.s32 0, %v1294
          %v1296 = vrot.slane %v1291, %v1295
          %v1298 = vadd.f32 %v1288, %v1296
          %vm1299 = vcmask 523264
          %1300 = vst.msk [vmem:[#allocation2] sm:$0xff] %vm1299, %v1298
          %v1301 = vld [vmem:[%s4] sm:$0xff]
          %v1302 = vld [vmem:[%s4 + $0x8] sm:$0xff]
          %v1303 = vld [vmem:[%s4 + $0x10] sm:$0xff]
          %v1304 = vld [vmem:[%s4 + $0x18] sm:$0xff]
          %1305 = vmatprep.subr.mxu0 0.0
          %v1306 = vand.u32 %v1301, 4294901760
          %1307 = vmatpush1.msra.mxu0 %v1306
          %1308 = vmatprep.subr.mxu0 0.0
          %v1309 = vand.u32 %v1302, 4294901760
          %1310 = vmatpush1.msra.mxu0 %v1309
          %1311 = vmatprep.subr.mxu0 0.0
          %v1312 = vand.u32 %v1303, 4294901760
          %1313 = vmatpush1.msra.mxu0 %v1312
          %1314 = vmatprep.subr.mxu0 0.0
          %v1315 = vand.u32 %v1304, 4294901760
          %1316 = vmatpush1.msra.mxu0 %v1315
          %1317 = vmatprep.subr.mxu0 0.0
          %1318 = vmatpush1.msra.mxu0 0.0
          %1319 = vmatprep.subr.mxu0 0.0
          %1320 = vmatpush1.msra.mxu0 0.0
          %1321 = vmatprep.subr.mxu0 0.0
          %1322 = vmatpush1.msra.mxu0 0.0
          %1323 = vmatprep.subr.mxu0 0.0
          %1324 = vmatpush1.msra.mxu0 0.0
          %1325 = vmatprep.subr.mxu0 0.0
          %1326 = vmatpush1.msra.mxu0 0.0
          %1327 = vmatprep.subr.mxu0 0.0
          %1328 = vmatpush1.msra.mxu0 0.0
          %1329 = vmatprep.subr.mxu0 0.0
          %1330 = vmatpush1.msra.mxu0 0.0
          %1331 = vmatprep.subr.mxu0 0.0
          %1332 = vmatpush1.msra.mxu0 0.0
          %1333 = vmatprep.subr.mxu0 0.0
          %1334 = vmatpush1.msra.mxu0 0.0
          %1335 = vmatprep.subr.mxu0 0.0
          %1336 = vmatpush1.msra.mxu0 0.0
          %1337 = vmatprep.subr.mxu0 0.0
          %1338 = vmatpush1.msra.mxu0 0.0
          %1339 = vmatprep.subr.mxu0 0.0
          %1340 = vmatpush1.msra.mxu0 0.0
          %1341 = vmatprep.subr.mxu0 0.0
          %1342 = vmatpush1.msra.mxu0 0.0
          %1343 = vmatprep.subr.mxu0 0.0
          %1344 = vmatpush1.msra.mxu0 0.0
          %1345 = vmatprep.subr.mxu0 0.0
          %1346 = vmatpush1.msra.mxu0 0.0
          %1347 = vmatprep.subr.mxu0 0.0
          %1348 = vmatpush1.msra.mxu0 0.0
          %1349 = vmatprep.subr.mxu0 0.0
          %1350 = vmatpush1.msra.mxu0 0.0
          %1351 = vmatprep.subr.mxu0 0.0
          %1352 = vmatpush1.msra.mxu0 0.0
          %1353 = vmatprep.subr.mxu0 0.0
          %1354 = vmatpush1.msra.mxu0 0.0
          %1355 = vmatprep.subr.mxu0 0.0
          %1356 = vmatpush1.msra.mxu0 0.0
          %1357 = vmatprep.subr.mxu0 0.0
          %1358 = vmatpush1.msra.mxu0 0.0
          %1359 = vmatprep.subr.mxu0 0.0
          %1360 = vmatpush1.msra.mxu0 0.0
          %1361 = vmatprep.subr.mxu0 0.0
          %1362 = vmatpush1.msra.mxu0 0.0
          %1363 = vmatprep.subr.mxu0 0.0
          %1364 = vmatpush1.msra.mxu0 0.0
          %1365 = vmatprep.subr.mxu0 0.0
          %1366 = vmatpush1.msra.mxu0 0.0
          %1367 = vmatprep.subr.mxu0 0.0
          %1368 = vmatpush1.msra.mxu0 0.0
          %1369 = vmatprep.subr.mxu0 0.0
          %1370 = vmatpush1.msra.mxu0 0.0
          %1371 = vmatprep.subr.mxu0 0.0
          %1372 = vmatpush1.msra.mxu0 0.0
          %1373 = vmatprep.mubr.f32.mxu0 0.0
          %v1374 = vand.u32 %v804, 4294901760
          %v1375 = vsub.f32 %v804, %v1374
          %v1376 = vand.u32 %v1375, 4294901760
          %v1377 = vsub.f32 %v1375, %v1376
          %v1378 = vand.u32 %v1377, 4294901760
          %1379 = vmatmul.mubr.f32.gmra.mrb[0].mxu0 %v1378
          %v1380 = vpop.f32.mrb[0].mxu0
          %v1381 = vadd.f32 0.0, %v1380
          %v1382 = vpop.f32.mrb[0].mxu0
          %1383 = vdwg.mxu0
          %1384 = vmatprep.subr.mxu0 0.0
          %v1385 = vand.u32 %v1301, 4294901760
          %v1386 = vsub.f32 %v1301, %v1385
          %v1387 = vand.u32 %v1386, 4294901760
          %v1388 = vsub.f32 %v1386, %v1387
          %v1389 = vand.u32 %v1388, 4294901760
          %1390 = vmatpush1.msra.mxu0 %v1389
          %1391 = vmatprep.subr.mxu0 0.0
          %v1392 = vand.u32 %v1302, 4294901760
          %v1393 = vsub.f32 %v1302, %v1392
          %v1394 = vand.u32 %v1393, 4294901760
          %v1395 = vsub.f32 %v1393, %v1394
          %v1396 = vand.u32 %v1395, 4294901760
          %1397 = vmatpush1.msra.mxu0 %v1396
          %1398 = vmatprep.subr.mxu0 0.0
          %v1399 = vand.u32 %v1303, 4294901760
          %v1400 = vsub.f32 %v1303, %v1399
          %v1401 = vand.u32 %v1400, 4294901760
          %v1402 = vsub.f32 %v1400, %v1401
          %v1403 = vand.u32 %v1402, 4294901760
          %1404 = vmatpush1.msra.mxu0 %v1403
          %1405 = vmatprep.subr.mxu0 0.0
          %v1406 = vand.u32 %v1304, 4294901760
          %v1407 = vsub.f32 %v1304, %v1406
          %v1408 = vand.u32 %v1407, 4294901760
          %v1409 = vsub.f32 %v1407, %v1408
          %v1410 = vand.u32 %v1409, 4294901760
          %1411 = vmatpush1.msra.mxu0 %v1410
          %1412 = vmatprep.subr.mxu0 0.0
          %1413 = vmatpush1.msra.mxu0 0.0
          %1414 = vmatprep.subr.mxu0 0.0
          %1415 = vmatpush1.msra.mxu0 0.0
          %1416 = vmatprep.subr.mxu0 0.0
          %1417 = vmatpush1.msra.mxu0 0.0
          %1418 = vmatprep.subr.mxu0 0.0
          %1419 = vmatpush1.msra.mxu0 0.0
          %1420 = vmatprep.subr.mxu0 0.0
          %1421 = vmatpush1.msra.mxu0 0.0
          %1422 = vmatprep.subr.mxu0 0.0
          %1423 = vmatpush1.msra.mxu0 0.0
          %1424 = vmatprep.subr.mxu0 0.0
          %1425 = vmatpush1.msra.mxu0 0.0
          %1426 = vmatprep.subr.mxu0 0.0
          %1427 = vmatpush1.msra.mxu0 0.0
          %1428 = vmatprep.subr.mxu0 0.0
          %1429 = vmatpush1.msra.mxu0 0.0
          %1430 = vmatprep.subr.mxu0 0.0
          %1431 = vmatpush1.msra.mxu0 0.0
          %1432 = vmatprep.subr.mxu0 0.0
          %1433 = vmatpush1.msra.mxu0 0.0
          %1434 = vmatprep.subr.mxu0 0.0
          %1435 = vmatpush1.msra.mxu0 0.0
          %1436 = vmatprep.subr.mxu0 0.0
          %1437 = vmatpush1.msra.mxu0 0.0
          %1438 = vmatprep.subr.mxu0 0.0
          %1439 = vmatpush1.msra.mxu0 0.0
          %1440 = vmatprep.subr.mxu0 0.0
          %1441 = vmatpush1.msra.mxu0 0.0
          %1442 = vmatprep.subr.mxu0 0.0
          %1443 = vmatpush1.msra.mxu0 0.0
          %1444 = vmatprep.subr.mxu0 0.0
          %1445 = vmatpush1.msra.mxu0 0.0
          %1446 = vmatprep.subr.mxu0 0.0
          %1447 = vmatpush1.msra.mxu0 0.0
          %1448 = vmatprep.subr.mxu0 0.0
          %1449 = vmatpush1.msra.mxu0 0.0
          %1450 = vmatprep.subr.mxu0 0.0
          %1451 = vmatpush1.msra.mxu0 0.0
          %1452 = vmatprep.subr.mxu0 0.0
          %1453 = vmatpush1.msra.mxu0 0.0
          %1454 = vmatprep.subr.mxu0 0.0
          %1455 = vmatpush1.msra.mxu0 0.0
          %1456 = vmatprep.subr.mxu0 0.0
          %1457 = vmatpush1.msra.mxu0 0.0
          %1458 = vmatprep.subr.mxu0 0.0
          %1459 = vmatpush1.msra.mxu0 0.0
          %1460 = vmatprep.subr.mxu0 0.0
          %1461 = vmatpush1.msra.mxu0 0.0
          %1462 = vmatprep.subr.mxu0 0.0
          %1463 = vmatpush1.msra.mxu0 0.0
          %1464 = vmatprep.subr.mxu0 0.0
          %1465 = vmatpush1.msra.mxu0 0.0
          %1466 = vmatprep.subr.mxu0 0.0
          %1467 = vmatpush1.msra.mxu0 0.0
          %1468 = vmatprep.mubr.f32.mxu0 0.0
          %v1469 = vand.u32 %v804, 4294901760
          %1470 = vmatmul.mubr.f32.gmra.mrb[0].mxu0 %v1469
          %v1471 = vpop.f32.mrb[0].mxu0
          %v1472 = vadd.f32 %v1381, %v1471
          %v1473 = vpop.f32.mrb[0].mxu0
          %1474 = vdwg.mxu0
          %1475 = vmatprep.subr.mxu0 0.0
          %v1476 = vand.u32 %v1301, 4294901760
          %v1477 = vsub.f32 %v1301, %v1476
          %1478 = vmatpush1.msra.mxu0 %v1477
          %1479 = vmatprep.subr.mxu0 0.0
          %v1480 = vand.u32 %v1302, 4294901760
          %v1481 = vsub.f32 %v1302, %v1480
          %1482 = vmatpush1.msra.mxu0 %v1481
          %1483 = vmatprep.subr.mxu0 0.0
          %v1484 = vand.u32 %v1303, 4294901760
          %v1485 = vsub.f32 %v1303, %v1484
          %1486 = vmatpush1.msra.mxu0 %v1485
          %1487 = vmatprep.subr.mxu0 0.0
          %v1488 = vand.u32 %v1304, 4294901760
          %v1489 = vsub.f32 %v1304, %v1488
          %1490 = vmatpush1.msra.mxu0 %v1489
          %1491 = vmatprep.subr.mxu0 0.0
          %1492 = vmatpush1.msra.mxu0 0.0
          %1493 = vmatprep.subr.mxu0 0.0
          %1494 = vmatpush1.msra.mxu0 0.0
          %1495 = vmatprep.subr.mxu0 0.0
          %1496 = vmatpush1.msra.mxu0 0.0
          %1497 = vmatprep.subr.mxu0 0.0
          %1498 = vmatpush1.msra.mxu0 0.0
          %1499 = vmatprep.subr.mxu0 0.0
          %1500 = vmatpush1.msra.mxu0 0.0
          %1501 = vmatprep.subr.mxu0 0.0
          %1502 = vmatpush1.msra.mxu0 0.0
          %1503 = vmatprep.subr.mxu0 0.0
          %1504 = vmatpush1.msra.mxu0 0.0
          %1505 = vmatprep.subr.mxu0 0.0
          %1506 = vmatpush1.msra.mxu0 0.0
          %1507 = vmatprep.subr.mxu0 0.0
          %1508 = vmatpush1.msra.mxu0 0.0
          %1509 = vmatprep.subr.mxu0 0.0
          %1510 = vmatpush1.msra.mxu0 0.0
          %1511 = vmatprep.subr.mxu0 0.0
          %1512 = vmatpush1.msra.mxu0 0.0
          %1513 = vmatprep.subr.mxu0 0.0
          %1514 = vmatpush1.msra.mxu0 0.0
          %1515 = vmatprep.subr.mxu0 0.0
          %1516 = vmatpush1.msra.mxu0 0.0
          %1517 = vmatprep.subr.mxu0 0.0
          %1518 = vmatpush1.msra.mxu0 0.0
          %1519 = vmatprep.subr.mxu0 0.0
          %1520 = vmatpush1.msra.mxu0 0.0
          %1521 = vmatprep.subr.mxu0 0.0
          %1522 = vmatpush1.msra.mxu0 0.0
          %1523 = vmatprep.subr.mxu0 0.0
          %1524 = vmatpush1.msra.mxu0 0.0
          %1525 = vmatprep.subr.mxu0 0.0
          %1526 = vmatpush1.msra.mxu0 0.0
          %1527 = vmatprep.subr.mxu0 0.0
          %1528 = vmatpush1.msra.mxu0 0.0
          %1529 = vmatprep.subr.mxu0 0.0
          %1530 = vmatpush1.msra.mxu0 0.0
          %1531 = vmatprep.subr.mxu0 0.0
          %1532 = vmatpush1.msra.mxu0 0.0
          %1533 = vmatprep.subr.mxu0 0.0
          %1534 = vmatpush1.msra.mxu0 0.0
          %1535 = vmatprep.subr.mxu0 0.0
          %1536 = vmatpush1.msra.mxu0 0.0
          %1537 = vmatprep.subr.mxu0 0.0
          %1538 = vmatpush1.msra.mxu0 0.0
          %1539 = vmatprep.subr.mxu0 0.0
          %1540 = vmatpush1.msra.mxu0 0.0
          %1541 = vmatprep.subr.mxu0 0.0
          %1542 = vmatpush1.msra.mxu0 0.0
          %1543 = vmatprep.subr.mxu0 0.0
          %1544 = vmatpush1.msra.mxu0 0.0
          %1545 = vmatprep.subr.mxu0 0.0
          %1546 = vmatpush1.msra.mxu0 0.0
          %1547 = vmatprep.mubr.f32.mxu0 0.0
          %v1548 = vand.u32 %v804, 4294901760
          %v1549 = vsub.f32 %v804, %v1548
          %1550 = vmatmul.mubr.f32.gmra.mrb[0].mxu0 %v1549
          %v1551 = vpop.f32.mrb[0].mxu0
          %v1552 = vadd.f32 %v1472, %v1551
          %v1553 = vpop.f32.mrb[0].mxu0
          %1554 = vdwg.mxu0
          %1555 = vmatprep.subr.mxu0 0.0
          %v1556 = vand.u32 %v1301, 4294901760
          %1557 = vmatpush1.msra.mxu0 %v1556
          %1558 = vmatprep.subr.mxu0 0.0
          %v1559 = vand.u32 %v1302, 4294901760
          %1560 = vmatpush1.msra.mxu0 %v1559
          %1561 = vmatprep.subr.mxu0 0.0
          %v1562 = vand.u32 %v1303, 4294901760
          %1563 = vmatpush1.msra.mxu0 %v1562
          %1564 = vmatprep.subr.mxu0 0.0
          %v1565 = vand.u32 %v1304, 4294901760
          %1566 = vmatpush1.msra.mxu0 %v1565
          %1567 = vmatprep.subr.mxu0 0.0
          %1568 = vmatpush1.msra.mxu0 0.0
          %1569 = vmatprep.subr.mxu0 0.0
          %1570 = vmatpush1.msra.mxu0 0.0
          %1571 = vmatprep.subr.mxu0 0.0
          %1572 = vmatpush1.msra.mxu0 0.0
          %1573 = vmatprep.subr.mxu0 0.0
          %1574 = vmatpush1.msra.mxu0 0.0
          %1575 = vmatprep.subr.mxu0 0.0
          %1576 = vmatpush1.msra.mxu0 0.0
          %1577 = vmatprep.subr.mxu0 0.0
          %1578 = vmatpush1.msra.mxu0 0.0
          %1579 = vmatprep.subr.mxu0 0.0
          %1580 = vmatpush1.msra.mxu0 0.0
          %1581 = vmatprep.subr.mxu0 0.0
          %1582 = vmatpush1.msra.mxu0 0.0
          %1583 = vmatprep.subr.mxu0 0.0
          %1584 = vmatpush1.msra.mxu0 0.0
          %1585 = vmatprep.subr.mxu0 0.0
          %1586 = vmatpush1.msra.mxu0 0.0
          %1587 = vmatprep.subr.mxu0 0.0
          %1588 = vmatpush1.msra.mxu0 0.0
          %1589 = vmatprep.subr.mxu0 0.0
          %1590 = vmatpush1.msra.mxu0 0.0
          %1591 = vmatprep.subr.mxu0 0.0
          %1592 = vmatpush1.msra.mxu0 0.0
          %1593 = vmatprep.subr.mxu0 0.0
          %1594 = vmatpush1.msra.mxu0 0.0
          %1595 = vmatprep.subr.mxu0 0.0
          %1596 = vmatpush1.msra.mxu0 0.0
          %1597 = vmatprep.subr.mxu0 0.0
          %1598 = vmatpush1.msra.mxu0 0.0
          %1599 = vmatprep.subr.mxu0 0.0
          %1600 = vmatpush1.msra.mxu0 0.0
          %1601 = vmatprep.subr.mxu0 0.0
          %1602 = vmatpush1.msra.mxu0 0.0
          %1603 = vmatprep.subr.mxu0 0.0
          %1604 = vmatpush1.msra.mxu0 0.0
          %1605 = vmatprep.subr.mxu0 0.0
          %1606 = vmatpush1.msra.mxu0 0.0
          %1607 = vmatprep.subr.mxu0 0.0
          %1608 = vmatpush1.msra.mxu0 0.0
          %1609 = vmatprep.subr.mxu0 0.0
          %1610 = vmatpush1.msra.mxu0 0.0
          %1611 = vmatprep.subr.mxu0 0.0
          %1612 = vmatpush1.msra.mxu0 0.0
          %1613 = vmatprep.subr.mxu0 0.0
          %1614 = vmatpush1.msra.mxu0 0.0
          %1615 = vmatprep.subr.mxu0 0.0
          %1616 = vmatpush1.msra.mxu0 0.0
          %1617 = vmatprep.subr.mxu0 0.0
          %1618 = vmatpush1.msra.mxu0 0.0
          %1619 = vmatprep.subr.mxu0 0.0
          %1620 = vmatpush1.msra.mxu0 0.0
          %1621 = vmatprep.subr.mxu0 0.0
          %1622 = vmatpush1.msra.mxu0 0.0
          %1623 = vmatprep.mubr.f32.mxu0 0.0
          %v1624 = vand.u32 %v804, 4294901760
          %v1625 = vsub.f32 %v804, %v1624
          %v1626 = vand.u32 %v1625, 4294901760
          %1627 = vmatmul.mubr.f32.gmra.mrb[0].mxu0 %v1626
          %v1628 = vpop.f32.mrb[0].mxu0
          %v1629 = vadd.f32 %v1552, %v1628
          %v1630 = vpop.f32.mrb[0].mxu0
          %1631 = vdwg.mxu0
          %1632 = vmatprep.subr.mxu0 0.0
          %v1633 = vand.u32 %v1301, 4294901760
          %v1634 = vsub.f32 %v1301, %v1633
          %v1635 = vand.u32 %v1634, 4294901760
          %1636 = vmatpush1.msra.mxu0 %v1635
          %1637 = vmatprep.subr.mxu0 0.0
          %v1638 = vand.u32 %v1302, 4294901760
          %v1639 = vsub.f32 %v1302, %v1638
          %v1640 = vand.u32 %v1639, 4294901760
          %1641 = vmatpush1.msra.mxu0 %v1640
          %1642 = vmatprep.subr.mxu0 0.0
          %v1643 = vand.u32 %v1303, 4294901760
          %v1644 = vsub.f32 %v1303, %v1643
          %v1645 = vand.u32 %v1644, 4294901760
          %1646 = vmatpush1.msra.mxu0 %v1645
          %1647 = vmatprep.subr.mxu0 0.0
          %v1648 = vand.u32 %v1304, 4294901760
          %v1649 = vsub.f32 %v1304, %v1648
          %v1650 = vand.u32 %v1649, 4294901760
          %1651 = vmatpush1.msra.mxu0 %v1650
          %1652 = vmatprep.subr.mxu0 0.0
          %1653 = vmatpush1.msra.mxu0 0.0
          %1654 = vmatprep.subr.mxu0 0.0
          %1655 = vmatpush1.msra.mxu0 0.0
          %1656 = vmatprep.subr.mxu0 0.0
          %1657 = vmatpush1.msra.mxu0 0.0
          %1658 = vmatprep.subr.mxu0 0.0
          %1659 = vmatpush1.msra.mxu0 0.0
          %1660 = vmatprep.subr.mxu0 0.0
          %1661 = vmatpush1.msra.mxu0 0.0
          %1662 = vmatprep.subr.mxu0 0.0
          %1663 = vmatpush1.msra.mxu0 0.0
          %1664 = vmatprep.subr.mxu0 0.0
          %1665 = vmatpush1.msra.mxu0 0.0
          %1666 = vmatprep.subr.mxu0 0.0
          %1667 = vmatpush1.msra.mxu0 0.0
          %1668 = vmatprep.subr.mxu0 0.0
          %1669 = vmatpush1.msra.mxu0 0.0
          %1670 = vmatprep.subr.mxu0 0.0
          %1671 = vmatpush1.msra.mxu0 0.0
          %1672 = vmatprep.subr.mxu0 0.0
          %1673 = vmatpush1.msra.mxu0 0.0
          %1674 = vmatprep.subr.mxu0 0.0
          %1675 = vmatpush1.msra.mxu0 0.0
          %1676 = vmatprep.subr.mxu0 0.0
          %1677 = vmatpush1.msra.mxu0 0.0
          %1678 = vmatprep.subr.mxu0 0.0
          %1679 = vmatpush1.msra.mxu0 0.0
          %1680 = vmatprep.subr.mxu0 0.0
          %1681 = vmatpush1.msra.mxu0 0.0
          %1682 = vmatprep.subr.mxu0 0.0
          %1683 = vmatpush1.msra.mxu0 0.0
          %1684 = vmatprep.subr.mxu0 0.0
          %1685 = vmatpush1.msra.mxu0 0.0
          %1686 = vmatprep.subr.mxu0 0.0
          %1687 = vmatpush1.msra.mxu0 0.0
          %1688 = vmatprep.subr.mxu0 0.0
          %1689 = vmatpush1.msra.mxu0 0.0
          %1690 = vmatprep.subr.mxu0 0.0
          %1691 = vmatpush1.msra.mxu0 0.0
          %1692 = vmatprep.subr.mxu0 0.0
          %1693 = vmatpush1.msra.mxu0 0.0
          %1694 = vmatprep.subr.mxu0 0.0
          %1695 = vmatpush1.msra.mxu0 0.0
          %1696 = vmatprep.subr.mxu0 0.0
          %1697 = vmatpush1.msra.mxu0 0.0
          %1698 = vmatprep.subr.mxu0 0.0
          %1699 = vmatpush1.msra.mxu0 0.0
          %1700 = vmatprep.subr.mxu0 0.0
          %1701 = vmatpush1.msra.mxu0 0.0
          %1702 = vmatprep.subr.mxu0 0.0
          %1703 = vmatpush1.msra.mxu0 0.0
          %1704 = vmatprep.subr.mxu0 0.0
          %1705 = vmatpush1.msra.mxu0 0.0
          %1706 = vmatprep.subr.mxu0 0.0
          %1707 = vmatpush1.msra.mxu0 0.0
          %1708 = vmatprep.mubr.f32.mxu0 0.0
          %v1709 = vand.u32 %v804, 4294901760
          %1710 = vmatmul.mubr.f32.gmra.mrb[0].mxu0 %v1709
          %v1711 = vpop.f32.mrb[0].mxu0
          %v1712 = vadd.f32 %v1629, %v1711
          %v1713 = vpop.f32.mrb[0].mxu0
          %1714 = vdwg.mxu0
          %1715 = vmatprep.subr.mxu0 0.0
          %v1716 = vand.u32 %v1301, 4294901760
          %1717 = vmatpush1.msra.mxu0 %v1716
          %1718 = vmatprep.subr.mxu0 0.0
          %v1719 = vand.u32 %v1302, 4294901760
          %1720 = vmatpush1.msra.mxu0 %v1719
          %1721 = vmatprep.subr.mxu0 0.0
          %v1722 = vand.u32 %v1303, 4294901760
          %1723 = vmatpush1.msra.mxu0 %v1722
          %1724 = vmatprep.subr.mxu0 0.0
          %v1725 = vand.u32 %v1304, 4294901760
          %1726 = vmatpush1.msra.mxu0 %v1725
          %1727 = vmatprep.subr.mxu0 0.0
          %1728 = vmatpush1.msra.mxu0 0.0
          %1729 = vmatprep.subr.mxu0 0.0
          %1730 = vmatpush1.msra.mxu0 0.0
          %1731 = vmatprep.subr.mxu0 0.0
          %1732 = vmatpush1.msra.mxu0 0.0
          %1733 = vmatprep.subr.mxu0 0.0
          %1734 = vmatpush1.msra.mxu0 0.0
          %1735 = vmatprep.subr.mxu0 0.0
          %1736 = vmatpush1.msra.mxu0 0.0
          %1737 = vmatprep.subr.mxu0 0.0
          %1738 = vmatpush1.msra.mxu0 0.0
          %1739 = vmatprep.subr.mxu0 0.0
          %1740 = vmatpush1.msra.mxu0 0.0
          %1741 = vmatprep.subr.mxu0 0.0
          %1742 = vmatpush1.msra.mxu0 0.0
          %1743 = vmatprep.subr.mxu0 0.0
          %1744 = vmatpush1.msra.mxu0 0.0
          %1745 = vmatprep.subr.mxu0 0.0
          %1746 = vmatpush1.msra.mxu0 0.0
          %1747 = vmatprep.subr.mxu0 0.0
          %1748 = vmatpush1.msra.mxu0 0.0
          %1749 = vmatprep.subr.mxu0 0.0
          %1750 = vmatpush1.msra.mxu0 0.0
          %1751 = vmatprep.subr.mxu0 0.0
          %1752 = vmatpush1.msra.mxu0 0.0
          %1753 = vmatprep.subr.mxu0 0.0
          %1754 = vmatpush1.msra.mxu0 0.0
          %1755 = vmatprep.subr.mxu0 0.0
          %1756 = vmatpush1.msra.mxu0 0.0
          %1757 = vmatprep.subr.mxu0 0.0
          %1758 = vmatpush1.msra.mxu0 0.0
          %1759 = vmatprep.subr.mxu0 0.0
          %1760 = vmatpush1.msra.mxu0 0.0
          %1761 = vmatprep.subr.mxu0 0.0
          %1762 = vmatpush1.msra.mxu0 0.0
          %1763 = vmatprep.subr.mxu0 0.0
          %1764 = vmatpush1.msra.mxu0 0.0
          %1765 = vmatprep.subr.mxu0 0.0
          %1766 = vmatpush1.msra.mxu0 0.0
          %1767 = vmatprep.subr.mxu0 0.0
          %1768 = vmatpush1.msra.mxu0 0.0
          %1769 = vmatprep.subr.mxu0 0.0
          %1770 = vmatpush1.msra.mxu0 0.0
          %1771 = vmatprep.subr.mxu0 0.0
          %1772 = vmatpush1.msra.mxu0 0.0
          %1773 = vmatprep.subr.mxu0 0.0
          %1774 = vmatpush1.msra.mxu0 0.0
          %1775 = vmatprep.subr.mxu0 0.0
          %1776 = vmatpush1.msra.mxu0 0.0
          %1777 = vmatprep.subr.mxu0 0.0
          %1778 = vmatpush1.msra.mxu0 0.0
          %1779 = vmatprep.subr.mxu0 0.0
          %1780 = vmatpush1.msra.mxu0 0.0
          %1781 = vmatprep.subr.mxu0 0.0
          %1782 = vmatpush1.msra.mxu0 0.0
          %1783 = vmatprep.mubr.f32.mxu0 0.0
          %v1784 = vand.u32 %v804, 4294901760
          %1785 = vmatmul.mubr.f32.gmra.mrb[0].mxu0 %v1784
          %v1786 = vpop.f32.mrb[0].mxu0
          %v1787 = vadd.f32 %v1712, %v1786
          %v1788 = vpop.f32.mrb[0].mxu0
          %1789 = vdwg.mxu0
          %v1790 = vsub.f32 %v1787, %v795
          %1791 = vst.msk [vmem:[#allocation3] sm:$0xff] %vm1299, %v1790
          %1792 = vst.msk [vmem:[#allocation4] sm:$0xff] %vm802, 0.0
        $region56: #{agent_gnn_forward.3} parent=51 // pred_fallthru
          _
        %s1793 = sld [smem:[#allocation6 + %s33]]
        %s1794 = smul.u32 %s34, 8
        %p1795 = scmp.lt.s32.totalorder %s1794, %s1793
        // Predicated region
        $region57: #{agent_gnn_forward.3} parent=51 // pred_check
          %p1796 = pneg %p1795
        $region58: #{agent_gnn_forward.3} parent=51 // pred_check_branch
          %1798 = sbr.rel (%p1796) target = $region60
        $region59: #{agent_gnn_forward.3} parent=51 // pred_region
          %s1799 = scalar_lea.vmem [#allocation3], %s1794
          %v1800 = vld [vmem:[%s1799] sm:$0xff]
          %v1801 = vld [vmem:[#allocation2] sm:$0xff]
          %v1802 = vlaneseq
          %v1803 = vshrl.u32 %v1802, 7
          %v1804 = vsub.s32 0, %v1803
          %v1805 = vrot.slane %v1801, %v1804
          %1807 = vbcast.lane.b32.xlu0 %v1805, 256
          %v1808 = vpop.permute.xlu0 %1807
          %s1810 = sor.u32 256, 8
          %1811 = vbcast.lane.b32.xlu0 %v1805, %s1810
          %v1812 = vpop.permute.xlu0 %1811
          %s1814 = sor.u32 256, 16
          %1815 = vbcast.lane.b32.xlu0 %v1805, %s1814
          %v1816 = vpop.permute.xlu0 %1815
          %s1818 = sor.u32 256, 24
          %1819 = vbcast.lane.b32.xlu0 %v1805, %s1818
          %v1820 = vpop.permute.xlu0 %1819
          %s1822 = sor.u32 256, 32
          %1823 = vbcast.lane.b32.xlu0 %v1805, %s1822
          %v1824 = vpop.permute.xlu0 %1823
          %s1826 = sor.u32 256, 40
          %1827 = vbcast.lane.b32.xlu0 %v1805, %s1826
          %v1828 = vpop.permute.xlu0 %1827
          %s1830 = sor.u32 256, 48
          %1831 = vbcast.lane.b32.xlu0 %v1805, %s1830
          %v1832 = vpop.permute.xlu0 %1831
          %s1834 = sor.u32 256, 56
          %1835 = vbcast.lane.b32.xlu0 %v1805, %s1834
          %v1836 = vpop.permute.xlu0 %1835
          %v1837 = vlaneseq
          %v1838 = vshrl.u32 %v1837, 7
          %v1839 = vsub.s32 1, %v1838
          %v1840 = vrot.slane %v1801, %v1839
          %1842 = vbcast.lane.b32.xlu0 %v1840, 256
          %v1843 = vpop.permute.xlu0 %1842
          %s1845 = sor.u32 256, 8
          %1846 = vbcast.lane.b32.xlu0 %v1840, %s1845
          %v1847 = vpop.permute.xlu0 %1846
          %s1849 = sor.u32 256, 16
          %1850 = vbcast.lane.b32.xlu0 %v1840, %s1849
          %v1851 = vpop.permute.xlu0 %1850
          %s1853 = sor.u32 256, 24
          %1854 = vbcast.lane.b32.xlu0 %v1840, %s1853
          %v1855 = vpop.permute.xlu0 %1854
          %s1857 = sor.u32 256, 32
          %1858 = vbcast.lane.b32.xlu0 %v1840, %s1857
          %v1859 = vpop.permute.xlu0 %1858
          %s1861 = sor.u32 256, 40
          %1862 = vbcast.lane.b32.xlu0 %v1840, %s1861
          %v1863 = vpop.permute.xlu0 %1862
          %s1865 = sor.u32 256, 48
          %1866 = vbcast.lane.b32.xlu0 %v1840, %s1865
          %v1867 = vpop.permute.xlu0 %1866
          %s1869 = sor.u32 256, 56
          %1870 = vbcast.lane.b32.xlu0 %v1840, %s1869
          %v1871 = vpop.permute.xlu0 %1870
          %v1872 = vlaneseq
          %v1873 = vshrl.u32 %v1872, 7
          %v1874 = vsub.s32 2, %v1873
          %v1875 = vrot.slane %v1801, %v1874
          %1877 = vbcast.lane.b32.xlu0 %v1875, 256
          %v1878 = vpop.permute.xlu0 %1877
          %s1880 = sor.u32 256, 8
          %1881 = vbcast.lane.b32.xlu0 %v1875, %s1880
          %v1882 = vpop.permute.xlu0 %1881
          %s1884 = sor.u32 256, 16
          %1885 = vbcast.lane.b32.xlu0 %v1875, %s1884
          %v1886 = vpop.permute.xlu0 %1885
          %s1888 = sor.u32 256, 24
          %1889 = vbcast.lane.b32.xlu0 %v1875, %s1888
          %v1890 = vpop.permute.xlu0 %1889
          %s1892 = sor.u32 256, 32
          %1893 = vbcast.lane.b32.xlu0 %v1875, %s1892
          %v1894 = vpop.permute.xlu0 %1893
          %s1896 = sor.u32 256, 40
          %1897 = vbcast.lane.b32.xlu0 %v1875, %s1896
          %v1898 = vpop.permute.xlu0 %1897
          %s1900 = sor.u32 256, 48
          %1901 = vbcast.lane.b32.xlu0 %v1875, %s1900
          %v1902 = vpop.permute.xlu0 %1901
          %s1904 = sor.u32 256, 56
          %1905 = vbcast.lane.b32.xlu0 %v1875, %s1904
          %v1906 = vpop.permute.xlu0 %1905
          %v1907 = vlaneseq
          %v1908 = vshrl.u32 %v1907, 7
          %v1909 = vsub.s32 3, %v1908
          %v1910 = vrot.slane %v1801, %v1909
          %1912 = vbcast.lane.b32.xlu0 %v1910, 256
          %v1913 = vpop.permute.xlu0 %1912
          %s1915 = sor.u32 256, 8
          %1916 = vbcast.lane.b32.xlu0 %v1910, %s1915
          %v1917 = vpop.permute.xlu0 %1916
          %s1919 = sor.u32 256, 16
          %1920 = vbcast.lane.b32.xlu0 %v1910, %s1919
          %v1921 = vpop.permute.xlu0 %1920
          %s1923 = sor.u32 256, 24
          %1924 = vbcast.lane.b32.xlu0 %v1910, %s1923
          %v1925 = vpop.permute.xlu0 %1924
          %s1927 = sor.u32 256, 32
          %1928 = vbcast.lane.b32.xlu0 %v1910, %s1927
          %v1929 = vpop.permute.xlu0 %1928
          %s1931 = sor.u32 256, 40
          %1932 = vbcast.lane.b32.xlu0 %v1910, %s1931
          %v1933 = vpop.permute.xlu0 %1932
          %s1935 = sor.u32 256, 48
          %1936 = vbcast.lane.b32.xlu0 %v1910, %s1935
          %v1937 = vpop.permute.xlu0 %1936
          %s1939 = sor.u32 256, 56
          %1940 = vbcast.lane.b32.xlu0 %v1910, %s1939
          %v1941 = vpop.permute.xlu0 %1940
          %v1942 = vlaneseq
          %v1943 = vshrl.u32 %v1942, 7
          %v1944 = vsub.s32 4, %v1943
          %v1945 = vrot.slane %v1801, %v1944
          %1947 = vbcast.lane.b32.xlu0 %v1945, 256
          %v1948 = vpop.permute.xlu0 %1947
          %s1950 = sor.u32 256, 8
          %1951 = vbcast.lane.b32.xlu0 %v1945, %s1950
          %v1952 = vpop.permute.xlu0 %1951
          %s1954 = sor.u32 256, 16
          %1955 = vbcast.lane.b32.xlu0 %v1945, %s1954
          %v1956 = vpop.permute.xlu0 %1955
          %s1958 = sor.u32 256, 24
          %1959 = vbcast.lane.b32.xlu0 %v1945, %s1958
          %v1960 = vpop.permute.xlu0 %1959
          %s1962 = sor.u32 256, 32
          %1963 = vbcast.lane.b32.xlu0 %v1945, %s1962
          %v1964 = vpop.permute.xlu0 %1963
          %s1966 = sor.u32 256, 40
          %1967 = vbcast.lane.b32.xlu0 %v1945, %s1966
          %v1968 = vpop.permute.xlu0 %1967
          %s1970 = sor.u32 256, 48
          %1971 = vbcast.lane.b32.xlu0 %v1945, %s1970
          %v1972 = vpop.permute.xlu0 %1971
          %s1974 = sor.u32 256, 56
          %1975 = vbcast.lane.b32.xlu0 %v1945, %s1974
          %v1976 = vpop.permute.xlu0 %1975
          %v1977 = vlaneseq
          %v1978 = vshrl.u32 %v1977, 7
          %v1979 = vsub.s32 5, %v1978
          %v1980 = vrot.slane %v1801, %v1979
          %1982 = vbcast.lane.b32.xlu0 %v1980, 256
          %v1983 = vpop.permute.xlu0 %1982
          %s1985 = sor.u32 256, 8
          %1986 = vbcast.lane.b32.xlu0 %v1980, %s1985
          %v1987 = vpop.permute.xlu0 %1986
          %s1989 = sor.u32 256, 16
          %1990 = vbcast.lane.b32.xlu0 %v1980, %s1989
          %v1991 = vpop.permute.xlu0 %1990
          %s1993 = sor.u32 256, 24
          %1994 = vbcast.lane.b32.xlu0 %v1980, %s1993
          %v1995 = vpop.permute.xlu0 %1994
          %s1997 = sor.u32 256, 32
          %1998 = vbcast.lane.b32.xlu0 %v1980, %s1997
          %v1999 = vpop.permute.xlu0 %1998
          %s2001 = sor.u32 256, 40
          %2002 = vbcast.lane.b32.xlu0 %v1980, %s2001
          %v2003 = vpop.permute.xlu0 %2002
          %s2005 = sor.u32 256, 48
          %2006 = vbcast.lane.b32.xlu0 %v1980, %s2005
          %v2007 = vpop.permute.xlu0 %2006
          %s2009 = sor.u32 256, 56
          %2010 = vbcast.lane.b32.xlu0 %v1980, %s2009
          %v2011 = vpop.permute.xlu0 %2010
          %v2012 = vlaneseq
          %v2013 = vshrl.u32 %v2012, 7
          %v2014 = vsub.s32 6, %v2013
          %v2015 = vrot.slane %v1801, %v2014
          %2017 = vbcast.lane.b32.xlu0 %v2015, 256
          %v2018 = vpop.permute.xlu0 %2017
          %s2020 = sor.u32 256, 8
          %2021 = vbcast.lane.b32.xlu0 %v2015, %s2020
          %v2022 = vpop.permute.xlu0 %2021
          %s2024 = sor.u32 256, 16
          %2025 = vbcast.lane.b32.xlu0 %v2015, %s2024
          %v2026 = vpop.permute.xlu0 %2025
          %s2028 = sor.u32 256, 24
          %2029 = vbcast.lane.b32.xlu0 %v2015, %s2028
          %v2030 = vpop.permute.xlu0 %2029
          %s2032 = sor.u32 256, 32
          %2033 = vbcast.lane.b32.xlu0 %v2015, %s2032
          %v2034 = vpop.permute.xlu0 %2033
          %s2036 = sor.u32 256, 40
          %2037 = vbcast.lane.b32.xlu0 %v2015, %s2036
          %v2038 = vpop.permute.xlu0 %2037
          %s2040 = sor.u32 256, 48
          %2041 = vbcast.lane.b32.xlu0 %v2015, %s2040
          %v2042 = vpop.permute.xlu0 %2041
          %s2044 = sor.u32 256, 56
          %2045 = vbcast.lane.b32.xlu0 %v2015, %s2044
          %v2046 = vpop.permute.xlu0 %2045
          %v2047 = vlaneseq
          %v2048 = vshrl.u32 %v2047, 7
          %v2049 = vsub.s32 7, %v2048
          %v2050 = vrot.slane %v1801, %v2049
          %2052 = vbcast.lane.b32.xlu0 %v2050, 256
          %v2053 = vpop.permute.xlu0 %2052
          %s2055 = sor.u32 256, 8
          %2056 = vbcast.lane.b32.xlu0 %v2050, %s2055
          %v2057 = vpop.permute.xlu0 %2056
          %s2059 = sor.u32 256, 16
          %2060 = vbcast.lane.b32.xlu0 %v2050, %s2059
          %v2061 = vpop.permute.xlu0 %2060
          %s2063 = sor.u32 256, 24
          %2064 = vbcast.lane.b32.xlu0 %v2050, %s2063
          %v2065 = vpop.permute.xlu0 %2064
          %s2067 = sor.u32 256, 32
          %2068 = vbcast.lane.b32.xlu0 %v2050, %s2067
          %v2069 = vpop.permute.xlu0 %2068
          %s2071 = sor.u32 256, 40
          %2072 = vbcast.lane.b32.xlu0 %v2050, %s2071
          %v2073 = vpop.permute.xlu0 %2072
          %s2075 = sor.u32 256, 48
          %2076 = vbcast.lane.b32.xlu0 %v2050, %s2075
          %v2077 = vpop.permute.xlu0 %2076
          %s2079 = sor.u32 256, 56
          %2080 = vbcast.lane.b32.xlu0 %v2050, %s2079
          %v2081 = vpop.permute.xlu0 %2080
          %2082 = vxpose.xlu0.b32.start [1/16] %v1800, 128
          %2083 = vxpose.xlu0.b32.cont [2/16] 0.0, 128
          %2084 = vxpose.xlu0.b32.cont [3/16] 0.0, 128
          %2085 = vxpose.xlu0.b32.cont [4/16] 0.0, 128
          %2086 = vxpose.xlu0.b32.cont [5/16] 0.0, 128
          %2087 = vxpose.xlu0.b32.cont [6/16] 0.0, 128
          %2088 = vxpose.xlu0.b32.cont [7/16] 0.0, 128
          %2089 = vxpose.xlu0.b32.cont [8/16] 0.0, 128
          %2090 = vxpose.xlu0.b32.cont [9/16] 0.0, 128
          %2091 = vxpose.xlu0.b32.cont [10/16] 0.0, 128
          %2092 = vxpose.xlu0.b32.cont [11/16] 0.0, 128
          %2093 = vxpose.xlu0.b32.cont [12/16] 0.0, 128
          %2094 = vxpose.xlu0.b32.cont [13/16] 0.0, 128
          %2095 = vxpose.xlu0.b32.cont [14/16] 0.0, 128
          %2096 = vxpose.xlu0.b32.cont [15/16] 0.0, 128
          %2097 = vxpose.xlu0.b32.end [16/16] 0.0, 128
          %v2098 = vpop.trf.xlu0
          %v2099 = vpop.trf.xlu0
          %v2100 = vpop.trf.xlu0
          %v2101 = vpop.trf.xlu0
          %v2102 = vpop.trf.xlu0
          %v2103 = vpop.trf.xlu0
          %v2104 = vpop.trf.xlu0
          %v2105 = vpop.trf.xlu0
          %v2106 = vpop.trf.xlu0
          %v2107 = vpop.trf.xlu0
          %v2108 = vpop.trf.xlu0
          %v2109 = vpop.trf.xlu0
          %v2110 = vpop.trf.xlu0
          %v2111 = vpop.trf.xlu0
          %v2112 = vpop.trf.xlu0
          %v2113 = vpop.trf.xlu0
          %v2114 = vadd.f32 %v1808, %v2098
          %v2115 = vadd.f32 %v1812, %v2099
          %v2116 = vadd.f32 %v1816, %v2100
          %v2117 = vadd.f32 %v1820, %v2101
          %v2118 = vadd.f32 %v1824, %v2102
          %v2119 = vadd.f32 %v1828, %v2103
          %v2120 = vadd.f32 %v1832, %v2104
          %v2121 = vadd.f32 %v1836, %v2105
          %v2122 = vadd.f32 %v1843, %v2098
          %v2123 = vadd.f32 %v1847, %v2099
          %v2124 = vadd.f32 %v1851, %v2100
          %v2125 = vadd.f32 %v1855, %v2101
          %v2126 = vadd.f32 %v1859, %v2102
          %v2127 = vadd.f32 %v1863, %v2103
          %v2128 = vadd.f32 %v1867, %v2104
          %v2129 = vadd.f32 %v1871, %v2105
          %v2130 = vadd.f32 %v1878, %v2098
          %v2131 = vadd.f32 %v1882, %v2099
          %v2132 = vadd.f32 %v1886, %v2100
          %v2133 = vadd.f32 %v1890, %v2101
          %v2134 = vadd.f32 %v1894, %v2102
          %v2135 = vadd.f32 %v1898, %v2103
          %v2136 = vadd.f32 %v1902, %v2104
          %v2137 = vadd.f32 %v1906, %v2105
          %v2138 = vadd.f32 %v1913, %v2098
          %v2139 = vadd.f32 %v1917, %v2099
          %v2140 = vadd.f32 %v1921, %v2100
          %v2141 = vadd.f32 %v1925, %v2101
          %v2142 = vadd.f32 %v1929, %v2102
          %v2143 = vadd.f32 %v1933, %v2103
          %v2144 = vadd.f32 %v1937, %v2104
          %v2145 = vadd.f32 %v1941, %v2105
          %v2146 = vadd.f32 %v1948, %v2098
          %v2147 = vadd.f32 %v1952, %v2099
          %v2148 = vadd.f32 %v1956, %v2100
          %v2149 = vadd.f32 %v1960, %v2101
          %v2150 = vadd.f32 %v1964, %v2102
          %v2151 = vadd.f32 %v1968, %v2103
          %v2152 = vadd.f32 %v1972, %v2104
          %v2153 = vadd.f32 %v1976, %v2105
          %v2154 = vadd.f32 %v1983, %v2098
          %v2155 = vadd.f32 %v1987, %v2099
          %v2156 = vadd.f32 %v1991, %v2100
          %v2157 = vadd.f32 %v1995, %v2101
          %v2158 = vadd.f32 %v1999, %v2102
          %v2159 = vadd.f32 %v2003, %v2103
          %v2160 = vadd.f32 %v2007, %v2104
          %v2161 = vadd.f32 %v2011, %v2105
          %v2162 = vadd.f32 %v2018, %v2098
          %v2163 = vadd.f32 %v2022, %v2099
          %v2164 = vadd.f32 %v2026, %v2100
          %v2165 = vadd.f32 %v2030, %v2101
          %v2166 = vadd.f32 %v2034, %v2102
          %v2167 = vadd.f32 %v2038, %v2103
          %v2168 = vadd.f32 %v2042, %v2104
          %v2169 = vadd.f32 %v2046, %v2105
          %v2170 = vadd.f32 %v2053, %v2098
          %v2171 = vadd.f32 %v2057, %v2099
          %v2172 = vadd.f32 %v2061, %v2100
          %v2173 = vadd.f32 %v2065, %v2101
          %v2174 = vadd.f32 %v2069, %v2102
          %v2175 = vadd.f32 %v2073, %v2103
          %v2176 = vadd.f32 %v2077, %v2104
          %v2177 = vadd.f32 %v2081, %v2105
          %v2178 = vmul.f32 %v2114, 0.5
          %v2179 = vmul.f32 %v2115, 0.5
          %v2180 = vmul.f32 %v2116, 0.5
          %v2181 = vmul.f32 %v2117, 0.5
          %v2182 = vmul.f32 %v2122, 0.5
          %v2183 = vmul.f32 %v2123, 0.5
          %v2184 = vmul.f32 %v2124, 0.5
          %v2185 = vmul.f32 %v2125, 0.5
          %v2186 = vmul.f32 %v2130, 0.5
          %v2187 = vmul.f32 %v2131, 0.5
          %v2188 = vmul.f32 %v2132, 0.5
          %v2189 = vmul.f32 %v2133, 0.5
          %v2190 = vmul.f32 %v2138, 0.5
          %v2191 = vmul.f32 %v2139, 0.5
          %v2192 = vmul.f32 %v2140, 0.5
          %v2193 = vmul.f32 %v2141, 0.5
          %v2194 = vmul.f32 %v2146, 0.5
          %v2195 = vmul.f32 %v2147, 0.5
          %v2196 = vmul.f32 %v2148, 0.5
          %v2197 = vmul.f32 %v2149, 0.5
          %v2198 = vmul.f32 %v2154, 0.5
          %v2199 = vmul.f32 %v2155, 0.5
          %v2200 = vmul.f32 %v2156, 0.5
          %v2201 = vmul.f32 %v2157, 0.5
          %v2202 = vmul.f32 %v2162, 0.5
          %v2203 = vmul.f32 %v2163, 0.5
          %v2204 = vmul.f32 %v2164, 0.5
          %v2205 = vmul.f32 %v2165, 0.5
          %v2206 = vmul.f32 %v2170, 0.5
          %v2207 = vmul.f32 %v2171, 0.5
          %v2208 = vmul.f32 %v2172, 0.5
          %v2209 = vmul.f32 %v2173, 0.5
          %v2210 = vtanh.pop %v2178
          %v2211 = vtanh.pop %v2179
          %v2212 = vtanh.pop %v2180
          %v2213 = vtanh.pop %v2181
          %v2214 = vtanh.pop %v2182
          %v2215 = vtanh.pop %v2183
          %v2216 = vtanh.pop %v2184
          %v2217 = vtanh.pop %v2185
          %v2218 = vtanh.pop %v2186
          %v2219 = vtanh.pop %v2187
          %v2220 = vtanh.pop %v2188
          %v2221 = vtanh.pop %v2189
          %v2222 = vtanh.pop %v2190
          %v2223 = vtanh.pop %v2191
          %v2224 = vtanh.pop %v2192
          %v2225 = vtanh.pop %v2193
          %v2226 = vtanh.pop %v2194
          %v2227 = vtanh.pop %v2195
          %v2228 = vtanh.pop %v2196
          %v2229 = vtanh.pop %v2197
          %v2230 = vtanh.pop %v2198
          %v2231 = vtanh.pop %v2199
          %v2232 = vtanh.pop %v2200
          %v2233 = vtanh.pop %v2201
          %v2234 = vtanh.pop %v2202
          %v2235 = vtanh.pop %v2203
          %v2236 = vtanh.pop %v2204
          %v2237 = vtanh.pop %v2205
          %v2238 = vtanh.pop %v2206
          %v2239 = vtanh.pop %v2207
          %v2240 = vtanh.pop %v2208
          %v2241 = vtanh.pop %v2209
          %v2242 = vmul.f32 %v2210, 0.5
          %v2243 = vmul.f32 %v2211, 0.5
          %v2244 = vmul.f32 %v2212, 0.5
          %v2245 = vmul.f32 %v2213, 0.5
          %v2246 = vmul.f32 %v2214, 0.5
          %v2247 = vmul.f32 %v2215, 0.5
          %v2248 = vmul.f32 %v2216, 0.5
          %v2249 = vmul.f32 %v2217, 0.5
          %v2250 = vmul.f32 %v2218, 0.5
          %v2251 = vmul.f32 %v2219, 0.5
          %v2252 = vmul.f32 %v2220, 0.5
          %v2253 = vmul.f32 %v2221, 0.5
          %v2254 = vmul.f32 %v2222, 0.5
          %v2255 = vmul.f32 %v2223, 0.5
          %v2256 = vmul.f32 %v2224, 0.5
          %v2257 = vmul.f32 %v2225, 0.5
          %v2258 = vmul.f32 %v2226, 0.5
          %v2259 = vmul.f32 %v2227, 0.5
          %v2260 = vmul.f32 %v2228, 0.5
          %v2261 = vmul.f32 %v2229, 0.5
          %v2262 = vmul.f32 %v2230, 0.5
          %v2263 = vmul.f32 %v2231, 0.5
          %v2264 = vmul.f32 %v2232, 0.5
          %v2265 = vmul.f32 %v2233, 0.5
          %v2266 = vmul.f32 %v2234, 0.5
          %v2267 = vmul.f32 %v2235, 0.5
          %v2268 = vmul.f32 %v2236, 0.5
          %v2269 = vmul.f32 %v2237, 0.5
          %v2270 = vmul.f32 %v2238, 0.5
          %v2271 = vmul.f32 %v2239, 0.5
          %v2272 = vmul.f32 %v2240, 0.5
          %v2273 = vmul.f32 %v2241, 0.5
          %v2274 = vadd.f32 %v2242, 0.5
          %v2275 = vadd.f32 %v2243, 0.5
          %v2276 = vadd.f32 %v2244, 0.5
          %v2277 = vadd.f32 %v2245, 0.5
          %v2278 = vadd.f32 %v2246, 0.5
          %v2279 = vadd.f32 %v2247, 0.5
          %v2280 = vadd.f32 %v2248, 0.5
          %v2281 = vadd.f32 %v2249, 0.5
          %v2282 = vadd.f32 %v2250, 0.5
          %v2283 = vadd.f32 %v2251, 0.5
          %v2284 = vadd.f32 %v2252, 0.5
          %v2285 = vadd.f32 %v2253, 0.5
          %v2286 = vadd.f32 %v2254, 0.5
          %v2287 = vadd.f32 %v2255, 0.5
          %v2288 = vadd.f32 %v2256, 0.5
          %v2289 = vadd.f32 %v2257, 0.5
          %v2290 = vadd.f32 %v2258, 0.5
          %v2291 = vadd.f32 %v2259, 0.5
          %v2292 = vadd.f32 %v2260, 0.5
          %v2293 = vadd.f32 %v2261, 0.5
          %v2294 = vadd.f32 %v2262, 0.5
          %v2295 = vadd.f32 %v2263, 0.5
          %v2296 = vadd.f32 %v2264, 0.5
          %v2297 = vadd.f32 %v2265, 0.5
          %v2298 = vadd.f32 %v2266, 0.5
          %v2299 = vadd.f32 %v2267, 0.5
          %v2300 = vadd.f32 %v2268, 0.5
          %v2301 = vadd.f32 %v2269, 0.5
          %v2302 = vadd.f32 %v2270, 0.5
          %v2303 = vadd.f32 %v2271, 0.5
          %v2304 = vadd.f32 %v2272, 0.5
          %v2305 = vadd.f32 %v2273, 0.5
          %vm2306 = vcmp.gt.f32.partialorder %v2118, 20.0
          %vm2307 = vcmp.gt.f32.partialorder %v2119, 20.0
          %vm2308 = vcmp.gt.f32.partialorder %v2120, 20.0
          %vm2309 = vcmp.gt.f32.partialorder %v2121, 20.0
          %vm2310 = vcmp.gt.f32.partialorder %v2126, 20.0
          %vm2311 = vcmp.gt.f32.partialorder %v2127, 20.0
          %vm2312 = vcmp.gt.f32.partialorder %v2128, 20.0
          %vm2313 = vcmp.gt.f32.partialorder %v2129, 20.0
          %vm2314 = vcmp.gt.f32.partialorder %v2134, 20.0
          %vm2315 = vcmp.gt.f32.partialorder %v2135, 20.0
          %vm2316 = vcmp.gt.f32.partialorder %v2136, 20.0
          %vm2317 = vcmp.gt.f32.partialorder %v2137, 20.0
          %vm2318 = vcmp.gt.f32.partialorder %v2142, 20.0
          %vm2319 = vcmp.gt.f32.partialorder %v2143, 20.0
          %vm2320 = vcmp.gt.f32.partialorder %v2144, 20.0
          %vm2321 = vcmp.gt.f32.partialorder %v2145, 20.0
          %vm2322 = vcmp.gt.f32.partialorder %v2150, 20.0
          %vm2323 = vcmp.gt.f32.partialorder %v2151, 20.0
          %vm2324 = vcmp.gt.f32.partialorder %v2152, 20.0
          %vm2325 = vcmp.gt.f32.partialorder %v2153, 20.0
          %vm2326 = vcmp.gt.f32.partialorder %v2158, 20.0
          %vm2327 = vcmp.gt.f32.partialorder %v2159, 20.0
          %vm2328 = vcmp.gt.f32.partialorder %v2160, 20.0
          %vm2329 = vcmp.gt.f32.partialorder %v2161, 20.0
          %vm2330 = vcmp.gt.f32.partialorder %v2166, 20.0
          %vm2331 = vcmp.gt.f32.partialorder %v2167, 20.0
          %vm2332 = vcmp.gt.f32.partialorder %v2168, 20.0
          %vm2333 = vcmp.gt.f32.partialorder %v2169, 20.0
          %vm2334 = vcmp.gt.f32.partialorder %v2174, 20.0
          %vm2335 = vcmp.gt.f32.partialorder %v2175, 20.0
          %vm2336 = vcmp.gt.f32.partialorder %v2176, 20.0
          %vm2337 = vcmp.gt.f32.partialorder %v2177, 20.0
          %v2338 = vmin.f32 %v2118, 20.0
          %v2339 = vmin.f32 %v2119, 20.0
          %v2340 = vmin.f32 %v2120, 20.0
          %v2341 = vmin.f32 %v2121, 20.0
          %v2342 = vmin.f32 %v2126, 20.0
          %v2343 = vmin.f32 %v2127, 20.0
          %v2344 = vmin.f32 %v2128, 20.0
          %v2345 = vmin.f32 %v2129, 20.0
          %v2346 = vmin.f32 %v2134, 20.0
          %v2347 = vmin.f32 %v2135, 20.0
          %v2348 = vmin.f32 %v2136, 20.0
          %v2349 = vmin.f32 %v2137, 20.0
          %v2350 = vmin.f32 %v2142, 20.0
          %v2351 = vmin.f32 %v2143, 20.0
          %v2352 = vmin.f32 %v2144, 20.0
          %v2353 = vmin.f32 %v2145, 20.0
          %v2354 = vmin.f32 %v2150, 20.0
          %v2355 = vmin.f32 %v2151, 20.0
          %v2356 = vmin.f32 %v2152, 20.0
          %v2357 = vmin.f32 %v2153, 20.0
          %v2358 = vmin.f32 %v2158, 20.0
          %v2359 = vmin.f32 %v2159, 20.0
          %v2360 = vmin.f32 %v2160, 20.0
          %v2361 = vmin.f32 %v2161, 20.0
          %v2362 = vmin.f32 %v2166, 20.0
          %v2363 = vmin.f32 %v2167, 20.0
          %v2364 = vmin.f32 %v2168, 20.0
          %v2365 = vmin.f32 %v2169, 20.0
          %v2366 = vmin.f32 %v2174, 20.0
          %v2367 = vmin.f32 %v2175, 20.0
          %v2368 = vmin.f32 %v2176, 20.0
          %v2369 = vmin.f32 %v2177, 20.0
          %v2370 = vmul.f32 %v2338, 1.442695
          %v2371 = vpow.pop %v2370
          %v2372 = vmul.f32 %v2339, 1.442695
          %v2373 = vpow.pop %v2372
          %v2374 = vmul.f32 %v2340, 1.442695
          %v2375 = vpow.pop %v2374
          %v2376 = vmul.f32 %v2341, 1.442695
          %v2377 = vpow.pop %v2376
          %v2378 = vmul.f32 %v2342, 1.442695
          %v2379 = vpow.pop %v2378
          %v2380 = vmul.f32 %v2343, 1.442695
          %v2381 = vpow.pop %v2380
          %v2382 = vmul.f32 %v2344, 1.442695
          %v2383 = vpow.pop %v2382
          %v2384 = vmul.f32 %v2345, 1.442695
          %v2385 = vpow.pop %v2384
          %v2386 = vmul.f32 %v2346, 1.442695
          %v2387 = vpow.pop %v2386
          %v2388 = vmul.f32 %v2347, 1.442695
          %v2389 = vpow.pop %v2388
          %v2390 = vmul.f32 %v2348, 1.442695
          %v2391 = vpow.pop %v2390
          %v2392 = vmul.f32 %v2349, 1.442695
          %v2393 = vpow.pop %v2392
          %v2394 = vmul.f32 %v2350, 1.442695
          %v2395 = vpow.pop %v2394
          %v2396 = vmul.f32 %v2351, 1.442695
          %v2397 = vpow.pop %v2396
          %v2398 = vmul.f32 %v2352, 1.442695
          %v2399 = vpow.pop %v2398
          %v2400 = vmul.f32 %v2353, 1.442695
          %v2401 = vpow.pop %v2400
          %v2402 = vmul.f32 %v2354, 1.442695
          %v2403 = vpow.pop %v2402
          %v2404 = vmul.f32 %v2355, 1.442695
          %v2405 = vpow.pop %v2404
          %v2406 = vmul.f32 %v2356, 1.442695
          %v2407 = vpow.pop %v2406
          %v2408 = vmul.f32 %v2357, 1.442695
          %v2409 = vpow.pop %v2408
          %v2410 = vmul.f32 %v2358, 1.442695
          %v2411 = vpow.pop %v2410
          %v2412 = vmul.f32 %v2359, 1.442695
          %v2413 = vpow.pop %v2412
          %v2414 = vmul.f32 %v2360, 1.442695
          %v2415 = vpow.pop %v2414
          %v2416 = vmul.f32 %v2361, 1.442695
          %v2417 = vpow.pop %v2416
          %v2418 = vmul.f32 %v2362, 1.442695
          %v2419 = vpow.pop %v2418
          %v2420 = vmul.f32 %v2363, 1.442695
          %v2421 = vpow.pop %v2420
          %v2422 = vmul.f32 %v2364, 1.442695
          %v2423 = vpow.pop %v2422
          %v2424 = vmul.f32 %v2365, 1.442695
          %v2425 = vpow.pop %v2424
          %v2426 = vmul.f32 %v2366, 1.442695
          %v2427 = vpow.pop %v2426
          %v2428 = vmul.f32 %v2367, 1.442695
          %v2429 = vpow.pop %v2428
          %v2430 = vmul.f32 %v2368, 1.442695
          %v2431 = vpow.pop %v2430
          %v2432 = vmul.f32 %v2369, 1.442695
          %v2433 = vpow.pop %v2432
          %v2434 = vadd.f32 %v2371, 1.0
          %v2435 = vadd.f32 %v2373, 1.0
          %v2436 = vadd.f32 %v2375, 1.0
          %v2437 = vadd.f32 %v2377, 1.0
          %v2438 = vadd.f32 %v2379, 1.0
          %v2439 = vadd.f32 %v2381, 1.0
          %v2440 = vadd.f32 %v2383, 1.0
          %v2441 = vadd.f32 %v2385, 1.0
          %v2442 = vadd.f32 %v2387, 1.0
          %v2443 = vadd.f32 %v2389, 1.0
          %v2444 = vadd.f32 %v2391, 1.0
          %v2445 = vadd.f32 %v2393, 1.0
          %v2446 = vadd.f32 %v2395, 1.0
          %v2447 = vadd.f32 %v2397, 1.0
          %v2448 = vadd.f32 %v2399, 1.0
          %v2449 = vadd.f32 %v2401, 1.0
          %v2450 = vadd.f32 %v2403, 1.0
          %v2451 = vadd.f32 %v2405, 1.0
          %v2452 = vadd.f32 %v2407, 1.0
          %v2453 = vadd.f32 %v2409, 1.0
          %v2454 = vadd.f32 %v2411, 1.0
          %v2455 = vadd.f32 %v2413, 1.0
          %v2456 = vadd.f32 %v2415, 1.0
          %v2457 = vadd.f32 %v2417, 1.0
          %v2458 = vadd.f32 %v2419, 1.0
          %v2459 = vadd.f32 %v2421, 1.0
          %v2460 = vadd.f32 %v2423, 1.0
          %v2461 = vadd.f32 %v2425, 1.0
          %v2462 = vadd.f32 %v2427, 1.0
          %v2463 = vadd.f32 %v2429, 1.0
          %v2464 = vadd.f32 %v2431, 1.0
          %v2465 = vadd.f32 %v2433, 1.0
          %v2466 = vlog2.pop %v2434
          %v2467 = vmul.f32 %v2466, 0.6931472
          %v2468 = vlog2.pop %v2435
          %v2469 = vmul.f32 %v2468, 0.6931472
          %v2470 = vlog2.pop %v2436
          %v2471 = vmul.f32 %v2470, 0.6931472
          %v2472 = vlog2.pop %v2437
          %v2473 = vmul.f32 %v2472, 0.6931472
          %v2474 = vlog2.pop %v2438
          %v2475 = vmul.f32 %v2474, 0.6931472
          %v2476 = vlog2.pop %v2439
          %v2477 = vmul.f32 %v2476, 0.6931472
          %v2478 = vlog2.pop %v2440
          %v2479 = vmul.f32 %v2478, 0.6931472
          %v2480 = vlog2.pop %v2441
          %v2481 = vmul.f32 %v2480, 0.6931472
          %v2482 = vlog2.pop %v2442
          %v2483 = vmul.f32 %v2482, 0.6931472
          %v2484 = vlog2.pop %v2443
          %v2485 = vmul.f32 %v2484, 0.6931472
          %v2486 = vlog2.pop %v2444
          %v2487 = vmul.f32 %v2486, 0.6931472
          %v2488 = vlog2.pop %v2445
          %v2489 = vmul.f32 %v2488, 0.6931472
          %v2490 = vlog2.pop %v2446
          %v2491 = vmul.f32 %v2490, 0.6931472
          %v2492 = vlog2.pop %v2447
          %v2493 = vmul.f32 %v2492, 0.6931472
          %v2494 = vlog2.pop %v2448
          %v2495 = vmul.f32 %v2494, 0.6931472
          %v2496 = vlog2.pop %v2449
          %v2497 = vmul.f32 %v2496, 0.6931472
          %v2498 = vlog2.pop %v2450
          %v2499 = vmul.f32 %v2498, 0.6931472
          %v2500 = vlog2.pop %v2451
          %v2501 = vmul.f32 %v2500, 0.6931472
          %v2502 = vlog2.pop %v2452
          %v2503 = vmul.f32 %v2502, 0.6931472
          %v2504 = vlog2.pop %v2453
          %v2505 = vmul.f32 %v2504, 0.6931472
          %v2506 = vlog2.pop %v2454
          %v2507 = vmul.f32 %v2506, 0.6931472
          %v2508 = vlog2.pop %v2455
          %v2509 = vmul.f32 %v2508, 0.6931472
          %v2510 = vlog2.pop %v2456
          %v2511 = vmul.f32 %v2510, 0.6931472
          %v2512 = vlog2.pop %v2457
          %v2513 = vmul.f32 %v2512, 0.6931472
          %v2514 = vlog2.pop %v2458
          %v2515 = vmul.f32 %v2514, 0.6931472
          %v2516 = vlog2.pop %v2459
          %v2517 = vmul.f32 %v2516, 0.6931472
          %v2518 = vlog2.pop %v2460
          %v2519 = vmul.f32 %v2518, 0.6931472
          %v2520 = vlog2.pop %v2461
          %v2521 = vmul.f32 %v2520, 0.6931472
          %v2522 = vlog2.pop %v2462
          %v2523 = vmul.f32 %v2522, 0.6931472
          %v2524 = vlog2.pop %v2463
          %v2525 = vmul.f32 %v2524, 0.6931472
          %v2526 = vlog2.pop %v2464
          %v2527 = vmul.f32 %v2526, 0.6931472
          %v2528 = vlog2.pop %v2465
          %v2529 = vmul.f32 %v2528, 0.6931472
          %v2530 = vsel %vm2306, %v2118, %v2467
          %v2531 = vsel %vm2307, %v2119, %v2469
          %v2532 = vsel %vm2308, %v2120, %v2471
          %v2533 = vsel %vm2309, %v2121, %v2473
          %v2534 = vsel %vm2310, %v2126, %v2475
          %v2535 = vsel %vm2311, %v2127, %v2477
          %v2536 = vsel %vm2312, %v2128, %v2479
          %v2537 = vsel %vm2313, %v2129, %v2481
          %v2538 = vsel %vm2314, %v2134, %v2483
          %v2539 = vsel %vm2315, %v2135, %v2485
          %v2540 = vsel %vm2316, %v2136, %v2487
          %v2541 = vsel %vm2317, %v2137, %v2489
          %v2542 = vsel %vm2318, %v2142, %v2491
          %v2543 = vsel %vm2319, %v2143, %v2493
          %v2544 = vsel %vm2320, %v2144, %v2495
          %v2545 = vsel %vm2321, %v2145, %v2497
          %v2546 = vsel %vm2322, %v2150, %v2499
          %v2547 = vsel %vm2323, %v2151, %v2501
          %v2548 = vsel %vm2324, %v2152, %v2503
          %v2549 = vsel %vm2325, %v2153, %v2505
          %v2550 = vsel %vm2326, %v2158, %v2507
          %v2551 = vsel %vm2327, %v2159, %v2509
          %v2552 = vsel %vm2328, %v2160, %v2511
          %v2553 = vsel %vm2329, %v2161, %v2513
          %v2554 = vsel %vm2330, %v2166, %v2515
          %v2555 = vsel %vm2331, %v2167, %v2517
          %v2556 = vsel %vm2332, %v2168, %v2519
          %v2557 = vsel %vm2333, %v2169, %v2521
          %v2558 = vsel %vm2334, %v2174, %v2523
          %v2559 = vsel %vm2335, %v2175, %v2525
          %v2560 = vsel %vm2336, %v2176, %v2527
          %v2561 = vsel %vm2337, %v2177, %v2529
          %v2562 = vlaneseq
          %v2563 = vshrl.u32 %v2562, 7
          %v2564 = vlaneseq
          %v2565 = vand.u32 %v2564, 127
          %v2566 = vstv %s1794
          %v2567 = vadd.s32 %v2565, %v2566
          %v2568 = vstv %s1793
          %vm2569 = vcmp.lt.s32.totalorder %v2563, %v2568
          %vm2570 = vcmp.lt.s32.totalorder %v2567, %v2568
          %vm2571 = vmand %vm2569, %vm2570
          %vm2572 = vcmp.ne.s32.totalorder %v2563, %v2567
          %vm2573 = vmand %vm2571, %vm2572
          %v2574 = vsel %vm2573, 1, 0
          %v2575 = vcvt.s32.f32 %v2574
          %v2576 = vld [vmem:[#allocation4] sm:$0xff]
          %v2577 = vmul.f32 %v2274, %v2530
          %v2578 = vmul.f32 %v2275, %v2531
          %v2579 = vmul.f32 %v2276, %v2532
          %v2580 = vmul.f32 %v2277, %v2533
          %v2581 = vmul.f32 %v2278, %v2534
          %v2582 = vmul.f32 %v2279, %v2535
          %v2583 = vmul.f32 %v2280, %v2536
          %v2584 = vmul.f32 %v2281, %v2537
          %v2585 = vmul.f32 %v2282, %v2538
          %v2586 = vmul.f32 %v2283, %v2539
          %v2587 = vmul.f32 %v2284, %v2540
          %v2588 = vmul.f32 %v2285, %v2541
          %v2589 = vmul.f32 %v2286, %v2542
          %v2590 = vmul.f32 %v2287, %v2543
          %v2591 = vmul.f32 %v2288, %v2544
          %v2592 = vmul.f32 %v2289, %v2545
          %v2593 = vmul.f32 %v2290, %v2546
          %v2594 = vmul.f32 %v2291, %v2547
          %v2595 = vmul.f32 %v2292, %v2548
          %v2596 = vmul.f32 %v2293, %v2549
          %v2597 = vmul.f32 %v2294, %v2550
          %v2598 = vmul.f32 %v2295, %v2551
          %v2599 = vmul.f32 %v2296, %v2552
          %v2600 = vmul.f32 %v2297, %v2553
          %v2601 = vmul.f32 %v2298, %v2554
          %v2602 = vmul.f32 %v2299, %v2555
          %v2603 = vmul.f32 %v2300, %v2556
          %v2604 = vmul.f32 %v2301, %v2557
          %v2605 = vmul.f32 %v2302, %v2558
          %v2606 = vmul.f32 %v2303, %v2559
          %v2607 = vmul.f32 %v2304, %v2560
          %v2608 = vmul.f32 %v2305, %v2561
          %v2610 = vcombine.high %v2575, %v2575
          %v2612 = vunpack.c.l.s4 1966171168
          %v2613 = vunpack.c.0.s8 %v2612
          %v2614 = vlaneseq
          %v2615 = vshrl.u32 %v2614, 7
          %v2616 = vsub.s32 %v2613, %v2615
          %v2617 = vrot.slane %v2575, %v2616
          %v2619 = vunpack.c.l.s4 1966171168
          %v2620 = vunpack.c.0.s8 %v2619
          %v2621 = vlaneseq
          %v2622 = vshrl.u32 %v2621, 7
          %v2623 = vsub.s32 %v2620, %v2622
          %v2624 = vrot.slane %v2610, %v2623
          %v2625 = vcombine.high %v2617, %v2617
          %v2626 = vcombine.high %v2624, %v2624
          %v2628 = vunpack.c.l.s4 1966171168
          %v2629 = vunpack.c.0.s8 %v2628
          %v2630 = vlaneseq
          %v2631 = vshrl.u32 %v2630, 7
          %v2632 = vsub.s32 %v2629, %v2631
          %v2633 = vrot.slane %v2617, %v2632
          %v2635 = vunpack.c.l.s4 1966171168
          %v2636 = vunpack.c.0.s8 %v2635
          %v2637 = vlaneseq
          %v2638 = vshrl.u32 %v2637, 7
          %v2639 = vsub.s32 %v2636, %v2638
          %v2640 = vrot.slane %v2624, %v2639
          %v2642 = vunpack.c.l.s4 1966171168
          %v2643 = vunpack.c.0.s8 %v2642
          %v2644 = vlaneseq
          %v2645 = vshrl.u32 %v2644, 7
          %v2646 = vsub.s32 %v2643, %v2645
          %v2647 = vrot.slane %v2625, %v2646
          %v2649 = vunpack.c.l.s4 1966171168
          %v2650 = vunpack.c.0.s8 %v2649
          %v2651 = vlaneseq
          %v2652 = vshrl.u32 %v2651, 7
          %v2653 = vsub.s32 %v2650, %v2652
          %v2654 = vrot.slane %v2626, %v2653
          %v2655 = vcombine.high %v2633, %v2633
          %v2656 = vcombine.high %v2640, %v2640
          %v2657 = vcombine.high %v2647, %v2647
          %v2658 = vcombine.high %v2654, %v2654
          %v2659 = vlaneseq
          %v2660 = vshrl.u32 %v2659, 7
          %v2661 = vsub.s32 0, %v2660
          %v2662 = vrot.slane %v2633, %v2661
          %v2663 = vlaneseq
          %v2664 = vshrl.u32 %v2663, 7
          %v2665 = vsub.s32 0, %v2664
          %v2666 = vrot.slane %v2647, %v2665
          %v2667 = vlaneseq
          %v2668 = vshrl.u32 %v2667, 7
          %v2669 = vsub.s32 0, %v2668
          %v2670 = vrot.slane %v2655, %v2669
          %v2671 = vlaneseq
          %v2672 = vshrl.u32 %v2671, 7
          %v2673 = vsub.s32 0, %v2672
          %v2674 = vrot.slane %v2657, %v2673
          %v2675 = vlaneseq
          %v2676 = vshrl.u32 %v2675, 7
          %v2677 = vsub.s32 0, %v2676
          %v2678 = vrot.slane %v2640, %v2677
          %v2679 = vlaneseq
          %v2680 = vshrl.u32 %v2679, 7
          %v2681 = vsub.s32 0, %v2680
          %v2682 = vrot.slane %v2654, %v2681
          %v2683 = vlaneseq
          %v2684 = vshrl.u32 %v2683, 7
          %v2685 = vsub.s32 0, %v2684
          %v2686 = vrot.slane %v2656, %v2685
          %v2687 = vlaneseq
          %v2688 = vshrl.u32 %v2687, 7
          %v2689 = vsub.s32 0, %v2688
          %v2690 = vrot.slane %v2658, %v2689
          %v2699 = vmul.f32 %v2577, %v2662
          %v2700 = vmul.f32 %v2578, %v2662
          %v2701 = vmul.f32 %v2579, %v2662
          %v2702 = vmul.f32 %v2580, %v2662
          %v2703 = vmul.f32 %v2581, %v2666
          %v2704 = vmul.f32 %v2582, %v2666
          %v2705 = vmul.f32 %v2583, %v2666
          %v2706 = vmul.f32 %v2584, %v2666
          %v2707 = vmul.f32 %v2585, %v2670
          %v2708 = vmul.f32 %v2586, %v2670
          %v2709 = vmul.f32 %v2587, %v2670
          %v2710 = vmul.f32 %v2588, %v2670
          %v2711 = vmul.f32 %v2589, %v2674
          %v2712 = vmul.f32 %v2590, %v2674
          %v2713 = vmul.f32 %v2591, %v2674
          %v2714 = vmul.f32 %v2592, %v2674
          %v2715 = vmul.f32 %v2593, %v2678
          %v2716 = vmul.f32 %v2594, %v2678
          %v2717 = vmul.f32 %v2595, %v2678
          %v2718 = vmul.f32 %v2596, %v2678
          %v2719 = vmul.f32 %v2597, %v2682
          %v2720 = vmul.f32 %v2598, %v2682
          %v2721 = vmul.f32 %v2599, %v2682
          %v2722 = vmul.f32 %v2600, %v2682
          %v2723 = vmul.f32 %v2601, %v2686
          %v2724 = vmul.f32 %v2602, %v2686
          %v2725 = vmul.f32 %v2603, %v2686
          %v2726 = vmul.f32 %v2604, %v2686
          %v2727 = vmul.f32 %v2605, %v2690
          %v2728 = vmul.f32 %v2606, %v2690
          %v2729 = vmul.f32 %v2607, %v2690
          %v2730 = vmul.f32 %v2608, %v2690
          %vm2731 = vcmask 64512
          %v2732 = vsel %vm2731, %v2699, 0.0
          %2733 = vadd.xlane.f32.xlu0 %v2732
          %v2734 = vpop.xlane.xlu0 %2733
          %v2735 = vsel %vm2731, %v2700, 0.0
          %2736 = vadd.xlane.f32.xlu0 %v2735
          %v2737 = vpop.xlane.xlu0 %2736
          %v2738 = vsel %vm2731, %v2701, 0.0
          %2739 = vadd.xlane.f32.xlu0 %v2738
          %v2740 = vpop.xlane.xlu0 %2739
          %v2741 = vsel %vm2731, %v2702, 0.0
          %2742 = vadd.xlane.f32.xlu0 %v2741
          %v2743 = vpop.xlane.xlu0 %2742
          %v2744 = vsel %vm2731, %v2703, 0.0
          %2745 = vadd.xlane.f32.xlu0 %v2744
          %v2746 = vpop.xlane.xlu0 %2745
          %v2747 = vsel %vm2731, %v2704, 0.0
          %2748 = vadd.xlane.f32.xlu0 %v2747
          %v2749 = vpop.xlane.xlu0 %2748
          %v2750 = vsel %vm2731, %v2705, 0.0
          %2751 = vadd.xlane.f32.xlu0 %v2750
          %v2752 = vpop.xlane.xlu0 %2751
          %v2753 = vsel %vm2731, %v2706, 0.0
          %2754 = vadd.xlane.f32.xlu0 %v2753
          %v2755 = vpop.xlane.xlu0 %2754
          %v2756 = vsel %vm2731, %v2707, 0.0
          %2757 = vadd.xlane.f32.xlu0 %v2756
          %v2758 = vpop.xlane.xlu0 %2757
          %v2759 = vsel %vm2731, %v2708, 0.0
          %2760 = vadd.xlane.f32.xlu0 %v2759
          %v2761 = vpop.xlane.xlu0 %2760
          %v2762 = vsel %vm2731, %v2709, 0.0
          %2763 = vadd.xlane.f32.xlu0 %v2762
          %v2764 = vpop.xlane.xlu0 %2763
          %v2765 = vsel %vm2731, %v2710, 0.0
          %2766 = vadd.xlane.f32.xlu0 %v2765
          %v2767 = vpop.xlane.xlu0 %2766
          %v2768 = vsel %vm2731, %v2711, 0.0
          %2769 = vadd.xlane.f32.xlu0 %v2768
          %v2770 = vpop.xlane.xlu0 %2769
          %v2771 = vsel %vm2731, %v2712, 0.0
          %2772 = vadd.xlane.f32.xlu0 %v2771
          %v2773 = vpop.xlane.xlu0 %2772
          %v2774 = vsel %vm2731, %v2713, 0.0
          %2775 = vadd.xlane.f32.xlu0 %v2774
          %v2776 = vpop.xlane.xlu0 %2775
          %v2777 = vsel %vm2731, %v2714, 0.0
          %2778 = vadd.xlane.f32.xlu0 %v2777
          %v2779 = vpop.xlane.xlu0 %2778
          %v2780 = vsel %vm2731, %v2715, 0.0
          %2781 = vadd.xlane.f32.xlu0 %v2780
          %v2782 = vpop.xlane.xlu0 %2781
          %v2783 = vsel %vm2731, %v2716, 0.0
          %2784 = vadd.xlane.f32.xlu0 %v2783
          %v2785 = vpop.xlane.xlu0 %2784
          %v2786 = vsel %vm2731, %v2717, 0.0
          %2787 = vadd.xlane.f32.xlu0 %v2786
          %v2788 = vpop.xlane.xlu0 %2787
          %v2789 = vsel %vm2731, %v2718, 0.0
          %2790 = vadd.xlane.f32.xlu0 %v2789
          %v2791 = vpop.xlane.xlu0 %2790
          %v2792 = vsel %vm2731, %v2719, 0.0
          %2793 = vadd.xlane.f32.xlu0 %v2792
          %v2794 = vpop.xlane.xlu0 %2793
          %v2795 = vsel %vm2731, %v2720, 0.0
          %2796 = vadd.xlane.f32.xlu0 %v2795
          %v2797 = vpop.xlane.xlu0 %2796
          %v2798 = vsel %vm2731, %v2721, 0.0
          %2799 = vadd.xlane.f32.xlu0 %v2798
          %v2800 = vpop.xlane.xlu0 %2799
          %v2801 = vsel %vm2731, %v2722, 0.0
          %2802 = vadd.xlane.f32.xlu0 %v2801
          %v2803 = vpop.xlane.xlu0 %2802
          %v2804 = vsel %vm2731, %v2723, 0.0
          %2805 = vadd.xlane.f32.xlu0 %v2804
          %v2806 = vpop.xlane.xlu0 %2805
          %v2807 = vsel %vm2731, %v2724, 0.0
          %2808 = vadd.xlane.f32.xlu0 %v2807
          %v2809 = vpop.xlane.xlu0 %2808
          %v2810 = vsel %vm2731, %v2725, 0.0
          %2811 = vadd.xlane.f32.xlu0 %v2810
          %v2812 = vpop.xlane.xlu0 %2811
          %v2813 = vsel %vm2731, %v2726, 0.0
          %2814 = vadd.xlane.f32.xlu0 %v2813
          %v2815 = vpop.xlane.xlu0 %2814
          %v2816 = vsel %vm2731, %v2727, 0.0
          %2817 = vadd.xlane.f32.xlu0 %v2816
          %v2818 = vpop.xlane.xlu0 %2817
          %v2819 = vsel %vm2731, %v2728, 0.0
          %2820 = vadd.xlane.f32.xlu0 %v2819
          %v2821 = vpop.xlane.xlu0 %2820
          %v2822 = vsel %vm2731, %v2729, 0.0
          %2823 = vadd.xlane.f32.xlu0 %v2822
          %v2824 = vpop.xlane.xlu0 %2823
          %v2825 = vsel %vm2731, %v2730, 0.0
          %2826 = vadd.xlane.f32.xlu0 %v2825
          %v2827 = vpop.xlane.xlu0 %2826
          %v2860 = vlaneseq
          %v2861 = vshrl.u32 %v2860, 7
          %v2862 = vsub.s32 %v2565, %v2861
          %v2863 = vrot.slane %v2734, %v2862
          %v2864 = vadd.s32 %v2565, 4294967288
          %v2865 = vlaneseq
          %v2866 = vshrl.u32 %v2865, 7
          %v2867 = vsub.s32 %v2864, %v2866
          %v2868 = vrot.slane %v2737, %v2867
          %vm2869 = vcmask 130112
          %v2870 = vsel %vm2869, %v2868, %v2863
          %v2871 = vadd.s32 %v2565, 4294967280
          %v2872 = vlaneseq
          %v2873 = vshrl.u32 %v2872, 7
          %v2874 = vsub.s32 %v2871, %v2873
          %v2875 = vrot.slane %v2740, %v2874
          %vm2876 = vcmask 195712
          %v2877 = vsel %vm2876, %v2875, %v2870
          %v2878 = vadd.s32 %v2565, 4294967272
          %v2879 = vlaneseq
          %v2880 = vshrl.u32 %v2879, 7
          %v2881 = vsub.s32 %v2878, %v2880
          %v2882 = vrot.slane %v2743, %v2881
          %vm2883 = vcmask 261312
          %v2884 = vsel %vm2883, %v2882, %v2877
          %v2885 = vlaneseq
          %v2886 = vshrl.u32 %v2885, 7
          %v2887 = vsub.s32 %v2565, %v2886
          %v2888 = vrot.slane %v2746, %v2887
          %v2889 = vlaneseq
          %v2890 = vshrl.u32 %v2889, 7
          %v2891 = vsub.s32 %v2864, %v2890
          %v2892 = vrot.slane %v2749, %v2891
          %v2893 = vsel %vm2869, %v2892, %v2888
          %v2894 = vlaneseq
          %v2895 = vshrl.u32 %v2894, 7
          %v2896 = vsub.s32 %v2871, %v2895
          %v2897 = vrot.slane %v2752, %v2896
          %v2898 = vsel %vm2876, %v2897, %v2893
          %v2899 = vlaneseq
          %v2900 = vshrl.u32 %v2899, 7
          %v2901 = vsub.s32 %v2878, %v2900
          %v2902 = vrot.slane %v2755, %v2901
          %v2903 = vsel %vm2883, %v2902, %v2898
          %v2904 = vlaneseq
          %v2905 = vshrl.u32 %v2904, 7
          %v2906 = vsub.s32 %v2565, %v2905
          %v2907 = vrot.slane %v2758, %v2906
          %v2908 = vlaneseq
          %v2909 = vshrl.u32 %v2908, 7
          %v2910 = vsub.s32 %v2864, %v2909
          %v2911 = vrot.slane %v2761, %v2910
          %v2912 = vsel %vm2869, %v2911, %v2907
          %v2913 = vlaneseq
          %v2914 = vshrl.u32 %v2913, 7
          %v2915 = vsub.s32 %v2871, %v2914
          %v2916 = vrot.slane %v2764, %v2915
          %v2917 = vsel %vm2876, %v2916, %v2912
          %v2918 = vlaneseq
          %v2919 = vshrl.u32 %v2918, 7
          %v2920 = vsub.s32 %v2878, %v2919
          %v2921 = vrot.slane %v2767, %v2920
          %v2922 = vsel %vm2883, %v2921, %v2917
          %v2923 = vlaneseq
          %v2924 = vshrl.u32 %v2923, 7
          %v2925 = vsub.s32 %v2565, %v2924
          %v2926 = vrot.slane %v2770, %v2925
          %v2927 = vlaneseq
          %v2928 = vshrl.u32 %v2927, 7
          %v2929 = vsub.s32 %v2864, %v2928
          %v2930 = vrot.slane %v2773, %v2929
          %v2931 = vsel %vm2869, %v2930, %v2926
          %v2932 = vlaneseq
          %v2933 = vshrl.u32 %v2932, 7
          %v2934 = vsub.s32 %v2871, %v2933
          %v2935 = vrot.slane %v2776, %v2934
          %v2936 = vsel %vm2876, %v2935, %v2931
          %v2937 = vlaneseq
          %v2938 = vshrl.u32 %v2937, 7
          %v2939 = vsub.s32 %v2878, %v2938
          %v2940 = vrot.slane %v2779, %v2939
          %v2941 = vsel %vm2883, %v2940, %v2936
          %v2942 = vlaneseq
          %v2943 = vshrl.u32 %v2942, 7
          %v2944 = vsub.s32 %v2565, %v2943
          %v2945 = vrot.slane %v2782, %v2944
          %v2946 = vlaneseq
          %v2947 = vshrl.u32 %v2946, 7
          %v2948 = vsub.s32 %v2864, %v2947
          %v2949 = vrot.slane %v2785, %v2948
          %v2950 = vsel %vm2869, %v2949, %v2945
          %v2951 = vlaneseq
          %v2952 = vshrl.u32 %v2951, 7
          %v2953 = vsub.s32 %v2871, %v2952
          %v2954 = vrot.slane %v2788, %v2953
          %v2955 = vsel %vm2876, %v2954, %v2950
          %v2956 = vlaneseq
          %v2957 = vshrl.u32 %v2956, 7
          %v2958 = vsub.s32 %v2878, %v2957
          %v2959 = vrot.slane %v2791, %v2958
          %v2960 = vsel %vm2883, %v2959, %v2955
          %v2961 = vlaneseq
          %v2962 = vshrl.u32 %v2961, 7
          %v2963 = vsub.s32 %v2565, %v2962
          %v2964 = vrot.slane %v2794, %v2963
          %v2965 = vlaneseq
          %v2966 = vshrl.u32 %v2965, 7
          %v2967 = vsub.s32 %v2864, %v2966
          %v2968 = vrot.slane %v2797, %v2967
          %v2969 = vsel %vm2869, %v2968, %v2964
          %v2970 = vlaneseq
          %v2971 = vshrl.u32 %v2970, 7
          %v2972 = vsub.s32 %v2871, %v2971
          %v2973 = vrot.slane %v2800, %v2972
          %v2974 = vsel %vm2876, %v2973, %v2969
          %v2975 = vlaneseq
          %v2976 = vshrl.u32 %v2975, 7
          %v2977 = vsub.s32 %v2878, %v2976
          %v2978 = vrot.slane %v2803, %v2977
          %v2979 = vsel %vm2883, %v2978, %v2974
          %v2980 = vlaneseq
          %v2981 = vshrl.u32 %v2980, 7
          %v2982 = vsub.s32 %v2565, %v2981
          %v2983 = vrot.slane %v2806, %v2982
          %v2984 = vlaneseq
          %v2985 = vshrl.u32 %v2984, 7
          %v2986 = vsub.s32 %v2864, %v2985
          %v2987 = vrot.slane %v2809, %v2986
          %v2988 = vsel %vm2869, %v2987, %v2983
          %v2989 = vlaneseq
          %v2990 = vshrl.u32 %v2989, 7
          %v2991 = vsub.s32 %v2871, %v2990
          %v2992 = vrot.slane %v2812, %v2991
          %v2993 = vsel %vm2876, %v2992, %v2988
          %v2994 = vlaneseq
          %v2995 = vshrl.u32 %v2994, 7
          %v2996 = vsub.s32 %v2878, %v2995
          %v2997 = vrot.slane %v2815, %v2996
          %v2998 = vsel %vm2883, %v2997, %v2993
          %v2999 = vlaneseq
          %v3000 = vshrl.u32 %v2999, 7
          %v3001 = vsub.s32 %v2565, %v3000
          %v3002 = vrot.slane %v2818, %v3001
          %v3003 = vlaneseq
          %v3004 = vshrl.u32 %v3003, 7
          %v3005 = vsub.s32 %v2864, %v3004
          %v3006 = vrot.slane %v2821, %v3005
          %v3007 = vsel %vm2869, %v3006, %v3002
          %v3008 = vlaneseq
          %v3009 = vshrl.u32 %v3008, 7
          %v3010 = vsub.s32 %v2871, %v3009
          %v3011 = vrot.slane %v2824, %v3010
          %v3012 = vsel %vm2876, %v3011, %v3007
          %v3013 = vlaneseq
          %v3014 = vshrl.u32 %v3013, 7
          %v3015 = vsub.s32 %v2878, %v3014
          %v3016 = vrot.slane %v2827, %v3015
          %v3017 = vsel %vm2883, %v3016, %v3012
          %vm3018 = vcmask 1041409
          %v3019 = vsel %vm3018, %v2903, %v2884
          %vm3020 = vcmask 1042434
          %v3021 = vsel %vm3020, %v2922, %v3019
          %vm3022 = vcmask 1043459
          %v3023 = vsel %vm3022, %v2941, %v3021
          %vm3024 = vcmask 1044484
          %v3025 = vsel %vm3024, %v2960, %v3023
          %vm3026 = vcmask 1045509
          %v3027 = vsel %vm3026, %v2979, %v3025
          %vm3028 = vcmask 1046534
          %v3029 = vsel %vm3028, %v2998, %v3027
          %vm3030 = vcmask 1047559
          %v3031 = vsel %vm3030, %v3017, %v3029
          %v3033 = vadd.f32 %v2576, %v3031
          %vm3034 = vcmask 261120
          %3035 = vst.msk [vmem:[#allocation4] sm:$0xff] %vm3034, %v3033
        $region60: #{agent_gnn_forward.3} parent=51 // pred_fallthru
          _
        // Predicated region
        $region61: #{agent_gnn_forward.3} parent=51 // pred_check
          %p3036 = pneg %p337
        $region62: #{agent_gnn_forward.3} parent=51 // pred_check_branch
          %3038 = sbr.rel (%p3036) target = $region64
        $region63: #{agent_gnn_forward.3} parent=51 // pred_region
          %v3039 = vld [vmem:[#allocation4] sm:$0xff]
          %v3040 = vld [vmem:[%s7] sm:$0x1]
          %v3042 = vlaneseq
          %v3043 = vshrl.u32 %v3042, 7
          %v3044 = vsub.s32 0, %v3043
          %v3045 = vrot.slane %v3040, %v3044
          %v3047 = vmul.f32 %v3039, %v3045
          %v3048 = vld [vmem:[%s8] sm:$0x1]
          %v3050 = vlaneseq
          %v3051 = vshrl.u32 %v3050, 7
          %v3052 = vsub.s32 0, %v3051
          %v3053 = vrot.slane %v3048, %v3052
          %v3055 = vadd.f32 %v3047, %v3053
          %v3056 = vld [vmem:[%s332] sm:$0xff]
          %v3057 = vadd.f32 %v3055, %v3056
          %v3058 = vmax.f32 %v3057, 0.0
          %vm3059 = vcmask 261120
          %3060 = vst.msk [vmem:[%s328] sm:$0xff] %vm3059, %v3058
        $region64: #{agent_gnn_forward.3} parent=51 // pred_fallthru
          _
        %s3061 = sand.u32 %s227, 1
        %s3062 = scalar_lea.sflag [#allocation8], %s3061
        %s3063 = sand.u32 %s227, 1
        %s3064 = smul.addr %s3063, 8
        %s3065 = scalar_lea.vmem [#allocation7], %s3064
        // Predicated region
        $region65: #{agent_gnn_forward.3} parent=51 // pred_check
          %p3066 = pneg %p237
        $region66: #{agent_gnn_forward.3} parent=51 // pred_check_branch
          %3068 = sbr.rel (%p3066) target = $region68
        $region67: #{agent_gnn_forward.3} parent=51 // pred_region
          %s3070 = ssub.s32 128, 128
          %3071 = vsyncadd %s3062, %s3070
          %s3072 = smul.addr %s33, 128
          %s3073 = scalar_lea.hbm %s9, %s3072
          %s3075 = sshll.u32 %s3065, 4
          %s3076 = int_to_ptr.vmem [resolvable:$true] %s3075
          %3078 = dma.vmem_to_hbm [thread:$0]  %s3076, 128, %s3073, %s3062
        $region68: #{agent_gnn_forward.3} parent=51 // pred_fallthru
          _
      $region52: #{agent_gnn_forward.3} parent=5 // pred_fallthru
        _
      %p3079 = scmp.le.s32.totalorder 2, %s24
      // Predicated region
      $region69: #{agent_gnn_forward.3} parent=5 // pred_check
        %p3080 = pneg %p3079
      $region70: #{agent_gnn_forward.3} parent=5 // pred_check_branch
        %3082 = sbr.rel (%p3080) target = $region72
      $region71: #{agent_gnn_forward.3} parent=5 // pred_region
        %s3083 = ssub.s32 %s24, 2
        // Predicated region
        $region73: #{agent_gnn_forward.3} parent=71 // pred_check
          %p3084 = pneg %p243
        $region74: #{agent_gnn_forward.3} parent=71 // pred_check_branch
          %3086 = sbr.rel (%p3084) target = $region76
        $region75: #{agent_gnn_forward.3} parent=71 // pred_region
          %s3087 = sand.u32 %s228, 1
          %s3088 = scalar_lea.sflag [#allocation8], %s3087
          %s3089 = sand.u32 %s228, 1
          %s3090 = smul.addr %s3089, 8
          %s3091 = scalar_lea.vmem [#allocation7], %s3090
          %3092 = dma.done %s3088, 128
        $region76: #{agent_gnn_forward.3} parent=71 // pred_fallthru
          _
      $region72: #{agent_gnn_forward.3} parent=5 // pred_fallthru
        _
    $region6: #{agent_gnn_forward.3} parent=1 // loop_footer
      %s28 = sadd.s32 1, %s24
    $region7: #{agent_gnn_forward.3} parent=1 // loop_footer_branch
      %23 = sbr.rel target = $region3
    $region8: #{agent_gnn_forward.3} parent=1 // loop_exit
      _
    %3093 = vsyncpa [#allocation8], 1
    %s3094 = scalar_lea.sflag [#allocation8], 1
    %3095 = vsyncpa %s3094, 1

// kernel: agent_gnn_forward.2
$region0: #{agent_gnn_forward.2}
  #allocation0 [shape = 'u32[]', space=smem, size = 0x4, offset = 0x4, fixed_abs, tag = 'smem constant byte address 0x4 - core index']
  #allocation1 [shape = 'u32[144,128]{1,0:T(1,128)}', space=vmem, size = 0x12000, scoped, tag = 'internal scratch']
  #allocation2 [shape = 'f32[8,64]{1,0:T(8,128)}', space=vmem, size = 0x1000, scoped, tag = 'scratch operand']
  #allocation3 [shape = 'f32[8,64]{1,0:T(8,128)}', space=vmem, size = 0x1000, scoped, tag = 'scratch operand']
  #allocation4 [shape = 'f32[8,32]{1,0:T(8,128)}', space=vmem, size = 0x1000, scoped, tag = 'scratch operand']
  #allocation5 [shape = 's32[1]{0}', space=sflag, size = 0x4, scoped, tag = 'scoped memory for agent_gnn_forward.2']
  #allocation6 [shape = 'u8[512]{0}', space=smem, size = 0x200, scoped, tag = 'prefetched SMEM operand 0']
  %s0 = inlined_call_operand.vmem [shape: s32[2], index: 0, kind: input, shape index: {}]
  %s1 = inlined_call_operand.vmem [shape: f32[2,8,32], index: 1, kind: input, shape index: {}]
  %s2 = inlined_call_operand.vmem [shape: f32[2,8,2], index: 2, kind: input, shape index: {}]
  %s3 = inlined_call_operand.hbm [shape: f32[32,64], index: 3, kind: input, shape index: {}]
  %s4 = inlined_call_operand.hbm [shape: f32[32,64], index: 4, kind: input, shape index: {}]
  %s5 = inlined_call_operand.vmem [shape: f32[2,64], index: 5, kind: input, shape index: {}]
  %s6 = inlined_call_operand.vmem [shape: f32[1,64], index: 6, kind: input, shape index: {}]
  %s7 = inlined_call_operand.vmem [shape: f32[1,32], index: 7, kind: input, shape index: {}]
  %s8 = inlined_call_operand.vmem [shape: f32[1,32], index: 8, kind: input, shape index: {}]
  %s9 = inlined_call_operand.vmem [shape: f32[2,8,32], index: 9, kind: output, shape index: {}]
  %s10 = sld [smem:[#allocation0]]
  $region85: #{agent_gnn_forward.2} parent=0
    _
  %s12 = ssub.s32 1, %s10
  %s13 = scalar_select 0, %s12, %s10
  %s14 = sshll.u32 %s0, 4
  %s15 = int_to_ptr.vmem [resolvable:$true] %s14
  %17 = dma.vmem_to_smem %s15, 16, [#allocation6], [#allocation5]
  %18 = dma.done [#allocation5], 16
  %19 = sfence
  $region1: #{agent_gnn_forward.2} parent=0
    #allocation7 [shape = 'u8[16384]{0}', space=vmem, size = 0x4000, scoped, tag = 'input window, operand 3, single buffered']
    #allocation8 [shape = 's32[2]{0}', space=sflag, size = 0x8, scoped, tag = 'scoped memory for agent_gnn_forward.2']
    #allocation9 [shape = 'u8[16384]{0}', space=vmem, size = 0x4000, scoped, tag = 'input window, operand 4, single buffered']
    #allocation10 [shape = 's32[1]{0}', space=sflag, size = 0x4, scoped, tag = 'scoped memory for agent_gnn_forward.2']
    %20 = vsyncpa [#allocation8], 0
    %21 = vsyncpa [#allocation10], 0
    loop: start=0, step=1, limit=4
    $region2: #{agent_gnn_forward.2} parent=1 // loop_pre_header
      _
    $region3: #{agent_gnn_forward.2} parent=1 // loop_header
      %s23 = sphi 0, %s27
      %p24 = scmp.ge.s32.totalorder %s23, 4
      %s30 = sphi 0, %s42
      %s31 = sphi 0, %s38
      %s32 = sphi 0, %s30
      %s33 = sphi 0, %s31
      %s34 = sphi 0, %s32
      %s35 = sphi 0, %s33
      %s45 = sphi 0, %s47
      %s48 = sphi 0, %s45
      %s49 = sphi 0, %s48
      %s65 = sphi 0, %s49
      %s71 = sphi 0, %s73
      %s74 = sphi 0, %s71
      %s75 = sphi 0, %s74
      %s91 = sphi 0, %s75
      %s95 = sphi 0, %s95
      %s97 = sphi 0, %s95
      %s98 = sphi 0, %s97
      %s112 = sphi 0, %s98
      %s116 = sphi 0, %s116
      %s118 = sphi 0, %s116
      %s119 = sphi 0, %s118
      %s133 = sphi 0, %s119
      %s137 = sphi 0, %s137
      %s139 = sphi 0, %s137
      %s140 = sphi 0, %s139
      %s154 = sphi 0, %s140
      %s158 = sphi 0, %s158
      %s160 = sphi 0, %s158
      %s161 = sphi 0, %s160
      %s175 = sphi 0, %s161
      %s179 = sphi 0, %s179
      %s181 = sphi 0, %s179
      %s182 = sphi 0, %s181
      %s196 = sphi 0, %s182
      %s200 = sphi 0, %s200
      %s202 = sphi 0, %s200
      %s203 = sphi 0, %s202
      %s217 = sphi 0, %s203
      %s223 = sphi 0, %s225
      %s226 = sphi 0, %s223
      %s227 = sphi 0, %s226
      %s243 = sphi 0, %s227
    $region4: #{agent_gnn_forward.2} parent=1 // loop_header_branch
      %26 = sbr.rel (%p24) target = $region8
    $region5: #{agent_gnn_forward.2} parent=1 // loop_body
      %s28 = ssub.s32 %s23, 1
      %s29 = ssub.s32 %s23, 2
      %s36 = sadd.s32 1, %s31
      %p37 = scmp.ge.s32.totalorder %s36, 1
      %s38 = scalar_select %p37, 0, %s36
      %s39 = sadd.s32 1, %s30
      %s40 = scalar_select %p37, %s39, %s30
      %p41 = scmp.ge.s32.totalorder %s40, 2
      %s42 = scalar_select %p41, 0, %s40
      %s43 = ssub.s32 %s30, %s42
      %p44 = scmp.eq.s32.totalorder %s43, 0
      %s46 = sadd.s32 %s45, 1
      %s47 = scalar_select %p44, %s45, %s46
      %p50 = pneg %p44
      %p51 = scmp.eq.s32.totalorder %s23, 1
      %p52 = por %p50, %p51
      %p53 = scmp.ne.s32.totalorder %s45, %s48
      %p54 = scmp.eq.s32.totalorder %s23, 0
      %p55 = por %p53, %p54
      %p56 = scmp.ne.s32.totalorder %s45, %s48
      %p57 = scmp.eq.s32.totalorder %s28, 1
      %p58 = por %p56, %p57
      %p59 = scmp.ne.s32.totalorder %s48, %s49
      %p60 = scmp.eq.s32.totalorder %s28, 0
      %p61 = por %p59, %p60
      %p62 = scmp.ne.s32.totalorder %s48, %s49
      %p63 = scmp.eq.s32.totalorder %s29, 1
      %p64 = por %p62, %p63
      %p66 = scmp.ne.s32.totalorder %s49, %s65
      %p67 = scmp.eq.s32.totalorder %s29, 0
      %p68 = por %p66, %p67
      %s69 = ssub.s32 %s30, %s42
      %p70 = scmp.eq.s32.totalorder %s69, 0
      %s72 = sadd.s32 %s71, 1
      %s73 = scalar_select %p70, %s71, %s72
      %p76 = pneg %p70
      %p77 = scmp.eq.s32.totalorder %s23, 1
      %p78 = por %p76, %p77
      %p79 = scmp.ne.s32.totalorder %s71, %s74
      %p80 = scmp.eq.s32.totalorder %s23, 0
      %p81 = por %p79, %p80
      %p82 = scmp.ne.s32.totalorder %s71, %s74
      %p83 = scmp.eq.s32.totalorder %s28, 1
      %p84 = por %p82, %p83
      %p85 = scmp.ne.s32.totalorder %s74, %s75
      %p86 = scmp.eq.s32.totalorder %s28, 0
      %p87 = por %p85, %p86
      %p88 = scmp.ne.s32.totalorder %s74, %s75
      %p89 = scmp.eq.s32.totalorder %s29, 1
      %p90 = por %p88, %p89
      %p92 = scmp.ne.s32.totalorder %s75, %s91
      %p93 = scmp.eq.s32.totalorder %s29, 0
      %p94 = por %p92, %p93
      %s96 = sadd.s32 %s95, 1
      %p99 = scmp.eq.s32.totalorder %s23, 1
      %p100 = scmp.ne.s32.totalorder %s95, %s97
      %p101 = scmp.eq.s32.totalorder %s23, 0
      %p102 = por %p100, %p101
      %p103 = scmp.ne.s32.totalorder %s95, %s97
      %p104 = scmp.eq.s32.totalorder %s28, 1
      %p105 = por %p103, %p104
      %p106 = scmp.ne.s32.totalorder %s97, %s98
      %p107 = scmp.eq.s32.totalorder %s28, 0
      %p108 = por %p106, %p107
      %p109 = scmp.ne.s32.totalorder %s97, %s98
      %p110 = scmp.eq.s32.totalorder %s29, 1
      %p111 = por %p109, %p110
      %p113 = scmp.ne.s32.totalorder %s98, %s112
      %p114 = scmp.eq.s32.totalorder %s29, 0
      %p115 = por %p113, %p114
      %s117 = sadd.s32 %s116, 1
      %p120 = scmp.eq.s32.totalorder %s23, 1
      %p121 = scmp.ne.s32.totalorder %s116, %s118
      %p122 = scmp.eq.s32.totalorder %s23, 0
      %p123 = por %p121, %p122
      %p124 = scmp.ne.s32.totalorder %s116, %s118
      %p125 = scmp.eq.s32.totalorder %s28, 1
      %p126 = por %p124, %p125
      %p127 = scmp.ne.s32.totalorder %s118, %s119
      %p128 = scmp.eq.s32.totalorder %s28, 0
      %p129 = por %p127, %p128
      %p130 = scmp.ne.s32.totalorder %s118, %s119
      %p131 = scmp.eq.s32.totalorder %s29, 1
      %p132 = por %p130, %p131
      %p134 = scmp.ne.s32.totalorder %s119, %s133
      %p135 = scmp.eq.s32.totalorder %s29, 0
      %p136 = por %p134, %p135
      %s138 = sadd.s32 %s137, 1
      %p141 = scmp.eq.s32.totalorder %s23, 1
      %p142 = scmp.ne.s32.totalorder %s137, %s139
      %p143 = scmp.eq.s32.totalorder %s23, 0
      %p144 = por %p142, %p143
      %p145 = scmp.ne.s32.totalorder %s137, %s139
      %p146 = scmp.eq.s32.totalorder %s28, 1
      %p147 = por %p145, %p146
      %p148 = scmp.ne.s32.totalorder %s139, %s140
      %p149 = scmp.eq.s32.totalorder %s28, 0
      %p150 = por %p148, %p149
      %p151 = scmp.ne.s32.totalorder %s139, %s140
      %p152 = scmp.eq.s32.totalorder %s29, 1
      %p153 = por %p151, %p152
      %p155 = scmp.ne.s32.totalorder %s140, %s154
      %p156 = scmp.eq.s32.totalorder %s29, 0
      %p157 = por %p155, %p156
      %s159 = sadd.s32 %s158, 1
      %p162 = scmp.eq.s32.totalorder %s23, 1
      %p163 = scmp.ne.s32.totalorder %s158, %s160
      %p164 = scmp.eq.s32.totalorder %s23, 0
      %p165 = por %p163, %p164
      %p166 = scmp.ne.s32.totalorder %s158, %s160
      %p167 = scmp.eq.s32.totalorder %s28, 1
      %p168 = por %p166, %p167
      %p169 = scmp.ne.s32.totalorder %s160, %s161
      %p170 = scmp.eq.s32.totalorder %s28, 0
      %p171 = por %p169, %p170
      %p172 = scmp.ne.s32.totalorder %s160, %s161
      %p173 = scmp.eq.s32.totalorder %s29, 1
      %p174 = por %p172, %p173
      %p176 = scmp.ne.s32.totalorder %s161, %s175
      %p177 = scmp.eq.s32.totalorder %s29, 0
      %p178 = por %p176, %p177
      %s180 = sadd.s32 %s179, 1
      %p183 = scmp.eq.s32.totalorder %s23, 1
      %p184 = scmp.ne.s32.totalorder %s179, %s181
      %p185 = scmp.eq.s32.totalorder %s23, 0
      %p186 = por %p184, %p185
      %p187 = scmp.ne.s32.totalorder %s179, %s181
      %p188 = scmp.eq.s32.totalorder %s28, 1
      %p189 = por %p187, %p188
      %p190 = scmp.ne.s32.totalorder %s181, %s182
      %p191 = scmp.eq.s32.totalorder %s28, 0
      %p192 = por %p190, %p191
      %p193 = scmp.ne.s32.totalorder %s181, %s182
      %p194 = scmp.eq.s32.totalorder %s29, 1
      %p195 = por %p193, %p194
      %p197 = scmp.ne.s32.totalorder %s182, %s196
      %p198 = scmp.eq.s32.totalorder %s29, 0
      %p199 = por %p197, %p198
      %s201 = sadd.s32 %s200, 1
      %p204 = scmp.eq.s32.totalorder %s23, 1
      %p205 = scmp.ne.s32.totalorder %s200, %s202
      %p206 = scmp.eq.s32.totalorder %s23, 0
      %p207 = por %p205, %p206
      %p208 = scmp.ne.s32.totalorder %s200, %s202
      %p209 = scmp.eq.s32.totalorder %s28, 1
      %p210 = por %p208, %p209
      %p211 = scmp.ne.s32.totalorder %s202, %s203
      %p212 = scmp.eq.s32.totalorder %s28, 0
      %p213 = por %p211, %p212
      %p214 = scmp.ne.s32.totalorder %s202, %s203
      %p215 = scmp.eq.s32.totalorder %s29, 1
      %p216 = por %p214, %p215
      %p218 = scmp.ne.s32.totalorder %s203, %s217
      %p219 = scmp.eq.s32.totalorder %s29, 0
      %p220 = por %p218, %p219
      %s221 = ssub.s32 %s30, %s42
      %p222 = scmp.eq.s32.totalorder %s221, 0
      %s224 = sadd.s32 %s223, 1
      %s225 = scalar_select %p222, %s223, %s224
      %p228 = pneg %p222
      %p229 = scmp.eq.s32.totalorder %s23, 1
      %p230 = por %p228, %p229
      %p231 = scmp.ne.s32.totalorder %s223, %s226
      %p232 = scmp.eq.s32.totalorder %s23, 0
      %p233 = por %p231, %p232
      %p234 = scmp.ne.s32.totalorder %s223, %s226
      %p235 = scmp.eq.s32.totalorder %s28, 1
      %p236 = por %p234, %p235
      %p237 = scmp.ne.s32.totalorder %s226, %s227
      %p238 = scmp.eq.s32.totalorder %s28, 0
      %p239 = por %p237, %p238
      %p240 = scmp.ne.s32.totalorder %s226, %s227
      %p241 = scmp.eq.s32.totalorder %s29, 1
      %p242 = por %p240, %p241
      %p244 = scmp.ne.s32.totalorder %s227, %s243
      %p245 = scmp.eq.s32.totalorder %s29, 0
      %p246 = por %p244, %p245
      %p247 = scmp.le.s32.totalorder 1, %s23
      %p248 = scmp.lt.s32.totalorder %s23, 3
      %p249 = pnand %p247, %p248
      %p250 = pneg %p249
      // Predicated region
      $region9: #{agent_gnn_forward.2} parent=5 // pred_check
        _
      $region10: #{agent_gnn_forward.2} parent=5 // pred_check_branch
        %252 = sbr.rel (%p249) target = $region12
      $region11: #{agent_gnn_forward.2} parent=5 // pred_region
        %s253 = ssub.s32 %s23, 1
        // Predicated region
        $region13: #{agent_gnn_forward.2} parent=11 // pred_check
          %p254 = pneg %p108
        $region14: #{agent_gnn_forward.2} parent=11 // pred_check_branch
          %256 = sbr.rel (%p254) target = $region16
        $region15: #{agent_gnn_forward.2} parent=11 // pred_region
          %s258 = ssub.s32 512, 512
          %259 = vsyncadd [#allocation8], %s258
          %s260 = sshll.u32 [#allocation7], 4
          %s261 = int_to_ptr.vmem [resolvable:$true] %s260
          %266 = dma.hbm_to_vmem [thread:$0]  %s3, 512, %s261, [#allocation8], 128, 128, 8
        $region16: #{agent_gnn_forward.2} parent=11 // pred_fallthru
          _
        // Predicated region
        $region17: #{agent_gnn_forward.2} parent=11 // pred_check
          %p267 = pneg %p129
        $region18: #{agent_gnn_forward.2} parent=11 // pred_check_branch
          %269 = sbr.rel (%p267) target = $region20
        $region19: #{agent_gnn_forward.2} parent=11 // pred_region
          %s271 = ssub.s32 512, 512
          %272 = vsyncadd [#allocation10], %s271
          %s273 = sshll.u32 [#allocation9], 4
          %s274 = int_to_ptr.vmem [resolvable:$true] %s273
          %279 = dma.hbm_to_vmem [thread:$0]  %s4, 512, %s274, [#allocation10], 128, 128, 8
        $region20: #{agent_gnn_forward.2} parent=11 // pred_fallthru
          _
        // Predicated region
        $region21: #{agent_gnn_forward.2} parent=11 // pred_check
          %p280 = pneg %p150
        $region22: #{agent_gnn_forward.2} parent=11 // pred_check_branch
          %282 = sbr.rel (%p280) target = $region24
        $region23: #{agent_gnn_forward.2} parent=11 // pred_region
          _
        $region24: #{agent_gnn_forward.2} parent=11 // pred_fallthru
          _
        // Predicated region
        $region25: #{agent_gnn_forward.2} parent=11 // pred_check
          %p283 = pneg %p171
        $region26: #{agent_gnn_forward.2} parent=11 // pred_check_branch
          %285 = sbr.rel (%p283) target = $region28
        $region27: #{agent_gnn_forward.2} parent=11 // pred_region
          _
        $region28: #{agent_gnn_forward.2} parent=11 // pred_fallthru
          _
        // Predicated region
        $region29: #{agent_gnn_forward.2} parent=11 // pred_check
          %p286 = pneg %p192
        $region30: #{agent_gnn_forward.2} parent=11 // pred_check_branch
          %288 = sbr.rel (%p286) target = $region32
        $region31: #{agent_gnn_forward.2} parent=11 // pred_region
          _
        $region32: #{agent_gnn_forward.2} parent=11 // pred_fallthru
          _
        // Predicated region
        $region33: #{agent_gnn_forward.2} parent=11 // pred_check
          %p289 = pneg %p213
        $region34: #{agent_gnn_forward.2} parent=11 // pred_check_branch
          %291 = sbr.rel (%p289) target = $region36
        $region35: #{agent_gnn_forward.2} parent=11 // pred_region
          _
        $region36: #{agent_gnn_forward.2} parent=11 // pred_fallthru
          _
      $region12: #{agent_gnn_forward.2} parent=5 // pred_fallthru
        _
      %p292 = scmp.lt.s32.totalorder %s23, 2
      // Predicated region
      $region37: #{agent_gnn_forward.2} parent=5 // pred_check
        %p293 = pneg %p292
      $region38: #{agent_gnn_forward.2} parent=5 // pred_check_branch
        %295 = sbr.rel (%p293) target = $region40
      $region39: #{agent_gnn_forward.2} parent=5 // pred_region
        // Predicated region
        $region41: #{agent_gnn_forward.2} parent=39 // pred_check
          %p296 = pneg %p55
        $region42: #{agent_gnn_forward.2} parent=39 // pred_check_branch
          %298 = sbr.rel (%p296) target = $region44
        $region43: #{agent_gnn_forward.2} parent=39 // pred_region
          %p299 = scmp.lt.s32.totalorder %s30, 1
          %s300 = scalar_select %p299, %s30, 1
          %s301 = smul.addr %s300, 8
          %s302 = scalar_lea.vmem %s1, %s301
        $region44: #{agent_gnn_forward.2} parent=39 // pred_fallthru
          _
        // Predicated region
        $region45: #{agent_gnn_forward.2} parent=39 // pred_check
          %p303 = pneg %p81
        $region46: #{agent_gnn_forward.2} parent=39 // pred_check_branch
          %305 = sbr.rel (%p303) target = $region48
        $region47: #{agent_gnn_forward.2} parent=39 // pred_region
          %p306 = scmp.lt.s32.totalorder %s30, 1
          %s307 = scalar_select %p306, %s30, 1
          %s308 = smul.addr %s307, 8
          %s309 = scalar_lea.vmem %s2, %s308
        $region48: #{agent_gnn_forward.2} parent=39 // pred_fallthru
          _
      $region40: #{agent_gnn_forward.2} parent=5 // pred_fallthru
        _
      %p310 = scmp.le.s32.totalorder 1, %s23
      %p311 = scmp.lt.s32.totalorder %s23, 3
      %p312 = pnand %p310, %p311
      %p313 = pneg %p312
      // Predicated region
      $region49: #{agent_gnn_forward.2} parent=5 // pred_check
        _
      $region50: #{agent_gnn_forward.2} parent=5 // pred_check_branch
        %315 = sbr.rel (%p312) target = $region52
      $region51: #{agent_gnn_forward.2} parent=5 // pred_region
        %s316 = ssub.s32 %s23, 1
        // Predicated region
        $region53: #{agent_gnn_forward.2} parent=51 // pred_check
          %p317 = pneg %p108
        $region54: #{agent_gnn_forward.2} parent=51 // pred_check_branch
          %319 = sbr.rel (%p317) target = $region56
        $region55: #{agent_gnn_forward.2} parent=51 // pred_region
          %320 = dma.done [#allocation8], 512
        $region56: #{agent_gnn_forward.2} parent=51 // pred_fallthru
          _
        // Predicated region
        $region57: #{agent_gnn_forward.2} parent=51 // pred_check
          %p321 = pneg %p129
        $region58: #{agent_gnn_forward.2} parent=51 // pred_check_branch
          %323 = sbr.rel (%p321) target = $region60
        $region59: #{agent_gnn_forward.2} parent=51 // pred_region
          %324 = dma.done [#allocation10], 512
        $region60: #{agent_gnn_forward.2} parent=51 // pred_fallthru
          _
        %p325 = scmp.lt.s32.totalorder %s32, 1
        %s326 = scalar_select %p325, %s32, 1
        %s327 = smul.addr %s326, 8
        %s328 = scalar_lea.vmem %s1, %s327
        %p329 = pneg %p61
        %p330 = pneg %p58
        %p331 = scmp.lt.s32.totalorder %s32, 1
        %s332 = scalar_select %p331, %s32, 1
        %s333 = smul.addr %s332, 8
        %s334 = scalar_lea.vmem %s2, %s333
        %p335 = pneg %p87
        %p336 = pneg %p84
        %p337 = pneg %p108
        %p338 = pneg %p105
        %p339 = pneg %p129
        %p340 = pneg %p126
        %p341 = pneg %p150
        %p342 = pneg %p147
        %p343 = pneg %p171
        %p344 = pneg %p168
        %p345 = pneg %p192
        %p346 = pneg %p189
        %p347 = pneg %p213
        %p348 = pneg %p210
        %p349 = pneg %p239
        %p350 = pneg %p236
        %p351 = scmp.lt.s32.totalorder %s32, 1
        %s352 = scalar_select %p351, %s32, 1
        %s353 = smul.addr %s352, 8
        %s354 = scalar_lea.vmem %s9, %s353
        %p355 = scmp.lt.s32.totalorder %s32, 1
        %s356 = scalar_select %p355, %s32, 1
        %s357 = smul.addr %s356, 8
        %s358 = scalar_lea.vmem %s1, %s357
        %p359 = scmp.lt.s32.totalorder %s32, 1
        %s360 = scalar_select %p359, %s32, 1
        %s361 = smul.addr %s360, 8
        %s362 = scalar_lea.vmem %s2, %s361
        %p363 = scmp.lt.s32.totalorder %s32, 1
        %s364 = scalar_select %p363, %s32, 1
        %s365 = smul.addr %s364, 8
        %s366 = scalar_lea.vmem %s9, %s365
        %p367 = scmp.eq.s32.totalorder %s33, 0
        // Predicated region
        $region61: #{agent_gnn_forward.2} parent=51 // pred_check
          %p368 = pneg %p367
        $region62: #{agent_gnn_forward.2} parent=51 // pred_check_branch
          %370 = sbr.rel (%p368) target = $region64
        $region63: #{agent_gnn_forward.2} parent=51 // pred_region
          %v371 = vld [vmem:[%s358] sm:$0xff]
          %v372 = vld [vmem:[%s362] sm:$0xff]
          %v373 = vld [vmem:[%s5] sm:$0x3]
          %vm374 = vcmask 15360
          %v376 = vsel %vm374, %v372, 0
          %vm378 = vcmask 1041408
          %v380 = vsel %vm378, %v373, 0
          %382 = vmatprep.subr.mxu0 0.0
          %v383 = vand.u32 %v380, 4294901760
          %384 = vmatpush1.msra.mxu0 %v383
          %385 = vmatprep.subr.mxu0 0.0
          %386 = vmatpush1.msra.mxu0 0.0
          %387 = vmatprep.subr.mxu0 0.0
          %388 = vmatpush1.msra.mxu0 0.0
          %389 = vmatprep.subr.mxu0 0.0
          %390 = vmatpush1.msra.mxu0 0.0
          %391 = vmatprep.subr.mxu0 0.0
          %392 = vmatpush1.msra.mxu0 0.0
          %393 = vmatprep.subr.mxu0 0.0
          %394 = vmatpush1.msra.mxu0 0.0
          %395 = vmatprep.subr.mxu0 0.0
          %396 = vmatpush1.msra.mxu0 0.0
          %397 = vmatprep.subr.mxu0 0.0
          %398 = vmatpush1.msra.mxu0 0.0
          %399 = vmatprep.subr.mxu0 0.0
          %400 = vmatpush1.msra.mxu0 0.0
          %401 = vmatprep.subr.mxu0 0.0
          %402 = vmatpush1.msra.mxu0 0.0
          %403 = vmatprep.subr.mxu0 0.0
          %404 = vmatpush1.msra.mxu0 0.0
          %405 = vmatprep.subr.mxu0 0.0
          %406 = vmatpush1.msra.mxu0 0.0
          %407 = vmatprep.subr.mxu0 0.0
          %408 = vmatpush1.msra.mxu0 0.0
          %409 = vmatprep.subr.mxu0 0.0
          %410 = vmatpush1.msra.mxu0 0.0
          %411 = vmatprep.subr.mxu0 0.0
          %412 = vmatpush1.msra.mxu0 0.0
          %413 = vmatprep.subr.mxu0 0.0
          %414 = vmatpush1.msra.mxu0 0.0
          %415 = vmatprep.subr.mxu0 0.0
          %416 = vmatpush1.msra.mxu0 0.0
          %417 = vmatprep.subr.mxu0 0.0
          %418 = vmatpush1.msra.mxu0 0.0
          %419 = vmatprep.subr.mxu0 0.0
          %420 = vmatpush1.msra.mxu0 0.0
          %421 = vmatprep.subr.mxu0 0.0
          %422 = vmatpush1.msra.mxu0 0.0
          %423 = vmatprep.subr.mxu0 0.0
          %424 = vmatpush1.msra.mxu0 0.0
          %425 = vmatprep.subr.mxu0 0.0
          %426 = vmatpush1.msra.mxu0 0.0
          %427 = vmatprep.subr.mxu0 0.0
          %428 = vmatpush1.msra.mxu0 0.0
          %429 = vmatprep.subr.mxu0 0.0
          %430 = vmatpush1.msra.mxu0 0.0
          %431 = vmatprep.subr.mxu0 0.0
          %432 = vmatpush1.msra.mxu0 0.0
          %433 = vmatprep.subr.mxu0 0.0
          %434 = vmatpush1.msra.mxu0 0.0
          %435 = vmatprep.subr.mxu0 0.0
          %436 = vmatpush1.msra.mxu0 0.0
          %437 = vmatprep.subr.mxu0 0.0
          %438 = vmatpush1.msra.mxu0 0.0
          %439 = vmatprep.subr.mxu0 0.0
          %440 = vmatpush1.msra.mxu0 0.0
          %441 = vmatprep.subr.mxu0 0.0
          %442 = vmatpush1.msra.mxu0 0.0
          %443 = vmatprep.subr.mxu0 0.0
          %444 = vmatpush1.msra.mxu0 0.0
          %445 = vmatprep.subr.mxu0 0.0
          %446 = vmatpush1.msra.mxu0 0.0
          %447 = vmatprep.mubr.f32.mxu0 0.0
          %v448 = vand.u32 %v376, 4294901760
          %v449 = vsub.f32 %v376, %v448
          %v450 = vand.u32 %v449, 4294901760
          %v451 = vsub.f32 %v449, %v450
          %v452 = vand.u32 %v451, 4294901760
          %453 = vmatmul.mubr.f32.gmra.mrb[0].mxu0 %v452
          %v454 = vpop.f32.mrb[0].mxu0
          %v455 = vadd.f32 0.0, %v454
          %v456 = vpop.f32.mrb[0].mxu0
          %457 = vdwg.mxu0
          %458 = vmatprep.subr.mxu0 0.0
          %v459 = vand.u32 %v380, 4294901760
          %v460 = vsub.f32 %v380, %v459
          %v461 = vand.u32 %v460, 4294901760
          %v462 = vsub.f32 %v460, %v461
          %v463 = vand.u32 %v462, 4294901760
          %464 = vmatpush1.msra.mxu0 %v463
          %465 = vmatprep.subr.mxu0 0.0
          %466 = vmatpush1.msra.mxu0 0.0
          %467 = vmatprep.subr.mxu0 0.0
          %468 = vmatpush1.msra.mxu0 0.0
          %469 = vmatprep.subr.mxu0 0.0
          %470 = vmatpush1.msra.mxu0 0.0
          %471 = vmatprep.subr.mxu0 0.0
          %472 = vmatpush1.msra.mxu0 0.0
          %473 = vmatprep.subr.mxu0 0.0
          %474 = vmatpush1.msra.mxu0 0.0
          %475 = vmatprep.subr.mxu0 0.0
          %476 = vmatpush1.msra.mxu0 0.0
          %477 = vmatprep.subr.mxu0 0.0
          %478 = vmatpush1.msra.mxu0 0.0
          %479 = vmatprep.subr.mxu0 0.0
          %480 = vmatpush1.msra.mxu0 0.0
          %481 = vmatprep.subr.mxu0 0.0
          %482 = vmatpush1.msra.mxu0 0.0
          %483 = vmatprep.subr.mxu0 0.0
          %484 = vmatpush1.msra.mxu0 0.0
          %485 = vmatprep.subr.mxu0 0.0
          %486 = vmatpush1.msra.mxu0 0.0
          %487 = vmatprep.subr.mxu0 0.0
          %488 = vmatpush1.msra.mxu0 0.0
          %489 = vmatprep.subr.mxu0 0.0
          %490 = vmatpush1.msra.mxu0 0.0
          %491 = vmatprep.subr.mxu0 0.0
          %492 = vmatpush1.msra.mxu0 0.0
          %493 = vmatprep.subr.mxu0 0.0
          %494 = vmatpush1.msra.mxu0 0.0
          %495 = vmatprep.subr.mxu0 0.0
          %496 = vmatpush1.msra.mxu0 0.0
          %497 = vmatprep.subr.mxu0 0.0
          %498 = vmatpush1.msra.mxu0 0.0
          %499 = vmatprep.subr.mxu0 0.0
          %500 = vmatpush1.msra.mxu0 0.0
          %501 = vmatprep.subr.mxu0 0.0
          %502 = vmatpush1.msra.mxu0 0.0
          %503 = vmatprep.subr.mxu0 0.0
          %504 = vmatpush1.msra.mxu0 0.0
          %505 = vmatprep.subr.mxu0 0.0
          %506 = vmatpush1.msra.mxu0 0.0
          %507 = vmatprep.subr.mxu0 0.0
          %508 = vmatpush1.msra.mxu0 0.0
          %509 = vmatprep.subr.mxu0 0.0
          %510 = vmatpush1.msra.mxu0 0.0
          %511 = vmatprep.subr.mxu0 0.0
          %512 = vmatpush1.msra.mxu0 0.0
          %513 = vmatprep.subr.mxu0 0.0
          %514 = vmatpush1.msra.mxu0 0.0
          %515 = vmatprep.subr.mxu0 0.0
          %516 = vmatpush1.msra.mxu0 0.0
          %517 = vmatprep.subr.mxu0 0.0
          %518 = vmatpush1.msra.mxu0 0.0
          %519 = vmatprep.subr.mxu0 0.0
          %520 = vmatpush1.msra.mxu0 0.0
          %521 = vmatprep.subr.mxu0 0.0
          %522 = vmatpush1.msra.mxu0 0.0
          %523 = vmatprep.subr.mxu0 0.0
          %524 = vmatpush1.msra.mxu0 0.0
          %525 = vmatprep.subr.mxu0 0.0
          %526 = vmatpush1.msra.mxu0 0.0
          %527 = vmatprep.mubr.f32.mxu0 0.0
          %v528 = vand.u32 %v376, 4294901760
          %529 = vmatmul.mubr.f32.gmra.mrb[0].mxu0 %v528
          %v530 = vpop.f32.mrb[0].mxu0
          %v531 = vadd.f32 %v455, %v530
          %v532 = vpop.f32.mrb[0].mxu0
          %533 = vdwg.mxu0
          %534 = vmatprep.subr.mxu0 0.0
          %v535 = vand.u32 %v380, 4294901760
          %v536 = vsub.f32 %v380, %v535
          %537 = vmatpush1.msra.mxu0 %v536
          %538 = vmatprep.subr.mxu0 0.0
          %539 = vmatpush1.msra.mxu0 0.0
          %540 = vmatprep.subr.mxu0 0.0
          %541 = vmatpush1.msra.mxu0 0.0
          %542 = vmatprep.subr.mxu0 0.0
          %543 = vmatpush1.msra.mxu0 0.0
          %544 = vmatprep.subr.mxu0 0.0
          %545 = vmatpush1.msra.mxu0 0.0
          %546 = vmatprep.subr.mxu0 0.0
          %547 = vmatpush1.msra.mxu0 0.0
          %548 = vmatprep.subr.mxu0 0.0
          %549 = vmatpush1.msra.mxu0 0.0
          %550 = vmatprep.subr.mxu0 0.0
          %551 = vmatpush1.msra.mxu0 0.0
          %552 = vmatprep.subr.mxu0 0.0
          %553 = vmatpush1.msra.mxu0 0.0
          %554 = vmatprep.subr.mxu0 0.0
          %555 = vmatpush1.msra.mxu0 0.0
          %556 = vmatprep.subr.mxu0 0.0
          %557 = vmatpush1.msra.mxu0 0.0
          %558 = vmatprep.subr.mxu0 0.0
          %559 = vmatpush1.msra.mxu0 0.0
          %560 = vmatprep.subr.mxu0 0.0
          %561 = vmatpush1.msra.mxu0 0.0
          %562 = vmatprep.subr.mxu0 0.0
          %563 = vmatpush1.msra.mxu0 0.0
          %564 = vmatprep.subr.mxu0 0.0
          %565 = vmatpush1.msra.mxu0 0.0
          %566 = vmatprep.subr.mxu0 0.0
          %567 = vmatpush1.msra.mxu0 0.0
          %568 = vmatprep.subr.mxu0 0.0
          %569 = vmatpush1.msra.mxu0 0.0
          %570 = vmatprep.subr.mxu0 0.0
          %571 = vmatpush1.msra.mxu0 0.0
          %572 = vmatprep.subr.mxu0 0.0
          %573 = vmatpush1.msra.mxu0 0.0
          %574 = vmatprep.subr.mxu0 0.0
          %575 = vmatpush1.msra.mxu0 0.0
          %576 = vmatprep.subr.mxu0 0.0
          %577 = vmatpush1.msra.mxu0 0.0
          %578 = vmatprep.subr.mxu0 0.0
          %579 = vmatpush1.msra.mxu0 0.0
          %580 = vmatprep.subr.mxu0 0.0
          %581 = vmatpush1.msra.mxu0 0.0
          %582 = vmatprep.subr.mxu0 0.0
          %583 = vmatpush1.msra.mxu0 0.0
          %584 = vmatprep.subr.mxu0 0.0
          %585 = vmatpush1.msra.mxu0 0.0
          %586 = vmatprep.subr.mxu0 0.0
          %587 = vmatpush1.msra.mxu0 0.0
          %588 = vmatprep.subr.mxu0 0.0
          %589 = vmatpush1.msra.mxu0 0.0
          %590 = vmatprep.subr.mxu0 0.0
          %591 = vmatpush1.msra.mxu0 0.0
          %592 = vmatprep.subr.mxu0 0.0
          %593 = vmatpush1.msra.mxu0 0.0
          %594 = vmatprep.subr.mxu0 0.0
          %595 = vmatpush1.msra.mxu0 0.0
          %596 = vmatprep.subr.mxu0 0.0
          %597 = vmatpush1.msra.mxu0 0.0
          %598 = vmatprep.subr.mxu0 0.0
          %599 = vmatpush1.msra.mxu0 0.0
          %600 = vmatprep.mubr.f32.mxu0 0.0
          %v601 = vand.u32 %v376, 4294901760
          %v602 = vsub.f32 %v376, %v601
          %603 = vmatmul.mubr.f32.gmra.mrb[0].mxu0 %v602
          %v604 = vpop.f32.mrb[0].mxu0
          %v605 = vadd.f32 %v531, %v604
          %v606 = vpop.f32.mrb[0].mxu0
          %607 = vdwg.mxu0
          %608 = vmatprep.subr.mxu0 0.0
          %v609 = vand.u32 %v380, 4294901760
          %610 = vmatpush1.msra.mxu0 %v609
          %611 = vmatprep.subr.mxu0 0.0
          %612 = vmatpush1.msra.mxu0 0.0
          %613 = vmatprep.subr.mxu0 0.0
          %614 = vmatpush1.msra.mxu0 0.0
          %615 = vmatprep.subr.mxu0 0.0
          %616 = vmatpush1.msra.mxu0 0.0
          %617 = vmatprep.subr.mxu0 0.0
          %618 = vmatpush1.msra.mxu0 0.0
          %619 = vmatprep.subr.mxu0 0.0
          %620 = vmatpush1.msra.mxu0 0.0
          %621 = vmatprep.subr.mxu0 0.0
          %622 = vmatpush1.msra.mxu0 0.0
          %623 = vmatprep.subr.mxu0 0.0
          %624 = vmatpush1.msra.mxu0 0.0
          %625 = vmatprep.subr.mxu0 0.0
          %626 = vmatpush1.msra.mxu0 0.0
          %627 = vmatprep.subr.mxu0 0.0
          %628 = vmatpush1.msra.mxu0 0.0
          %629 = vmatprep.subr.mxu0 0.0
          %630 = vmatpush1.msra.mxu0 0.0
          %631 = vmatprep.subr.mxu0 0.0
          %632 = vmatpush1.msra.mxu0 0.0
          %633 = vmatprep.subr.mxu0 0.0
          %634 = vmatpush1.msra.mxu0 0.0
          %635 = vmatprep.subr.mxu0 0.0
          %636 = vmatpush1.msra.mxu0 0.0
          %637 = vmatprep.subr.mxu0 0.0
          %638 = vmatpush1.msra.mxu0 0.0
          %639 = vmatprep.subr.mxu0 0.0
          %640 = vmatpush1.msra.mxu0 0.0
          %641 = vmatprep.subr.mxu0 0.0
          %642 = vmatpush1.msra.mxu0 0.0
          %643 = vmatprep.subr.mxu0 0.0
          %644 = vmatpush1.msra.mxu0 0.0
          %645 = vmatprep.subr.mxu0 0.0
          %646 = vmatpush1.msra.mxu0 0.0
          %647 = vmatprep.subr.mxu0 0.0
          %648 = vmatpush1.msra.mxu0 0.0
          %649 = vmatprep.subr.mxu0 0.0
          %650 = vmatpush1.msra.mxu0 0.0
          %651 = vmatprep.subr.mxu0 0.0
          %652 = vmatpush1.msra.mxu0 0.0
          %653 = vmatprep.subr.mxu0 0.0
          %654 = vmatpush1.msra.mxu0 0.0
          %655 = vmatprep.subr.mxu0 0.0
          %656 = vmatpush1.msra.mxu0 0.0
          %657 = vmatprep.subr.mxu0 0.0
          %658 = vmatpush1.msra.mxu0 0.0
          %659 = vmatprep.subr.mxu0 0.0
          %660 = vmatpush1.msra.mxu0 0.0
          %661 = vmatprep.subr.mxu0 0.0
          %662 = vmatpush1.msra.mxu0 0.0
          %663 = vmatprep.subr.mxu0 0.0
          %664 = vmatpush1.msra.mxu0 0.0
          %665 = vmatprep.subr.mxu0 0.0
          %666 = vmatpush1.msra.mxu0 0.0
          %667 = vmatprep.subr.mxu0 0.0
          %668 = vmatpush1.msra.mxu0 0.0
          %669 = vmatprep.subr.mxu0 0.0
          %670 = vmatpush1.msra.mxu0 0.0
          %671 = vmatprep.subr.mxu0 0.0
          %672 = vmatpush1.msra.mxu0 0.0
          %673 = vmatprep.mubr.f32.mxu0 0.0
          %v674 = vand.u32 %v376, 4294901760
          %v675 = vsub.f32 %v376, %v674
          %v676 = vand.u32 %v675, 4294901760
          %677 = vmatmul.mubr.f32.gmra.mrb[0].mxu0 %v676
          %v678 = vpop.f32.mrb[0].mxu0
          %v679 = vadd.f32 %v605, %v678
          %v680 = vpop.f32.mrb[0].mxu0
          %681 = vdwg.mxu0
          %682 = vmatprep.subr.mxu0 0.0
          %v683 = vand.u32 %v380, 4294901760
          %v684 = vsub.f32 %v380, %v683
          %v685 = vand.u32 %v684, 4294901760
          %686 = vmatpush1.msra.mxu0 %v685
          %687 = vmatprep.subr.mxu0 0.0
          %688 = vmatpush1.msra.mxu0 0.0
          %689 = vmatprep.subr.mxu0 0.0
          %690 = vmatpush1.msra.mxu0 0.0
          %691 = vmatprep.subr.mxu0 0.0
          %692 = vmatpush1.msra.mxu0 0.0
          %693 = vmatprep.subr.mxu0 0.0
          %694 = vmatpush1.msra.mxu0 0.0
          %695 = vmatprep.subr.mxu0 0.0
          %696 = vmatpush1.msra.mxu0 0.0
          %697 = vmatprep.subr.mxu0 0.0
          %698 = vmatpush1.msra.mxu0 0.0
          %699 = vmatprep.subr.mxu0 0.0
          %700 = vmatpush1.msra.mxu0 0.0
          %701 = vmatprep.subr.mxu0 0.0
          %702 = vmatpush1.msra.mxu0 0.0
          %703 = vmatprep.subr.mxu0 0.0
          %704 = vmatpush1.msra.mxu0 0.0
          %705 = vmatprep.subr.mxu0 0.0
          %706 = vmatpush1.msra.mxu0 0.0
          %707 = vmatprep.subr.mxu0 0.0
          %708 = vmatpush1.msra.mxu0 0.0
          %709 = vmatprep.subr.mxu0 0.0
          %710 = vmatpush1.msra.mxu0 0.0
          %711 = vmatprep.subr.mxu0 0.0
          %712 = vmatpush1.msra.mxu0 0.0
          %713 = vmatprep.subr.mxu0 0.0
          %714 = vmatpush1.msra.mxu0 0.0
          %715 = vmatprep.subr.mxu0 0.0
          %716 = vmatpush1.msra.mxu0 0.0
          %717 = vmatprep.subr.mxu0 0.0
          %718 = vmatpush1.msra.mxu0 0.0
          %719 = vmatprep.subr.mxu0 0.0
          %720 = vmatpush1.msra.mxu0 0.0
          %721 = vmatprep.subr.mxu0 0.0
          %722 = vmatpush1.msra.mxu0 0.0
          %723 = vmatprep.subr.mxu0 0.0
          %724 = vmatpush1.msra.mxu0 0.0
          %725 = vmatprep.subr.mxu0 0.0
          %726 = vmatpush1.msra.mxu0 0.0
          %727 = vmatprep.subr.mxu0 0.0
          %728 = vmatpush1.msra.mxu0 0.0
          %729 = vmatprep.subr.mxu0 0.0
          %730 = vmatpush1.msra.mxu0 0.0
          %731 = vmatprep.subr.mxu0 0.0
          %732 = vmatpush1.msra.mxu0 0.0
          %733 = vmatprep.subr.mxu0 0.0
          %734 = vmatpush1.msra.mxu0 0.0
          %735 = vmatprep.subr.mxu0 0.0
          %736 = vmatpush1.msra.mxu0 0.0
          %737 = vmatprep.subr.mxu0 0.0
          %738 = vmatpush1.msra.mxu0 0.0
          %739 = vmatprep.subr.mxu0 0.0
          %740 = vmatpush1.msra.mxu0 0.0
          %741 = vmatprep.subr.mxu0 0.0
          %742 = vmatpush1.msra.mxu0 0.0
          %743 = vmatprep.subr.mxu0 0.0
          %744 = vmatpush1.msra.mxu0 0.0
          %745 = vmatprep.subr.mxu0 0.0
          %746 = vmatpush1.msra.mxu0 0.0
          %747 = vmatprep.subr.mxu0 0.0
          %748 = vmatpush1.msra.mxu0 0.0
          %749 = vmatprep.mubr.f32.mxu0 0.0
          %v750 = vand.u32 %v376, 4294901760
          %751 = vmatmul.mubr.f32.gmra.mrb[0].mxu0 %v750
          %v752 = vpop.f32.mrb[0].mxu0
          %v753 = vadd.f32 %v679, %v752
          %v754 = vpop.f32.mrb[0].mxu0
          %755 = vdwg.mxu0
          %756 = vmatprep.subr.mxu0 0.0
          %v757 = vand.u32 %v380, 4294901760
          %758 = vmatpush1.msra.mxu0 %v757
          %759 = vmatprep.subr.mxu0 0.0
          %760 = vmatpush1.msra.mxu0 0.0
          %761 = vmatprep.subr.mxu0 0.0
          %762 = vmatpush1.msra.mxu0 0.0
          %763 = vmatprep.subr.mxu0 0.0
          %764 = vmatpush1.msra.mxu0 0.0
          %765 = vmatprep.subr.mxu0 0.0
          %766 = vmatpush1.msra.mxu0 0.0
          %767 = vmatprep.subr.mxu0 0.0
          %768 = vmatpush1.msra.mxu0 0.0
          %769 = vmatprep.subr.mxu0 0.0
          %770 = vmatpush1.msra.mxu0 0.0
          %771 = vmatprep.subr.mxu0 0.0
          %772 = vmatpush1.msra.mxu0 0.0
          %773 = vmatprep.subr.mxu0 0.0
          %774 = vmatpush1.msra.mxu0 0.0
          %775 = vmatprep.subr.mxu0 0.0
          %776 = vmatpush1.msra.mxu0 0.0
          %777 = vmatprep.subr.mxu0 0.0
          %778 = vmatpush1.msra.mxu0 0.0
          %779 = vmatprep.subr.mxu0 0.0
          %780 = vmatpush1.msra.mxu0 0.0
          %781 = vmatprep.subr.mxu0 0.0
          %782 = vmatpush1.msra.mxu0 0.0
          %783 = vmatprep.subr.mxu0 0.0
          %784 = vmatpush1.msra.mxu0 0.0
          %785 = vmatprep.subr.mxu0 0.0
          %786 = vmatpush1.msra.mxu0 0.0
          %787 = vmatprep.subr.mxu0 0.0
          %788 = vmatpush1.msra.mxu0 0.0
          %789 = vmatprep.subr.mxu0 0.0
          %790 = vmatpush1.msra.mxu0 0.0
          %791 = vmatprep.subr.mxu0 0.0
          %792 = vmatpush1.msra.mxu0 0.0
          %793 = vmatprep.subr.mxu0 0.0
          %794 = vmatpush1.msra.mxu0 0.0
          %795 = vmatprep.subr.mxu0 0.0
          %796 = vmatpush1.msra.mxu0 0.0
          %797 = vmatprep.subr.mxu0 0.0
          %798 = vmatpush1.msra.mxu0 0.0
          %799 = vmatprep.subr.mxu0 0.0
          %800 = vmatpush1.msra.mxu0 0.0
          %801 = vmatprep.subr.mxu0 0.0
          %802 = vmatpush1.msra.mxu0 0.0
          %803 = vmatprep.subr.mxu0 0.0
          %804 = vmatpush1.msra.mxu0 0.0
          %805 = vmatprep.subr.mxu0 0.0
          %806 = vmatpush1.msra.mxu0 0.0
          %807 = vmatprep.subr.mxu0 0.0
          %808 = vmatpush1.msra.mxu0 0.0
          %809 = vmatprep.subr.mxu0 0.0
          %810 = vmatpush1.msra.mxu0 0.0
          %811 = vmatprep.subr.mxu0 0.0
          %812 = vmatpush1.msra.mxu0 0.0
          %813 = vmatprep.subr.mxu0 0.0
          %814 = vmatpush1.msra.mxu0 0.0
          %815 = vmatprep.subr.mxu0 0.0
          %816 = vmatpush1.msra.mxu0 0.0
          %817 = vmatprep.subr.mxu0 0.0
          %818 = vmatpush1.msra.mxu0 0.0
          %819 = vmatprep.subr.mxu0 0.0
          %820 = vmatpush1.msra.mxu0 0.0
          %821 = vmatprep.mubr.f32.mxu0 0.0
          %v822 = vand.u32 %v376, 4294901760
          %823 = vmatmul.mubr.f32.gmra.mrb[0].mxu0 %v822
          %v824 = vpop.f32.mrb[0].mxu0
          %v825 = vadd.f32 %v753, %v824
          %v826 = vpop.f32.mrb[0].mxu0
          %827 = vdwg.mxu0
          %v828 = vld [vmem:[#allocation7] sm:$0xff]
          %v829 = vld [vmem:[#allocation7 + $0x8] sm:$0xff]
          %v830 = vld [vmem:[#allocation7 + $0x10] sm:$0xff]
          %v831 = vld [vmem:[#allocation7 + $0x18] sm:$0xff]
          %vm832 = vcmask 261120
          %v834 = vsel %vm832, %v371, 0
          %836 = vmatprep.subr.mxu0 0.0
          %v837 = vand.u32 %v828, 4294901760
          %838 = vmatpush1.msra.mxu0 %v837
          %839 = vmatprep.subr.mxu0 0.0
          %v840 = vand.u32 %v829, 4294901760
          %841 = vmatpush1.msra.mxu0 %v840
          %842 = vmatprep.subr.mxu0 0.0
          %v843 = vand.u32 %v830, 4294901760
          %844 = vmatpush1.msra.mxu0 %v843
          %845 = vmatprep.subr.mxu0 0.0
          %v846 = vand.u32 %v831, 4294901760
          %847 = vmatpush1.msra.mxu0 %v846
          %848 = vmatprep.subr.mxu0 0.0
          %849 = vmatpush1.msra.mxu0 0.0
          %850 = vmatprep.subr.mxu0 0.0
          %851 = vmatpush1.msra.mxu0 0.0
          %852 = vmatprep.subr.mxu0 0.0
          %853 = vmatpush1.msra.mxu0 0.0
          %854 = vmatprep.subr.mxu0 0.0
          %855 = vmatpush1.msra.mxu0 0.0
          %856 = vmatprep.subr.mxu0 0.0
          %857 = vmatpush1.msra.mxu0 0.0
          %858 = vmatprep.subr.mxu0 0.0
          %859 = vmatpush1.msra.mxu0 0.0
          %860 = vmatprep.subr.mxu0 0.0
          %861 = vmatpush1.msra.mxu0 0.0
          %862 = vmatprep.subr.mxu0 0.0
          %863 = vmatpush1.msra.mxu0 0.0
          %864 = vmatprep.subr.mxu0 0.0
          %865 = vmatpush1.msra.mxu0 0.0
          %866 = vmatprep.subr.mxu0 0.0
          %867 = vmatpush1.msra.mxu0 0.0
          %868 = vmatprep.subr.mxu0 0.0
          %869 = vmatpush1.msra.mxu0 0.0
          %870 = vmatprep.subr.mxu0 0.0
          %871 = vmatpush1.msra.mxu0 0.0
          %872 = vmatprep.subr.mxu0 0.0
          %873 = vmatpush1.msra.mxu0 0.0
          %874 = vmatprep.subr.mxu0 0.0
          %875 = vmatpush1.msra.mxu0 0.0
          %876 = vmatprep.subr.mxu0 0.0
          %877 = vmatpush1.msra.mxu0 0.0
          %878 = vmatprep.subr.mxu0 0.0
          %879 = vmatpush1.msra.mxu0 0.0
          %880 = vmatprep.subr.mxu0 0.0
          %881 = vmatpush1.msra.mxu0 0.0
          %882 = vmatprep.subr.mxu0 0.0
          %883 = vmatpush1.msra.mxu0 0.0
          %884 = vmatprep.subr.mxu0 0.0
          %885 = vmatpush1.msra.mxu0 0.0
          %886 = vmatprep.subr.mxu0 0.0
          %887 = vmatpush1.msra.mxu0 0.0
          %888 = vmatprep.subr.mxu0 0.0
          %889 = vmatpush1.msra.mxu0 0.0
          %890 = vmatprep.subr.mxu0 0.0
          %891 = vmatpush1.msra.mxu0 0.0
          %892 = vmatprep.subr.mxu0 0.0
          %893 = vmatpush1.msra.mxu0 0.0
          %894 = vmatprep.subr.mxu0 0.0
          %895 = vmatpush1.msra.mxu0 0.0
          %896 = vmatprep.subr.mxu0 0.0
          %897 = vmatpush1.msra.mxu0 0.0
          %898 = vmatprep.subr.mxu0 0.0
          %899 = vmatpush1.msra.mxu0 0.0
          %900 = vmatprep.subr.mxu0 0.0
          %901 = vmatpush1.msra.mxu0 0.0
          %902 = vmatprep.subr.mxu0 0.0
          %903 = vmatpush1.msra.mxu0 0.0
          %904 = vmatprep.mubr.f32.mxu0 0.0
          %v905 = vand.u32 %v834, 4294901760
          %v906 = vsub.f32 %v834, %v905
          %v907 = vand.u32 %v906, 4294901760
          %v908 = vsub.f32 %v906, %v907
          %v909 = vand.u32 %v908, 4294901760
          %910 = vmatmul.mubr.f32.gmra.mrb[0].mxu0 %v909
          %v911 = vpop.f32.mrb[0].mxu0
          %v912 = vadd.f32 %v825, %v911
          %v913 = vpop.f32.mrb[0].mxu0
          %914 = vdwg.mxu0
          %915 = vmatprep.subr.mxu0 0.0
          %v916 = vand.u32 %v828, 4294901760
          %v917 = vsub.f32 %v828, %v916
          %v918 = vand.u32 %v917, 4294901760
          %v919 = vsub.f32 %v917, %v918
          %v920 = vand.u32 %v919, 4294901760
          %921 = vmatpush1.msra.mxu0 %v920
          %922 = vmatprep.subr.mxu0 0.0
          %v923 = vand.u32 %v829, 4294901760
          %v924 = vsub.f32 %v829, %v923
          %v925 = vand.u32 %v924, 4294901760
          %v926 = vsub.f32 %v924, %v925
          %v927 = vand.u32 %v926, 4294901760
          %928 = vmatpush1.msra.mxu0 %v927
          %929 = vmatprep.subr.mxu0 0.0
          %v930 = vand.u32 %v830, 4294901760
          %v931 = vsub.f32 %v830, %v930
          %v932 = vand.u32 %v931, 4294901760
          %v933 = vsub.f32 %v931, %v932
          %v934 = vand.u32 %v933, 4294901760
          %935 = vmatpush1.msra.mxu0 %v934
          %936 = vmatprep.subr.mxu0 0.0
          %v937 = vand.u32 %v831, 4294901760
          %v938 = vsub.f32 %v831, %v937
          %v939 = vand.u32 %v938, 4294901760
          %v940 = vsub.f32 %v938, %v939
          %v941 = vand.u32 %v940, 4294901760
          %942 = vmatpush1.msra.mxu0 %v941
          %943 = vmatprep.subr.mxu0 0.0
          %944 = vmatpush1.msra.mxu0 0.0
          %945 = vmatprep.subr.mxu0 0.0
          %946 = vmatpush1.msra.mxu0 0.0
          %947 = vmatprep.subr.mxu0 0.0
          %948 = vmatpush1.msra.mxu0 0.0
          %949 = vmatprep.subr.mxu0 0.0
          %950 = vmatpush1.msra.mxu0 0.0
          %951 = vmatprep.subr.mxu0 0.0
          %952 = vmatpush1.msra.mxu0 0.0
          %953 = vmatprep.subr.mxu0 0.0
          %954 = vmatpush1.msra.mxu0 0.0
          %955 = vmatprep.subr.mxu0 0.0
          %956 = vmatpush1.msra.mxu0 0.0
          %957 = vmatprep.subr.mxu0 0.0
          %958 = vmatpush1.msra.mxu0 0.0
          %959 = vmatprep.subr.mxu0 0.0
          %960 = vmatpush1.msra.mxu0 0.0
          %961 = vmatprep.subr.mxu0 0.0
          %962 = vmatpush1.msra.mxu0 0.0
          %963 = vmatprep.subr.mxu0 0.0
          %964 = vmatpush1.msra.mxu0 0.0
          %965 = vmatprep.subr.mxu0 0.0
          %966 = vmatpush1.msra.mxu0 0.0
          %967 = vmatprep.subr.mxu0 0.0
          %968 = vmatpush1.msra.mxu0 0.0
          %969 = vmatprep.subr.mxu0 0.0
          %970 = vmatpush1.msra.mxu0 0.0
          %971 = vmatprep.subr.mxu0 0.0
          %972 = vmatpush1.msra.mxu0 0.0
          %973 = vmatprep.subr.mxu0 0.0
          %974 = vmatpush1.msra.mxu0 0.0
          %975 = vmatprep.subr.mxu0 0.0
          %976 = vmatpush1.msra.mxu0 0.0
          %977 = vmatprep.subr.mxu0 0.0
          %978 = vmatpush1.msra.mxu0 0.0
          %979 = vmatprep.subr.mxu0 0.0
          %980 = vmatpush1.msra.mxu0 0.0
          %981 = vmatprep.subr.mxu0 0.0
          %982 = vmatpush1.msra.mxu0 0.0
          %983 = vmatprep.subr.mxu0 0.0
          %984 = vmatpush1.msra.mxu0 0.0
          %985 = vmatprep.subr.mxu0 0.0
          %986 = vmatpush1.msra.mxu0 0.0
          %987 = vmatprep.subr.mxu0 0.0
          %988 = vmatpush1.msra.mxu0 0.0
          %989 = vmatprep.subr.mxu0 0.0
          %990 = vmatpush1.msra.mxu0 0.0
          %991 = vmatprep.subr.mxu0 0.0
          %992 = vmatpush1.msra.mxu0 0.0
          %993 = vmatprep.subr.mxu0 0.0
          %994 = vmatpush1.msra.mxu0 0.0
          %995 = vmatprep.subr.mxu0 0.0
          %996 = vmatpush1.msra.mxu0 0.0
          %997 = vmatprep.subr.mxu0 0.0
          %998 = vmatpush1.msra.mxu0 0.0
          %999 = vmatprep.mubr.f32.mxu0 0.0
          %v1000 = vand.u32 %v834, 4294901760
          %1001 = vmatmul.mubr.f32.gmra.mrb[0].mxu0 %v1000
          %v1002 = vpop.f32.mrb[0].mxu0
          %v1003 = vadd.f32 %v912, %v1002
          %v1004 = vpop.f32.mrb[0].mxu0
          %1005 = vdwg.mxu0
          %1006 = vmatprep.subr.mxu0 0.0
          %v1007 = vand.u32 %v828, 4294901760
          %v1008 = vsub.f32 %v828, %v1007
          %1009 = vmatpush1.msra.mxu0 %v1008
          %1010 = vmatprep.subr.mxu0 0.0
          %v1011 = vand.u32 %v829, 4294901760
          %v1012 = vsub.f32 %v829, %v1011
          %1013 = vmatpush1.msra.mxu0 %v1012
          %1014 = vmatprep.subr.mxu0 0.0
          %v1015 = vand.u32 %v830, 4294901760
          %v1016 = vsub.f32 %v830, %v1015
          %1017 = vmatpush1.msra.mxu0 %v1016
          %1018 = vmatprep.subr.mxu0 0.0
          %v1019 = vand.u32 %v831, 4294901760
          %v1020 = vsub.f32 %v831, %v1019
          %1021 = vmatpush1.msra.mxu0 %v1020
          %1022 = vmatprep.subr.mxu0 0.0
          %1023 = vmatpush1.msra.mxu0 0.0
          %1024 = vmatprep.subr.mxu0 0.0
          %1025 = vmatpush1.msra.mxu0 0.0
          %1026 = vmatprep.subr.mxu0 0.0
          %1027 = vmatpush1.msra.mxu0 0.0
          %1028 = vmatprep.subr.mxu0 0.0
          %1029 = vmatpush1.msra.mxu0 0.0
          %1030 = vmatprep.subr.mxu0 0.0
          %1031 = vmatpush1.msra.mxu0 0.0
          %1032 = vmatprep.subr.mxu0 0.0
          %1033 = vmatpush1.msra.mxu0 0.0
          %1034 = vmatprep.subr.mxu0 0.0
          %1035 = vmatpush1.msra.mxu0 0.0
          %1036 = vmatprep.subr.mxu0 0.0
          %1037 = vmatpush1.msra.mxu0 0.0
          %1038 = vmatprep.subr.mxu0 0.0
          %1039 = vmatpush1.msra.mxu0 0.0
          %1040 = vmatprep.subr.mxu0 0.0
          %1041 = vmatpush1.msra.mxu0 0.0
          %1042 = vmatprep.subr.mxu0 0.0
          %1043 = vmatpush1.msra.mxu0 0.0
          %1044 = vmatprep.subr.mxu0 0.0
          %1045 = vmatpush1.msra.mxu0 0.0
          %1046 = vmatprep.subr.mxu0 0.0
          %1047 = vmatpush1.msra.mxu0 0.0
          %1048 = vmatprep.subr.mxu0 0.0
          %1049 = vmatpush1.msra.mxu0 0.0
          %1050 = vmatprep.subr.mxu0 0.0
          %1051 = vmatpush1.msra.mxu0 0.0
          %1052 = vmatprep.subr.mxu0 0.0
          %1053 = vmatpush1.msra.mxu0 0.0
          %1054 = vmatprep.subr.mxu0 0.0
          %1055 = vmatpush1.msra.mxu0 0.0
          %1056 = vmatprep.subr.mxu0 0.0
          %1057 = vmatpush1.msra.mxu0 0.0
          %1058 = vmatprep.subr.mxu0 0.0
          %1059 = vmatpush1.msra.mxu0 0.0
          %1060 = vmatprep.subr.mxu0 0.0
          %1061 = vmatpush1.msra.mxu0 0.0
          %1062 = vmatprep.subr.mxu0 0.0
          %1063 = vmatpush1.msra.mxu0 0.0
          %1064 = vmatprep.subr.mxu0 0.0
          %1065 = vmatpush1.msra.mxu0 0.0
          %1066 = vmatprep.subr.mxu0 0.0
          %1067 = vmatpush1.msra.mxu0 0.0
          %1068 = vmatprep.subr.mxu0 0.0
          %1069 = vmatpush1.msra.mxu0 0.0
          %1070 = vmatprep.subr.mxu0 0.0
          %1071 = vmatpush1.msra.mxu0 0.0
          %1072 = vmatprep.subr.mxu0 0.0
          %1073 = vmatpush1.msra.mxu0 0.0
          %1074 = vmatprep.subr.mxu0 0.0
          %1075 = vmatpush1.msra.mxu0 0.0
          %1076 = vmatprep.subr.mxu0 0.0
          %1077 = vmatpush1.msra.mxu0 0.0
          %1078 = vmatprep.mubr.f32.mxu0 0.0
          %v1079 = vand.u32 %v834, 4294901760
          %v1080 = vsub.f32 %v834, %v1079
          %1081 = vmatmul.mubr.f32.gmra.mrb[0].mxu0 %v1080
          %v1082 = vpop.f32.mrb[0].mxu0
          %v1083 = vadd.f32 %v1003, %v1082
          %v1084 = vpop.f32.mrb[0].mxu0
          %1085 = vdwg.mxu0
          %1086 = vmatprep.subr.mxu0 0.0
          %v1087 = vand.u32 %v828, 4294901760
          %1088 = vmatpush1.msra.mxu0 %v1087
          %1089 = vmatprep.subr.mxu0 0.0
          %v1090 = vand.u32 %v829, 4294901760
          %1091 = vmatpush1.msra.mxu0 %v1090
          %1092 = vmatprep.subr.mxu0 0.0
          %v1093 = vand.u32 %v830, 4294901760
          %1094 = vmatpush1.msra.mxu0 %v1093
          %1095 = vmatprep.subr.mxu0 0.0
          %v1096 = vand.u32 %v831, 4294901760
          %1097 = vmatpush1.msra.mxu0 %v1096
          %1098 = vmatprep.subr.mxu0 0.0
          %1099 = vmatpush1.msra.mxu0 0.0
          %1100 = vmatprep.subr.mxu0 0.0
          %1101 = vmatpush1.msra.mxu0 0.0
          %1102 = vmatprep.subr.mxu0 0.0
          %1103 = vmatpush1.msra.mxu0 0.0
          %1104 = vmatprep.subr.mxu0 0.0
          %1105 = vmatpush1.msra.mxu0 0.0
          %1106 = vmatprep.subr.mxu0 0.0
          %1107 = vmatpush1.msra.mxu0 0.0
          %1108 = vmatprep.subr.mxu0 0.0
          %1109 = vmatpush1.msra.mxu0 0.0
          %1110 = vmatprep.subr.mxu0 0.0
          %1111 = vmatpush1.msra.mxu0 0.0
          %1112 = vmatprep.subr.mxu0 0.0
          %1113 = vmatpush1.msra.mxu0 0.0
          %1114 = vmatprep.subr.mxu0 0.0
          %1115 = vmatpush1.msra.mxu0 0.0
          %1116 = vmatprep.subr.mxu0 0.0
          %1117 = vmatpush1.msra.mxu0 0.0
          %1118 = vmatprep.subr.mxu0 0.0
          %1119 = vmatpush1.msra.mxu0 0.0
          %1120 = vmatprep.subr.mxu0 0.0
          %1121 = vmatpush1.msra.mxu0 0.0
          %1122 = vmatprep.subr.mxu0 0.0
          %1123 = vmatpush1.msra.mxu0 0.0
          %1124 = vmatprep.subr.mxu0 0.0
          %1125 = vmatpush1.msra.mxu0 0.0
          %1126 = vmatprep.subr.mxu0 0.0
          %1127 = vmatpush1.msra.mxu0 0.0
          %1128 = vmatprep.subr.mxu0 0.0
          %1129 = vmatpush1.msra.mxu0 0.0
          %1130 = vmatprep.subr.mxu0 0.0
          %1131 = vmatpush1.msra.mxu0 0.0
          %1132 = vmatprep.subr.mxu0 0.0
          %1133 = vmatpush1.msra.mxu0 0.0
          %1134 = vmatprep.subr.mxu0 0.0
          %1135 = vmatpush1.msra.mxu0 0.0
          %1136 = vmatprep.subr.mxu0 0.0
          %1137 = vmatpush1.msra.mxu0 0.0
          %1138 = vmatprep.subr.mxu0 0.0
          %1139 = vmatpush1.msra.mxu0 0.0
          %1140 = vmatprep.subr.mxu0 0.0
          %1141 = vmatpush1.msra.mxu0 0.0
          %1142 = vmatprep.subr.mxu0 0.0
          %1143 = vmatpush1.msra.mxu0 0.0
          %1144 = vmatprep.subr.mxu0 0.0
          %1145 = vmatpush1.msra.mxu0 0.0
          %1146 = vmatprep.subr.mxu0 0.0
          %1147 = vmatpush1.msra.mxu0 0.0
          %1148 = vmatprep.subr.mxu0 0.0
          %1149 = vmatpush1.msra.mxu0 0.0
          %1150 = vmatprep.subr.mxu0 0.0
          %1151 = vmatpush1.msra.mxu0 0.0
          %1152 = vmatprep.subr.mxu0 0.0
          %1153 = vmatpush1.msra.mxu0 0.0
          %1154 = vmatprep.mubr.f32.mxu0 0.0
          %v1155 = vand.u32 %v834, 4294901760
          %v1156 = vsub.f32 %v834, %v1155
          %v1157 = vand.u32 %v1156, 4294901760
          %1158 = vmatmul.mubr.f32.gmra.mrb[0].mxu0 %v1157
          %v1159 = vpop.f32.mrb[0].mxu0
          %v1160 = vadd.f32 %v1083, %v1159
          %v1161 = vpop.f32.mrb[0].mxu0
          %1162 = vdwg.mxu0
          %1163 = vmatprep.subr.mxu0 0.0
          %v1164 = vand.u32 %v828, 4294901760
          %v1165 = vsub.f32 %v828, %v1164
          %v1166 = vand.u32 %v1165, 4294901760
          %1167 = vmatpush1.msra.mxu0 %v1166
          %1168 = vmatprep.subr.mxu0 0.0
          %v1169 = vand.u32 %v829, 4294901760
          %v1170 = vsub.f32 %v829, %v1169
          %v1171 = vand.u32 %v1170, 4294901760
          %1172 = vmatpush1.msra.mxu0 %v1171
          %1173 = vmatprep.subr.mxu0 0.0
          %v1174 = vand.u32 %v830, 4294901760
          %v1175 = vsub.f32 %v830, %v1174
          %v1176 = vand.u32 %v1175, 4294901760
          %1177 = vmatpush1.msra.mxu0 %v1176
          %1178 = vmatprep.subr.mxu0 0.0
          %v1179 = vand.u32 %v831, 4294901760
          %v1180 = vsub.f32 %v831, %v1179
          %v1181 = vand.u32 %v1180, 4294901760
          %1182 = vmatpush1.msra.mxu0 %v1181
          %1183 = vmatprep.subr.mxu0 0.0
          %1184 = vmatpush1.msra.mxu0 0.0
          %1185 = vmatprep.subr.mxu0 0.0
          %1186 = vmatpush1.msra.mxu0 0.0
          %1187 = vmatprep.subr.mxu0 0.0
          %1188 = vmatpush1.msra.mxu0 0.0
          %1189 = vmatprep.subr.mxu0 0.0
          %1190 = vmatpush1.msra.mxu0 0.0
          %1191 = vmatprep.subr.mxu0 0.0
          %1192 = vmatpush1.msra.mxu0 0.0
          %1193 = vmatprep.subr.mxu0 0.0
          %1194 = vmatpush1.msra.mxu0 0.0
          %1195 = vmatprep.subr.mxu0 0.0
          %1196 = vmatpush1.msra.mxu0 0.0
          %1197 = vmatprep.subr.mxu0 0.0
          %1198 = vmatpush1.msra.mxu0 0.0
          %1199 = vmatprep.subr.mxu0 0.0
          %1200 = vmatpush1.msra.mxu0 0.0
          %1201 = vmatprep.subr.mxu0 0.0
          %1202 = vmatpush1.msra.mxu0 0.0
          %1203 = vmatprep.subr.mxu0 0.0
          %1204 = vmatpush1.msra.mxu0 0.0
          %1205 = vmatprep.subr.mxu0 0.0
          %1206 = vmatpush1.msra.mxu0 0.0
          %1207 = vmatprep.subr.mxu0 0.0
          %1208 = vmatpush1.msra.mxu0 0.0
          %1209 = vmatprep.subr.mxu0 0.0
          %1210 = vmatpush1.msra.mxu0 0.0
          %1211 = vmatprep.subr.mxu0 0.0
          %1212 = vmatpush1.msra.mxu0 0.0
          %1213 = vmatprep.subr.mxu0 0.0
          %1214 = vmatpush1.msra.mxu0 0.0
          %1215 = vmatprep.subr.mxu0 0.0
          %1216 = vmatpush1.msra.mxu0 0.0
          %1217 = vmatprep.subr.mxu0 0.0
          %1218 = vmatpush1.msra.mxu0 0.0
          %1219 = vmatprep.subr.mxu0 0.0
          %1220 = vmatpush1.msra.mxu0 0.0
          %1221 = vmatprep.subr.mxu0 0.0
          %1222 = vmatpush1.msra.mxu0 0.0
          %1223 = vmatprep.subr.mxu0 0.0
          %1224 = vmatpush1.msra.mxu0 0.0
          %1225 = vmatprep.subr.mxu0 0.0
          %1226 = vmatpush1.msra.mxu0 0.0
          %1227 = vmatprep.subr.mxu0 0.0
          %1228 = vmatpush1.msra.mxu0 0.0
          %1229 = vmatprep.subr.mxu0 0.0
          %1230 = vmatpush1.msra.mxu0 0.0
          %1231 = vmatprep.subr.mxu0 0.0
          %1232 = vmatpush1.msra.mxu0 0.0
          %1233 = vmatprep.subr.mxu0 0.0
          %1234 = vmatpush1.msra.mxu0 0.0
          %1235 = vmatprep.subr.mxu0 0.0
          %1236 = vmatpush1.msra.mxu0 0.0
          %1237 = vmatprep.subr.mxu0 0.0
          %1238 = vmatpush1.msra.mxu0 0.0
          %1239 = vmatprep.mubr.f32.mxu0 0.0
          %v1240 = vand.u32 %v834, 4294901760
          %1241 = vmatmul.mubr.f32.gmra.mrb[0].mxu0 %v1240
          %v1242 = vpop.f32.mrb[0].mxu0
          %v1243 = vadd.f32 %v1160, %v1242
          %v1244 = vpop.f32.mrb[0].mxu0
          %1245 = vdwg.mxu0
          %1246 = vmatprep.subr.mxu0 0.0
          %v1247 = vand.u32 %v828, 4294901760
          %1248 = vmatpush1.msra.mxu0 %v1247
          %1249 = vmatprep.subr.mxu0 0.0
          %v1250 = vand.u32 %v829, 4294901760
          %1251 = vmatpush1.msra.mxu0 %v1250
          %1252 = vmatprep.subr.mxu0 0.0
          %v1253 = vand.u32 %v830, 4294901760
          %1254 = vmatpush1.msra.mxu0 %v1253
          %1255 = vmatprep.subr.mxu0 0.0
          %v1256 = vand.u32 %v831, 4294901760
          %1257 = vmatpush1.msra.mxu0 %v1256
          %1258 = vmatprep.subr.mxu0 0.0
          %1259 = vmatpush1.msra.mxu0 0.0
          %1260 = vmatprep.subr.mxu0 0.0
          %1261 = vmatpush1.msra.mxu0 0.0
          %1262 = vmatprep.subr.mxu0 0.0
          %1263 = vmatpush1.msra.mxu0 0.0
          %1264 = vmatprep.subr.mxu0 0.0
          %1265 = vmatpush1.msra.mxu0 0.0
          %1266 = vmatprep.subr.mxu0 0.0
          %1267 = vmatpush1.msra.mxu0 0.0
          %1268 = vmatprep.subr.mxu0 0.0
          %1269 = vmatpush1.msra.mxu0 0.0
          %1270 = vmatprep.subr.mxu0 0.0
          %1271 = vmatpush1.msra.mxu0 0.0
          %1272 = vmatprep.subr.mxu0 0.0
          %1273 = vmatpush1.msra.mxu0 0.0
          %1274 = vmatprep.subr.mxu0 0.0
          %1275 = vmatpush1.msra.mxu0 0.0
          %1276 = vmatprep.subr.mxu0 0.0
          %1277 = vmatpush1.msra.mxu0 0.0
          %1278 = vmatprep.subr.mxu0 0.0
          %1279 = vmatpush1.msra.mxu0 0.0
          %1280 = vmatprep.subr.mxu0 0.0
          %1281 = vmatpush1.msra.mxu0 0.0
          %1282 = vmatprep.subr.mxu0 0.0
          %1283 = vmatpush1.msra.mxu0 0.0
          %1284 = vmatprep.subr.mxu0 0.0
          %1285 = vmatpush1.msra.mxu0 0.0
          %1286 = vmatprep.subr.mxu0 0.0
          %1287 = vmatpush1.msra.mxu0 0.0
          %1288 = vmatprep.subr.mxu0 0.0
          %1289 = vmatpush1.msra.mxu0 0.0
          %1290 = vmatprep.subr.mxu0 0.0
          %1291 = vmatpush1.msra.mxu0 0.0
          %1292 = vmatprep.subr.mxu0 0.0
          %1293 = vmatpush1.msra.mxu0 0.0
          %1294 = vmatprep.subr.mxu0 0.0
          %1295 = vmatpush1.msra.mxu0 0.0
          %1296 = vmatprep.subr.mxu0 0.0
          %1297 = vmatpush1.msra.mxu0 0.0
          %1298 = vmatprep.subr.mxu0 0.0
          %1299 = vmatpush1.msra.mxu0 0.0
          %1300 = vmatprep.subr.mxu0 0.0
          %1301 = vmatpush1.msra.mxu0 0.0
          %1302 = vmatprep.subr.mxu0 0.0
          %1303 = vmatpush1.msra.mxu0 0.0
          %1304 = vmatprep.subr.mxu0 0.0
          %1305 = vmatpush1.msra.mxu0 0.0
          %1306 = vmatprep.subr.mxu0 0.0
          %1307 = vmatpush1.msra.mxu0 0.0
          %1308 = vmatprep.subr.mxu0 0.0
          %1309 = vmatpush1.msra.mxu0 0.0
          %1310 = vmatprep.subr.mxu0 0.0
          %1311 = vmatpush1.msra.mxu0 0.0
          %1312 = vmatprep.subr.mxu0 0.0
          %1313 = vmatpush1.msra.mxu0 0.0
          %1314 = vmatprep.mubr.f32.mxu0 0.0
          %v1315 = vand.u32 %v834, 4294901760
          %1316 = vmatmul.mubr.f32.gmra.mrb[0].mxu0 %v1315
          %v1317 = vpop.f32.mrb[0].mxu0
          %v1318 = vadd.f32 %v1243, %v1317
          %v1319 = vpop.f32.mrb[0].mxu0
          %1320 = vdwg.mxu0
          %v1321 = vld [vmem:[%s6] sm:$0x1]
          %v1323 = vlaneseq
          %v1324 = vshrl.u32 %v1323, 7
          %v1325 = vsub.s32 0, %v1324
          %v1326 = vrot.slane %v1321, %v1325
          %v1328 = vadd.f32 %v1318, %v1326
          %vm1329 = vcmask 523264
          %1330 = vst.msk [vmem:[#allocation2] sm:$0xff] %vm1329, %v1328
          %v1331 = vld [vmem:[#allocation9] sm:$0xff]
          %v1332 = vld [vmem:[#allocation9 + $0x8] sm:$0xff]
          %v1333 = vld [vmem:[#allocation9 + $0x10] sm:$0xff]
          %v1334 = vld [vmem:[#allocation9 + $0x18] sm:$0xff]
          %1335 = vmatprep.subr.mxu0 0.0
          %v1336 = vand.u32 %v1331, 4294901760
          %1337 = vmatpush1.msra.mxu0 %v1336
          %1338 = vmatprep.subr.mxu0 0.0
          %v1339 = vand.u32 %v1332, 4294901760
          %1340 = vmatpush1.msra.mxu0 %v1339
          %1341 = vmatprep.subr.mxu0 0.0
          %v1342 = vand.u32 %v1333, 4294901760
          %1343 = vmatpush1.msra.mxu0 %v1342
          %1344 = vmatprep.subr.mxu0 0.0
          %v1345 = vand.u32 %v1334, 4294901760
          %1346 = vmatpush1.msra.mxu0 %v1345
          %1347 = vmatprep.subr.mxu0 0.0
          %1348 = vmatpush1.msra.mxu0 0.0
          %1349 = vmatprep.subr.mxu0 0.0
          %1350 = vmatpush1.msra.mxu0 0.0
          %1351 = vmatprep.subr.mxu0 0.0
          %1352 = vmatpush1.msra.mxu0 0.0
          %1353 = vmatprep.subr.mxu0 0.0
          %1354 = vmatpush1.msra.mxu0 0.0
          %1355 = vmatprep.subr.mxu0 0.0
          %1356 = vmatpush1.msra.mxu0 0.0
          %1357 = vmatprep.subr.mxu0 0.0
          %1358 = vmatpush1.msra.mxu0 0.0
          %1359 = vmatprep.subr.mxu0 0.0
          %1360 = vmatpush1.msra.mxu0 0.0
          %1361 = vmatprep.subr.mxu0 0.0
          %1362 = vmatpush1.msra.mxu0 0.0
          %1363 = vmatprep.subr.mxu0 0.0
          %1364 = vmatpush1.msra.mxu0 0.0
          %1365 = vmatprep.subr.mxu0 0.0
          %1366 = vmatpush1.msra.mxu0 0.0
          %1367 = vmatprep.subr.mxu0 0.0
          %1368 = vmatpush1.msra.mxu0 0.0
          %1369 = vmatprep.subr.mxu0 0.0
          %1370 = vmatpush1.msra.mxu0 0.0
          %1371 = vmatprep.subr.mxu0 0.0
          %1372 = vmatpush1.msra.mxu0 0.0
          %1373 = vmatprep.subr.mxu0 0.0
          %1374 = vmatpush1.msra.mxu0 0.0
          %1375 = vmatprep.subr.mxu0 0.0
          %1376 = vmatpush1.msra.mxu0 0.0
          %1377 = vmatprep.subr.mxu0 0.0
          %1378 = vmatpush1.msra.mxu0 0.0
          %1379 = vmatprep.subr.mxu0 0.0
          %1380 = vmatpush1.msra.mxu0 0.0
          %1381 = vmatprep.subr.mxu0 0.0
          %1382 = vmatpush1.msra.mxu0 0.0
          %1383 = vmatprep.subr.mxu0 0.0
          %1384 = vmatpush1.msra.mxu0 0.0
          %1385 = vmatprep.subr.mxu0 0.0
          %1386 = vmatpush1.msra.mxu0 0.0
          %1387 = vmatprep.subr.mxu0 0.0
          %1388 = vmatpush1.msra.mxu0 0.0
          %1389 = vmatprep.subr.mxu0 0.0
          %1390 = vmatpush1.msra.mxu0 0.0
          %1391 = vmatprep.subr.mxu0 0.0
          %1392 = vmatpush1.msra.mxu0 0.0
          %1393 = vmatprep.subr.mxu0 0.0
          %1394 = vmatpush1.msra.mxu0 0.0
          %1395 = vmatprep.subr.mxu0 0.0
          %1396 = vmatpush1.msra.mxu0 0.0
          %1397 = vmatprep.subr.mxu0 0.0
          %1398 = vmatpush1.msra.mxu0 0.0
          %1399 = vmatprep.subr.mxu0 0.0
          %1400 = vmatpush1.msra.mxu0 0.0
          %1401 = vmatprep.subr.mxu0 0.0
          %1402 = vmatpush1.msra.mxu0 0.0
          %1403 = vmatprep.mubr.f32.mxu0 0.0
          %v1404 = vand.u32 %v834, 4294901760
          %v1405 = vsub.f32 %v834, %v1404
          %v1406 = vand.u32 %v1405, 4294901760
          %v1407 = vsub.f32 %v1405, %v1406
          %v1408 = vand.u32 %v1407, 4294901760
          %1409 = vmatmul.mubr.f32.gmra.mrb[0].mxu0 %v1408
          %v1410 = vpop.f32.mrb[0].mxu0
          %v1411 = vadd.f32 0.0, %v1410
          %v1412 = vpop.f32.mrb[0].mxu0
          %1413 = vdwg.mxu0
          %1414 = vmatprep.subr.mxu0 0.0
          %v1415 = vand.u32 %v1331, 4294901760
          %v1416 = vsub.f32 %v1331, %v1415
          %v1417 = vand.u32 %v1416, 4294901760
          %v1418 = vsub.f32 %v1416, %v1417
          %v1419 = vand.u32 %v1418, 4294901760
          %1420 = vmatpush1.msra.mxu0 %v1419
          %1421 = vmatprep.subr.mxu0 0.0
          %v1422 = vand.u32 %v1332, 4294901760
          %v1423 = vsub.f32 %v1332, %v1422
          %v1424 = vand.u32 %v1423, 4294901760
          %v1425 = vsub.f32 %v1423, %v1424
          %v1426 = vand.u32 %v1425, 4294901760
          %1427 = vmatpush1.msra.mxu0 %v1426
          %1428 = vmatprep.subr.mxu0 0.0
          %v1429 = vand.u32 %v1333, 4294901760
          %v1430 = vsub.f32 %v1333, %v1429
          %v1431 = vand.u32 %v1430, 4294901760
          %v1432 = vsub.f32 %v1430, %v1431
          %v1433 = vand.u32 %v1432, 4294901760
          %1434 = vmatpush1.msra.mxu0 %v1433
          %1435 = vmatprep.subr.mxu0 0.0
          %v1436 = vand.u32 %v1334, 4294901760
          %v1437 = vsub.f32 %v1334, %v1436
          %v1438 = vand.u32 %v1437, 4294901760
          %v1439 = vsub.f32 %v1437, %v1438
          %v1440 = vand.u32 %v1439, 4294901760
          %1441 = vmatpush1.msra.mxu0 %v1440
          %1442 = vmatprep.subr.mxu0 0.0
          %1443 = vmatpush1.msra.mxu0 0.0
          %1444 = vmatprep.subr.mxu0 0.0
          %1445 = vmatpush1.msra.mxu0 0.0
          %1446 = vmatprep.subr.mxu0 0.0
          %1447 = vmatpush1.msra.mxu0 0.0
          %1448 = vmatprep.subr.mxu0 0.0
          %1449 = vmatpush1.msra.mxu0 0.0
          %1450 = vmatprep.subr.mxu0 0.0
          %1451 = vmatpush1.msra.mxu0 0.0
          %1452 = vmatprep.subr.mxu0 0.0
          %1453 = vmatpush1.msra.mxu0 0.0
          %1454 = vmatprep.subr.mxu0 0.0
          %1455 = vmatpush1.msra.mxu0 0.0
          %1456 = vmatprep.subr.mxu0 0.0
          %1457 = vmatpush1.msra.mxu0 0.0
          %1458 = vmatprep.subr.mxu0 0.0
          %1459 = vmatpush1.msra.mxu0 0.0
          %1460 = vmatprep.subr.mxu0 0.0
          %1461 = vmatpush1.msra.mxu0 0.0
          %1462 = vmatprep.subr.mxu0 0.0
          %1463 = vmatpush1.msra.mxu0 0.0
          %1464 = vmatprep.subr.mxu0 0.0
          %1465 = vmatpush1.msra.mxu0 0.0
          %1466 = vmatprep.subr.mxu0 0.0
          %1467 = vmatpush1.msra.mxu0 0.0
          %1468 = vmatprep.subr.mxu0 0.0
          %1469 = vmatpush1.msra.mxu0 0.0
          %1470 = vmatprep.subr.mxu0 0.0
          %1471 = vmatpush1.msra.mxu0 0.0
          %1472 = vmatprep.subr.mxu0 0.0
          %1473 = vmatpush1.msra.mxu0 0.0
          %1474 = vmatprep.subr.mxu0 0.0
          %1475 = vmatpush1.msra.mxu0 0.0
          %1476 = vmatprep.subr.mxu0 0.0
          %1477 = vmatpush1.msra.mxu0 0.0
          %1478 = vmatprep.subr.mxu0 0.0
          %1479 = vmatpush1.msra.mxu0 0.0
          %1480 = vmatprep.subr.mxu0 0.0
          %1481 = vmatpush1.msra.mxu0 0.0
          %1482 = vmatprep.subr.mxu0 0.0
          %1483 = vmatpush1.msra.mxu0 0.0
          %1484 = vmatprep.subr.mxu0 0.0
          %1485 = vmatpush1.msra.mxu0 0.0
          %1486 = vmatprep.subr.mxu0 0.0
          %1487 = vmatpush1.msra.mxu0 0.0
          %1488 = vmatprep.subr.mxu0 0.0
          %1489 = vmatpush1.msra.mxu0 0.0
          %1490 = vmatprep.subr.mxu0 0.0
          %1491 = vmatpush1.msra.mxu0 0.0
          %1492 = vmatprep.subr.mxu0 0.0
          %1493 = vmatpush1.msra.mxu0 0.0
          %1494 = vmatprep.subr.mxu0 0.0
          %1495 = vmatpush1.msra.mxu0 0.0
          %1496 = vmatprep.subr.mxu0 0.0
          %1497 = vmatpush1.msra.mxu0 0.0
          %1498 = vmatprep.mubr.f32.mxu0 0.0
          %v1499 = vand.u32 %v834, 4294901760
          %1500 = vmatmul.mubr.f32.gmra.mrb[0].mxu0 %v1499
          %v1501 = vpop.f32.mrb[0].mxu0
          %v1502 = vadd.f32 %v1411, %v1501
          %v1503 = vpop.f32.mrb[0].mxu0
          %1504 = vdwg.mxu0
          %1505 = vmatprep.subr.mxu0 0.0
          %v1506 = vand.u32 %v1331, 4294901760
          %v1507 = vsub.f32 %v1331, %v1506
          %1508 = vmatpush1.msra.mxu0 %v1507
          %1509 = vmatprep.subr.mxu0 0.0
          %v1510 = vand.u32 %v1332, 4294901760
          %v1511 = vsub.f32 %v1332, %v1510
          %1512 = vmatpush1.msra.mxu0 %v1511
          %1513 = vmatprep.subr.mxu0 0.0
          %v1514 = vand.u32 %v1333, 4294901760
          %v1515 = vsub.f32 %v1333, %v1514
          %1516 = vmatpush1.msra.mxu0 %v1515
          %1517 = vmatprep.subr.mxu0 0.0
          %v1518 = vand.u32 %v1334, 4294901760
          %v1519 = vsub.f32 %v1334, %v1518
          %1520 = vmatpush1.msra.mxu0 %v1519
          %1521 = vmatprep.subr.mxu0 0.0
          %1522 = vmatpush1.msra.mxu0 0.0
          %1523 = vmatprep.subr.mxu0 0.0
          %1524 = vmatpush1.msra.mxu0 0.0
          %1525 = vmatprep.subr.mxu0 0.0
          %1526 = vmatpush1.msra.mxu0 0.0
          %1527 = vmatprep.subr.mxu0 0.0
          %1528 = vmatpush1.msra.mxu0 0.0
          %1529 = vmatprep.subr.mxu0 0.0
          %1530 = vmatpush1.msra.mxu0 0.0
          %1531 = vmatprep.subr.mxu0 0.0
          %1532 = vmatpush1.msra.mxu0 0.0
          %1533 = vmatprep.subr.mxu0 0.0
          %1534 = vmatpush1.msra.mxu0 0.0
          %1535 = vmatprep.subr.mxu0 0.0
          %1536 = vmatpush1.msra.mxu0 0.0
          %1537 = vmatprep.subr.mxu0 0.0
          %1538 = vmatpush1.msra.mxu0 0.0
          %1539 = vmatprep.subr.mxu0 0.0
          %1540 = vmatpush1.msra.mxu0 0.0
          %1541 = vmatprep.subr.mxu0 0.0
          %1542 = vmatpush1.msra.mxu0 0.0
          %1543 = vmatprep.subr.mxu0 0.0
          %1544 = vmatpush1.msra.mxu0 0.0
          %1545 = vmatprep.subr.mxu0 0.0
          %1546 = vmatpush1.msra.mxu0 0.0
          %1547 = vmatprep.subr.mxu0 0.0
          %1548 = vmatpush1.msra.mxu0 0.0
          %1549 = vmatprep.subr.mxu0 0.0
          %1550 = vmatpush1.msra.mxu0 0.0
          %1551 = vmatprep.subr.mxu0 0.0
          %1552 = vmatpush1.msra.mxu0 0.0
          %1553 = vmatprep.subr.mxu0 0.0
          %1554 = vmatpush1.msra.mxu0 0.0
          %1555 = vmatprep.subr.mxu0 0.0
          %1556 = vmatpush1.msra.mxu0 0.0
          %1557 = vmatprep.subr.mxu0 0.0
          %1558 = vmatpush1.msra.mxu0 0.0
          %1559 = vmatprep.subr.mxu0 0.0
          %1560 = vmatpush1.msra.mxu0 0.0
          %1561 = vmatprep.subr.mxu0 0.0
          %1562 = vmatpush1.msra.mxu0 0.0
          %1563 = vmatprep.subr.mxu0 0.0
          %1564 = vmatpush1.msra.mxu0 0.0
          %1565 = vmatprep.subr.mxu0 0.0
          %1566 = vmatpush1.msra.mxu0 0.0
          %1567 = vmatprep.subr.mxu0 0.0
          %1568 = vmatpush1.msra.mxu0 0.0
          %1569 = vmatprep.subr.mxu0 0.0
          %1570 = vmatpush1.msra.mxu0 0.0
          %1571 = vmatprep.subr.mxu0 0.0
          %1572 = vmatpush1.msra.mxu0 0.0
          %1573 = vmatprep.subr.mxu0 0.0
          %1574 = vmatpush1.msra.mxu0 0.0
          %1575 = vmatprep.subr.mxu0 0.0
          %1576 = vmatpush1.msra.mxu0 0.0
          %1577 = vmatprep.mubr.f32.mxu0 0.0
          %v1578 = vand.u32 %v834, 4294901760
          %v1579 = vsub.f32 %v834, %v1578
          %1580 = vmatmul.mubr.f32.gmra.mrb[0].mxu0 %v1579
          %v1581 = vpop.f32.mrb[0].mxu0
          %v1582 = vadd.f32 %v1502, %v1581
          %v1583 = vpop.f32.mrb[0].mxu0
          %1584 = vdwg.mxu0
          %1585 = vmatprep.subr.mxu0 0.0
          %v1586 = vand.u32 %v1331, 4294901760
          %1587 = vmatpush1.msra.mxu0 %v1586
          %1588 = vmatprep.subr.mxu0 0.0
          %v1589 = vand.u32 %v1332, 4294901760
          %1590 = vmatpush1.msra.mxu0 %v1589
          %1591 = vmatprep.subr.mxu0 0.0
          %v1592 = vand.u32 %v1333, 4294901760
          %1593 = vmatpush1.msra.mxu0 %v1592
          %1594 = vmatprep.subr.mxu0 0.0
          %v1595 = vand.u32 %v1334, 4294901760
          %1596 = vmatpush1.msra.mxu0 %v1595
          %1597 = vmatprep.subr.mxu0 0.0
          %1598 = vmatpush1.msra.mxu0 0.0
          %1599 = vmatprep.subr.mxu0 0.0
          %1600 = vmatpush1.msra.mxu0 0.0
          %1601 = vmatprep.subr.mxu0 0.0
          %1602 = vmatpush1.msra.mxu0 0.0
          %1603 = vmatprep.subr.mxu0 0.0
          %1604 = vmatpush1.msra.mxu0 0.0
          %1605 = vmatprep.subr.mxu0 0.0
          %1606 = vmatpush1.msra.mxu0 0.0
          %1607 = vmatprep.subr.mxu0 0.0
          %1608 = vmatpush1.msra.mxu0 0.0
          %1609 = vmatprep.subr.mxu0 0.0
          %1610 = vmatpush1.msra.mxu0 0.0
          %1611 = vmatprep.subr.mxu0 0.0
          %1612 = vmatpush1.msra.mxu0 0.0
          %1613 = vmatprep.subr.mxu0 0.0
          %1614 = vmatpush1.msra.mxu0 0.0
          %1615 = vmatprep.subr.mxu0 0.0
          %1616 = vmatpush1.msra.mxu0 0.0
          %1617 = vmatprep.subr.mxu0 0.0
          %1618 = vmatpush1.msra.mxu0 0.0
          %1619 = vmatprep.subr.mxu0 0.0
          %1620 = vmatpush1.msra.mxu0 0.0
          %1621 = vmatprep.subr.mxu0 0.0
          %1622 = vmatpush1.msra.mxu0 0.0
          %1623 = vmatprep.subr.mxu0 0.0
          %1624 = vmatpush1.msra.mxu0 0.0
          %1625 = vmatprep.subr.mxu0 0.0
          %1626 = vmatpush1.msra.mxu0 0.0
          %1627 = vmatprep.subr.mxu0 0.0
          %1628 = vmatpush1.msra.mxu0 0.0
          %1629 = vmatprep.subr.mxu0 0.0
          %1630 = vmatpush1.msra.mxu0 0.0
          %1631 = vmatprep.subr.mxu0 0.0
          %1632 = vmatpush1.msra.mxu0 0.0
          %1633 = vmatprep.subr.mxu0 0.0
          %1634 = vmatpush1.msra.mxu0 0.0
          %1635 = vmatprep.subr.mxu0 0.0
          %1636 = vmatpush1.msra.mxu0 0.0
          %1637 = vmatprep.subr.mxu0 0.0
          %1638 = vmatpush1.msra.mxu0 0.0
          %1639 = vmatprep.subr.mxu0 0.0
          %1640 = vmatpush1.msra.mxu0 0.0
          %1641 = vmatprep.subr.mxu0 0.0
          %1642 = vmatpush1.msra.mxu0 0.0
          %1643 = vmatprep.subr.mxu0 0.0
          %1644 = vmatpush1.msra.mxu0 0.0
          %1645 = vmatprep.subr.mxu0 0.0
          %1646 = vmatpush1.msra.mxu0 0.0
          %1647 = vmatprep.subr.mxu0 0.0
          %1648 = vmatpush1.msra.mxu0 0.0
          %1649 = vmatprep.subr.mxu0 0.0
          %1650 = vmatpush1.msra.mxu0 0.0
          %1651 = vmatprep.subr.mxu0 0.0
          %1652 = vmatpush1.msra.mxu0 0.0
          %1653 = vmatprep.mubr.f32.mxu0 0.0
          %v1654 = vand.u32 %v834, 4294901760
          %v1655 = vsub.f32 %v834, %v1654
          %v1656 = vand.u32 %v1655, 4294901760
          %1657 = vmatmul.mubr.f32.gmra.mrb[0].mxu0 %v1656
          %v1658 = vpop.f32.mrb[0].mxu0
          %v1659 = vadd.f32 %v1582, %v1658
          %v1660 = vpop.f32.mrb[0].mxu0
          %1661 = vdwg.mxu0
          %1662 = vmatprep.subr.mxu0 0.0
          %v1663 = vand.u32 %v1331, 4294901760
          %v1664 = vsub.f32 %v1331, %v1663
          %v1665 = vand.u32 %v1664, 4294901760
          %1666 = vmatpush1.msra.mxu0 %v1665
          %1667 = vmatprep.subr.mxu0 0.0
          %v1668 = vand.u32 %v1332, 4294901760
          %v1669 = vsub.f32 %v1332, %v1668
          %v1670 = vand.u32 %v1669, 4294901760
          %1671 = vmatpush1.msra.mxu0 %v1670
          %1672 = vmatprep.subr.mxu0 0.0
          %v1673 = vand.u32 %v1333, 4294901760
          %v1674 = vsub.f32 %v1333, %v1673
          %v1675 = vand.u32 %v1674, 4294901760
          %1676 = vmatpush1.msra.mxu0 %v1675
          %1677 = vmatprep.subr.mxu0 0.0
          %v1678 = vand.u32 %v1334, 4294901760
          %v1679 = vsub.f32 %v1334, %v1678
          %v1680 = vand.u32 %v1679, 4294901760
          %1681 = vmatpush1.msra.mxu0 %v1680
          %1682 = vmatprep.subr.mxu0 0.0
          %1683 = vmatpush1.msra.mxu0 0.0
          %1684 = vmatprep.subr.mxu0 0.0
          %1685 = vmatpush1.msra.mxu0 0.0
          %1686 = vmatprep.subr.mxu0 0.0
          %1687 = vmatpush1.msra.mxu0 0.0
          %1688 = vmatprep.subr.mxu0 0.0
          %1689 = vmatpush1.msra.mxu0 0.0
          %1690 = vmatprep.subr.mxu0 0.0
          %1691 = vmatpush1.msra.mxu0 0.0
          %1692 = vmatprep.subr.mxu0 0.0
          %1693 = vmatpush1.msra.mxu0 0.0
          %1694 = vmatprep.subr.mxu0 0.0
          %1695 = vmatpush1.msra.mxu0 0.0
          %1696 = vmatprep.subr.mxu0 0.0
          %1697 = vmatpush1.msra.mxu0 0.0
          %1698 = vmatprep.subr.mxu0 0.0
          %1699 = vmatpush1.msra.mxu0 0.0
          %1700 = vmatprep.subr.mxu0 0.0
          %1701 = vmatpush1.msra.mxu0 0.0
          %1702 = vmatprep.subr.mxu0 0.0
          %1703 = vmatpush1.msra.mxu0 0.0
          %1704 = vmatprep.subr.mxu0 0.0
          %1705 = vmatpush1.msra.mxu0 0.0
          %1706 = vmatprep.subr.mxu0 0.0
          %1707 = vmatpush1.msra.mxu0 0.0
          %1708 = vmatprep.subr.mxu0 0.0
          %1709 = vmatpush1.msra.mxu0 0.0
          %1710 = vmatprep.subr.mxu0 0.0
          %1711 = vmatpush1.msra.mxu0 0.0
          %1712 = vmatprep.subr.mxu0 0.0
          %1713 = vmatpush1.msra.mxu0 0.0
          %1714 = vmatprep.subr.mxu0 0.0
          %1715 = vmatpush1.msra.mxu0 0.0
          %1716 = vmatprep.subr.mxu0 0.0
          %1717 = vmatpush1.msra.mxu0 0.0
          %1718 = vmatprep.subr.mxu0 0.0
          %1719 = vmatpush1.msra.mxu0 0.0
          %1720 = vmatprep.subr.mxu0 0.0
          %1721 = vmatpush1.msra.mxu0 0.0
          %1722 = vmatprep.subr.mxu0 0.0
          %1723 = vmatpush1.msra.mxu0 0.0
          %1724 = vmatprep.subr.mxu0 0.0
          %1725 = vmatpush1.msra.mxu0 0.0
          %1726 = vmatprep.subr.mxu0 0.0
          %1727 = vmatpush1.msra.mxu0 0.0
          %1728 = vmatprep.subr.mxu0 0.0
          %1729 = vmatpush1.msra.mxu0 0.0
          %1730 = vmatprep.subr.mxu0 0.0
          %1731 = vmatpush1.msra.mxu0 0.0
          %1732 = vmatprep.subr.mxu0 0.0
          %1733 = vmatpush1.msra.mxu0 0.0
          %1734 = vmatprep.subr.mxu0 0.0
          %1735 = vmatpush1.msra.mxu0 0.0
          %1736 = vmatprep.subr.mxu0 0.0
          %1737 = vmatpush1.msra.mxu0 0.0
          %1738 = vmatprep.mubr.f32.mxu0 0.0
          %v1739 = vand.u32 %v834, 4294901760
          %1740 = vmatmul.mubr.f32.gmra.mrb[0].mxu0 %v1739
          %v1741 = vpop.f32.mrb[0].mxu0
          %v1742 = vadd.f32 %v1659, %v1741
          %v1743 = vpop.f32.mrb[0].mxu0
          %1744 = vdwg.mxu0
          %1745 = vmatprep.subr.mxu0 0.0
          %v1746 = vand.u32 %v1331, 4294901760
          %1747 = vmatpush1.msra.mxu0 %v1746
          %1748 = vmatprep.subr.mxu0 0.0
          %v1749 = vand.u32 %v1332, 4294901760
          %1750 = vmatpush1.msra.mxu0 %v1749
          %1751 = vmatprep.subr.mxu0 0.0
          %v1752 = vand.u32 %v1333, 4294901760
          %1753 = vmatpush1.msra.mxu0 %v1752
          %1754 = vmatprep.subr.mxu0 0.0
          %v1755 = vand.u32 %v1334, 4294901760
          %1756 = vmatpush1.msra.mxu0 %v1755
          %1757 = vmatprep.subr.mxu0 0.0
          %1758 = vmatpush1.msra.mxu0 0.0
          %1759 = vmatprep.subr.mxu0 0.0
          %1760 = vmatpush1.msra.mxu0 0.0
          %1761 = vmatprep.subr.mxu0 0.0
          %1762 = vmatpush1.msra.mxu0 0.0
          %1763 = vmatprep.subr.mxu0 0.0
          %1764 = vmatpush1.msra.mxu0 0.0
          %1765 = vmatprep.subr.mxu0 0.0
          %1766 = vmatpush1.msra.mxu0 0.0
          %1767 = vmatprep.subr.mxu0 0.0
          %1768 = vmatpush1.msra.mxu0 0.0
          %1769 = vmatprep.subr.mxu0 0.0
          %1770 = vmatpush1.msra.mxu0 0.0
          %1771 = vmatprep.subr.mxu0 0.0
          %1772 = vmatpush1.msra.mxu0 0.0
          %1773 = vmatprep.subr.mxu0 0.0
          %1774 = vmatpush1.msra.mxu0 0.0
          %1775 = vmatprep.subr.mxu0 0.0
          %1776 = vmatpush1.msra.mxu0 0.0
          %1777 = vmatprep.subr.mxu0 0.0
          %1778 = vmatpush1.msra.mxu0 0.0
          %1779 = vmatprep.subr.mxu0 0.0
          %1780 = vmatpush1.msra.mxu0 0.0
          %1781 = vmatprep.subr.mxu0 0.0
          %1782 = vmatpush1.msra.mxu0 0.0
          %1783 = vmatprep.subr.mxu0 0.0
          %1784 = vmatpush1.msra.mxu0 0.0
          %1785 = vmatprep.subr.mxu0 0.0
          %1786 = vmatpush1.msra.mxu0 0.0
          %1787 = vmatprep.subr.mxu0 0.0
          %1788 = vmatpush1.msra.mxu0 0.0
          %1789 = vmatprep.subr.mxu0 0.0
          %1790 = vmatpush1.msra.mxu0 0.0
          %1791 = vmatprep.subr.mxu0 0.0
          %1792 = vmatpush1.msra.mxu0 0.0
          %1793 = vmatprep.subr.mxu0 0.0
          %1794 = vmatpush1.msra.mxu0 0.0
          %1795 = vmatprep.subr.mxu0 0.0
          %1796 = vmatpush1.msra.mxu0 0.0
          %1797 = vmatprep.subr.mxu0 0.0
          %1798 = vmatpush1.msra.mxu0 0.0
          %1799 = vmatprep.subr.mxu0 0.0
          %1800 = vmatpush1.msra.mxu0 0.0
          %1801 = vmatprep.subr.mxu0 0.0
          %1802 = vmatpush1.msra.mxu0 0.0
          %1803 = vmatprep.subr.mxu0 0.0
          %1804 = vmatpush1.msra.mxu0 0.0
          %1805 = vmatprep.subr.mxu0 0.0
          %1806 = vmatpush1.msra.mxu0 0.0
          %1807 = vmatprep.subr.mxu0 0.0
          %1808 = vmatpush1.msra.mxu0 0.0
          %1809 = vmatprep.subr.mxu0 0.0
          %1810 = vmatpush1.msra.mxu0 0.0
          %1811 = vmatprep.subr.mxu0 0.0
          %1812 = vmatpush1.msra.mxu0 0.0
          %1813 = vmatprep.mubr.f32.mxu0 0.0
          %v1814 = vand.u32 %v834, 4294901760
          %1815 = vmatmul.mubr.f32.gmra.mrb[0].mxu0 %v1814
          %v1816 = vpop.f32.mrb[0].mxu0
          %v1817 = vadd.f32 %v1742, %v1816
          %v1818 = vpop.f32.mrb[0].mxu0
          %1819 = vdwg.mxu0
          %v1820 = vsub.f32 %v1817, %v825
          %1821 = vst.msk [vmem:[#allocation3] sm:$0xff] %vm1329, %v1820
          %1822 = vst.msk [vmem:[#allocation4] sm:$0xff] %vm832, 0.0
        $region64: #{agent_gnn_forward.2} parent=51 // pred_fallthru
          _
        %s1823 = sld [smem:[#allocation6 + %s32]]
        %s1824 = smul.u32 %s33, 8
        %p1825 = scmp.lt.s32.totalorder %s1824, %s1823
        // Predicated region
        $region65: #{agent_gnn_forward.2} parent=51 // pred_check
          %p1826 = pneg %p1825
        $region66: #{agent_gnn_forward.2} parent=51 // pred_check_branch
          %1828 = sbr.rel (%p1826) target = $region68
        $region67: #{agent_gnn_forward.2} parent=51 // pred_region
          %s1829 = scalar_lea.vmem [#allocation3], %s1824
          %v1830 = vld [vmem:[%s1829] sm:$0xff]
          %v1831 = vld [vmem:[#allocation2] sm:$0xff]
          %v1832 = vlaneseq
          %v1833 = vshrl.u32 %v1832, 7
          %v1834 = vsub.s32 0, %v1833
          %v1835 = vrot.slane %v1831, %v1834
          %1837 = vbcast.lane.b32.xlu0 %v1835, 256
          %v1838 = vpop.permute.xlu0 %1837
          %s1840 = sor.u32 256, 8
          %1841 = vbcast.lane.b32.xlu0 %v1835, %s1840
          %v1842 = vpop.permute.xlu0 %1841
          %s1844 = sor.u32 256, 16
          %1845 = vbcast.lane.b32.xlu0 %v1835, %s1844
          %v1846 = vpop.permute.xlu0 %1845
          %s1848 = sor.u32 256, 24
          %1849 = vbcast.lane.b32.xlu0 %v1835, %s1848
          %v1850 = vpop.permute.xlu0 %1849
          %s1852 = sor.u32 256, 32
          %1853 = vbcast.lane.b32.xlu0 %v1835, %s1852
          %v1854 = vpop.permute.xlu0 %1853
          %s1856 = sor.u32 256, 40
          %1857 = vbcast.lane.b32.xlu0 %v1835, %s1856
          %v1858 = vpop.permute.xlu0 %1857
          %s1860 = sor.u32 256, 48
          %1861 = vbcast.lane.b32.xlu0 %v1835, %s1860
          %v1862 = vpop.permute.xlu0 %1861
          %s1864 = sor.u32 256, 56
          %1865 = vbcast.lane.b32.xlu0 %v1835, %s1864
          %v1866 = vpop.permute.xlu0 %1865
          %v1867 = vlaneseq
          %v1868 = vshrl.u32 %v1867, 7
          %v1869 = vsub.s32 1, %v1868
          %v1870 = vrot.slane %v1831, %v1869
          %1872 = vbcast.lane.b32.xlu0 %v1870, 256
          %v1873 = vpop.permute.xlu0 %1872
          %s1875 = sor.u32 256, 8
          %1876 = vbcast.lane.b32.xlu0 %v1870, %s1875
          %v1877 = vpop.permute.xlu0 %1876
          %s1879 = sor.u32 256, 16
          %1880 = vbcast.lane.b32.xlu0 %v1870, %s1879
          %v1881 = vpop.permute.xlu0 %1880
          %s1883 = sor.u32 256, 24
          %1884 = vbcast.lane.b32.xlu0 %v1870, %s1883
          %v1885 = vpop.permute.xlu0 %1884
          %s1887 = sor.u32 256, 32
          %1888 = vbcast.lane.b32.xlu0 %v1870, %s1887
          %v1889 = vpop.permute.xlu0 %1888
          %s1891 = sor.u32 256, 40
          %1892 = vbcast.lane.b32.xlu0 %v1870, %s1891
          %v1893 = vpop.permute.xlu0 %1892
          %s1895 = sor.u32 256, 48
          %1896 = vbcast.lane.b32.xlu0 %v1870, %s1895
          %v1897 = vpop.permute.xlu0 %1896
          %s1899 = sor.u32 256, 56
          %1900 = vbcast.lane.b32.xlu0 %v1870, %s1899
          %v1901 = vpop.permute.xlu0 %1900
          %v1902 = vlaneseq
          %v1903 = vshrl.u32 %v1902, 7
          %v1904 = vsub.s32 2, %v1903
          %v1905 = vrot.slane %v1831, %v1904
          %1907 = vbcast.lane.b32.xlu0 %v1905, 256
          %v1908 = vpop.permute.xlu0 %1907
          %s1910 = sor.u32 256, 8
          %1911 = vbcast.lane.b32.xlu0 %v1905, %s1910
          %v1912 = vpop.permute.xlu0 %1911
          %s1914 = sor.u32 256, 16
          %1915 = vbcast.lane.b32.xlu0 %v1905, %s1914
          %v1916 = vpop.permute.xlu0 %1915
          %s1918 = sor.u32 256, 24
          %1919 = vbcast.lane.b32.xlu0 %v1905, %s1918
          %v1920 = vpop.permute.xlu0 %1919
          %s1922 = sor.u32 256, 32
          %1923 = vbcast.lane.b32.xlu0 %v1905, %s1922
          %v1924 = vpop.permute.xlu0 %1923
          %s1926 = sor.u32 256, 40
          %1927 = vbcast.lane.b32.xlu0 %v1905, %s1926
          %v1928 = vpop.permute.xlu0 %1927
          %s1930 = sor.u32 256, 48
          %1931 = vbcast.lane.b32.xlu0 %v1905, %s1930
          %v1932 = vpop.permute.xlu0 %1931
          %s1934 = sor.u32 256, 56
          %1935 = vbcast.lane.b32.xlu0 %v1905, %s1934
          %v1936 = vpop.permute.xlu0 %1935
          %v1937 = vlaneseq
          %v1938 = vshrl.u32 %v1937, 7
          %v1939 = vsub.s32 3, %v1938
          %v1940 = vrot.slane %v1831, %v1939
          %1942 = vbcast.lane.b32.xlu0 %v1940, 256
          %v1943 = vpop.permute.xlu0 %1942
          %s1945 = sor.u32 256, 8
          %1946 = vbcast.lane.b32.xlu0 %v1940, %s1945
          %v1947 = vpop.permute.xlu0 %1946
          %s1949 = sor.u32 256, 16
          %1950 = vbcast.lane.b32.xlu0 %v1940, %s1949
          %v1951 = vpop.permute.xlu0 %1950
          %s1953 = sor.u32 256, 24
          %1954 = vbcast.lane.b32.xlu0 %v1940, %s1953
          %v1955 = vpop.permute.xlu0 %1954
          %s1957 = sor.u32 256, 32
          %1958 = vbcast.lane.b32.xlu0 %v1940, %s1957
          %v1959 = vpop.permute.xlu0 %1958
          %s1961 = sor.u32 256, 40
          %1962 = vbcast.lane.b32.xlu0 %v1940, %s1961
          %v1963 = vpop.permute.xlu0 %1962
          %s1965 = sor.u32 256, 48
          %1966 = vbcast.lane.b32.xlu0 %v1940, %s1965
          %v1967 = vpop.permute.xlu0 %1966
          %s1969 = sor.u32 256, 56
          %1970 = vbcast.lane.b32.xlu0 %v1940, %s1969
          %v1971 = vpop.permute.xlu0 %1970
          %v1972 = vlaneseq
          %v1973 = vshrl.u32 %v1972, 7
          %v1974 = vsub.s32 4, %v1973
          %v1975 = vrot.slane %v1831, %v1974
          %1977 = vbcast.lane.b32.xlu0 %v1975, 256
          %v1978 = vpop.permute.xlu0 %1977
          %s1980 = sor.u32 256, 8
          %1981 = vbcast.lane.b32.xlu0 %v1975, %s1980
          %v1982 = vpop.permute.xlu0 %1981
          %s1984 = sor.u32 256, 16
          %1985 = vbcast.lane.b32.xlu0 %v1975, %s1984
          %v1986 = vpop.permute.xlu0 %1985
          %s1988 = sor.u32 256, 24
          %1989 = vbcast.lane.b32.xlu0 %v1975, %s1988
          %v1990 = vpop.permute.xlu0 %1989
          %s1992 = sor.u32 256, 32
          %1993 = vbcast.lane.b32.xlu0 %v1975, %s1992
          %v1994 = vpop.permute.xlu0 %1993
          %s1996 = sor.u32 256, 40
          %1997 = vbcast.lane.b32.xlu0 %v1975, %s1996
          %v1998 = vpop.permute.xlu0 %1997
          %s2000 = sor.u32 256, 48
          %2001 = vbcast.lane.b32.xlu0 %v1975, %s2000
          %v2002 = vpop.permute.xlu0 %2001
          %s2004 = sor.u32 256, 56
          %2005 = vbcast.lane.b32.xlu0 %v1975, %s2004
          %v2006 = vpop.permute.xlu0 %2005
          %v2007 = vlaneseq
          %v2008 = vshrl.u32 %v2007, 7
          %v2009 = vsub.s32 5, %v2008
          %v2010 = vrot.slane %v1831, %v2009
          %2012 = vbcast.lane.b32.xlu0 %v2010, 256
          %v2013 = vpop.permute.xlu0 %2012
          %s2015 = sor.u32 256, 8
          %2016 = vbcast.lane.b32.xlu0 %v2010, %s2015
          %v2017 = vpop.permute.xlu0 %2016
          %s2019 = sor.u32 256, 16
          %2020 = vbcast.lane.b32.xlu0 %v2010, %s2019
          %v2021 = vpop.permute.xlu0 %2020
          %s2023 = sor.u32 256, 24
          %2024 = vbcast.lane.b32.xlu0 %v2010, %s2023
          %v2025 = vpop.permute.xlu0 %2024
          %s2027 = sor.u32 256, 32
          %2028 = vbcast.lane.b32.xlu0 %v2010, %s2027
          %v2029 = vpop.permute.xlu0 %2028
          %s2031 = sor.u32 256, 40
          %2032 = vbcast.lane.b32.xlu0 %v2010, %s2031
          %v2033 = vpop.permute.xlu0 %2032
          %s2035 = sor.u32 256, 48
          %2036 = vbcast.lane.b32.xlu0 %v2010, %s2035
          %v2037 = vpop.permute.xlu0 %2036
          %s2039 = sor.u32 256, 56
          %2040 = vbcast.lane.b32.xlu0 %v2010, %s2039
          %v2041 = vpop.permute.xlu0 %2040
          %v2042 = vlaneseq
          %v2043 = vshrl.u32 %v2042, 7
          %v2044 = vsub.s32 6, %v2043
          %v2045 = vrot.slane %v1831, %v2044
          %2047 = vbcast.lane.b32.xlu0 %v2045, 256
          %v2048 = vpop.permute.xlu0 %2047
          %s2050 = sor.u32 256, 8
          %2051 = vbcast.lane.b32.xlu0 %v2045, %s2050
          %v2052 = vpop.permute.xlu0 %2051
          %s2054 = sor.u32 256, 16
          %2055 = vbcast.lane.b32.xlu0 %v2045, %s2054
          %v2056 = vpop.permute.xlu0 %2055
          %s2058 = sor.u32 256, 24
          %2059 = vbcast.lane.b32.xlu0 %v2045, %s2058
          %v2060 = vpop.permute.xlu0 %2059
          %s2062 = sor.u32 256, 32
          %2063 = vbcast.lane.b32.xlu0 %v2045, %s2062
          %v2064 = vpop.permute.xlu0 %2063
          %s2066 = sor.u32 256, 40
          %2067 = vbcast.lane.b32.xlu0 %v2045, %s2066
          %v2068 = vpop.permute.xlu0 %2067
          %s2070 = sor.u32 256, 48
          %2071 = vbcast.lane.b32.xlu0 %v2045, %s2070
          %v2072 = vpop.permute.xlu0 %2071
          %s2074 = sor.u32 256, 56
          %2075 = vbcast.lane.b32.xlu0 %v2045, %s2074
          %v2076 = vpop.permute.xlu0 %2075
          %v2077 = vlaneseq
          %v2078 = vshrl.u32 %v2077, 7
          %v2079 = vsub.s32 7, %v2078
          %v2080 = vrot.slane %v1831, %v2079
          %2082 = vbcast.lane.b32.xlu0 %v2080, 256
          %v2083 = vpop.permute.xlu0 %2082
          %s2085 = sor.u32 256, 8
          %2086 = vbcast.lane.b32.xlu0 %v2080, %s2085
          %v2087 = vpop.permute.xlu0 %2086
          %s2089 = sor.u32 256, 16
          %2090 = vbcast.lane.b32.xlu0 %v2080, %s2089
          %v2091 = vpop.permute.xlu0 %2090
          %s2093 = sor.u32 256, 24
          %2094 = vbcast.lane.b32.xlu0 %v2080, %s2093
          %v2095 = vpop.permute.xlu0 %2094
          %s2097 = sor.u32 256, 32
          %2098 = vbcast.lane.b32.xlu0 %v2080, %s2097
          %v2099 = vpop.permute.xlu0 %2098
          %s2101 = sor.u32 256, 40
          %2102 = vbcast.lane.b32.xlu0 %v2080, %s2101
          %v2103 = vpop.permute.xlu0 %2102
          %s2105 = sor.u32 256, 48
          %2106 = vbcast.lane.b32.xlu0 %v2080, %s2105
          %v2107 = vpop.permute.xlu0 %2106
          %s2109 = sor.u32 256, 56
          %2110 = vbcast.lane.b32.xlu0 %v2080, %s2109
          %v2111 = vpop.permute.xlu0 %2110
          %2112 = vxpose.xlu0.b32.start [1/16] %v1830, 128
          %2113 = vxpose.xlu0.b32.cont [2/16] 0.0, 128
          %2114 = vxpose.xlu0.b32.cont [3/16] 0.0, 128
          %2115 = vxpose.xlu0.b32.cont [4/16] 0.0, 128
          %2116 = vxpose.xlu0.b32.cont [5/16] 0.0, 128
          %2117 = vxpose.xlu0.b32.cont [6/16] 0.0, 128
          %2118 = vxpose.xlu0.b32.cont [7/16] 0.0, 128
          %2119 = vxpose.xlu0.b32.cont [8/16] 0.0, 128
          %2120 = vxpose.xlu0.b32.cont [9/16] 0.0, 128
          %2121 = vxpose.xlu0.b32.cont [10/16] 0.0, 128
          %2122 = vxpose.xlu0.b32.cont [11/16] 0.0, 128
          %2123 = vxpose.xlu0.b32.cont [12/16] 0.0, 128
          %2124 = vxpose.xlu0.b32.cont [13/16] 0.0, 128
          %2125 = vxpose.xlu0.b32.cont [14/16] 0.0, 128
          %2126 = vxpose.xlu0.b32.cont [15/16] 0.0, 128
          %2127 = vxpose.xlu0.b32.end [16/16] 0.0, 128
          %v2128 = vpop.trf.xlu0
          %v2129 = vpop.trf.xlu0
          %v2130 = vpop.trf.xlu0
          %v2131 = vpop.trf.xlu0
          %v2132 = vpop.trf.xlu0
          %v2133 = vpop.trf.xlu0
          %v2134 = vpop.trf.xlu0
          %v2135 = vpop.trf.xlu0
          %v2136 = vpop.trf.xlu0
          %v2137 = vpop.trf.xlu0
          %v2138 = vpop.trf.xlu0
          %v2139 = vpop.trf.xlu0
          %v2140 = vpop.trf.xlu0
          %v2141 = vpop.trf.xlu0
          %v2142 = vpop.trf.xlu0
          %v2143 = vpop.trf.xlu0
          %v2144 = vadd.f32 %v1838, %v2128
          %v2145 = vadd.f32 %v1842, %v2129
          %v2146 = vadd.f32 %v1846, %v2130
          %v2147 = vadd.f32 %v1850, %v2131
          %v2148 = vadd.f32 %v1854, %v2132
          %v2149 = vadd.f32 %v1858, %v2133
          %v2150 = vadd.f32 %v1862, %v2134
          %v2151 = vadd.f32 %v1866, %v2135
          %v2152 = vadd.f32 %v1873, %v2128
          %v2153 = vadd.f32 %v1877, %v2129
          %v2154 = vadd.f32 %v1881, %v2130
          %v2155 = vadd.f32 %v1885, %v2131
          %v2156 = vadd.f32 %v1889, %v2132
          %v2157 = vadd.f32 %v1893, %v2133
          %v2158 = vadd.f32 %v1897, %v2134
          %v2159 = vadd.f32 %v1901, %v2135
          %v2160 = vadd.f32 %v1908, %v2128
          %v2161 = vadd.f32 %v1912, %v2129
          %v2162 = vadd.f32 %v1916, %v2130
          %v2163 = vadd.f32 %v1920, %v2131
          %v2164 = vadd.f32 %v1924, %v2132
          %v2165 = vadd.f32 %v1928, %v2133
          %v2166 = vadd.f32 %v1932, %v2134
          %v2167 = vadd.f32 %v1936, %v2135
          %v2168 = vadd.f32 %v1943, %v2128
          %v2169 = vadd.f32 %v1947, %v2129
          %v2170 = vadd.f32 %v1951, %v2130
          %v2171 = vadd.f32 %v1955, %v2131
          %v2172 = vadd.f32 %v1959, %v2132
          %v2173 = vadd.f32 %v1963, %v2133
          %v2174 = vadd.f32 %v1967, %v2134
          %v2175 = vadd.f32 %v1971, %v2135
          %v2176 = vadd.f32 %v1978, %v2128
          %v2177 = vadd.f32 %v1982, %v2129
          %v2178 = vadd.f32 %v1986, %v2130
          %v2179 = vadd.f32 %v1990, %v2131
          %v2180 = vadd.f32 %v1994, %v2132
          %v2181 = vadd.f32 %v1998, %v2133
          %v2182 = vadd.f32 %v2002, %v2134
          %v2183 = vadd.f32 %v2006, %v2135
          %v2184 = vadd.f32 %v2013, %v2128
          %v2185 = vadd.f32 %v2017, %v2129
          %v2186 = vadd.f32 %v2021, %v2130
          %v2187 = vadd.f32 %v2025, %v2131
          %v2188 = vadd.f32 %v2029, %v2132
          %v2189 = vadd.f32 %v2033, %v2133
          %v2190 = vadd.f32 %v2037, %v2134
          %v2191 = vadd.f32 %v2041, %v2135
          %v2192 = vadd.f32 %v2048, %v2128
          %v2193 = vadd.f32 %v2052, %v2129
          %v2194 = vadd.f32 %v2056, %v2130
          %v2195 = vadd.f32 %v2060, %v2131
          %v2196 = vadd.f32 %v2064, %v2132
          %v2197 = vadd.f32 %v2068, %v2133
          %v2198 = vadd.f32 %v2072, %v2134
          %v2199 = vadd.f32 %v2076, %v2135
          %v2200 = vadd.f32 %v2083, %v2128
          %v2201 = vadd.f32 %v2087, %v2129
          %v2202 = vadd.f32 %v2091, %v2130
          %v2203 = vadd.f32 %v2095, %v2131
          %v2204 = vadd.f32 %v2099, %v2132
          %v2205 = vadd.f32 %v2103, %v2133
          %v2206 = vadd.f32 %v2107, %v2134
          %v2207 = vadd.f32 %v2111, %v2135
          %v2208 = vmul.f32 %v2144, 0.5
          %v2209 = vmul.f32 %v2145, 0.5
          %v2210 = vmul.f32 %v2146, 0.5
          %v2211 = vmul.f32 %v2147, 0.5
          %v2212 = vmul.f32 %v2152, 0.5
          %v2213 = vmul.f32 %v2153, 0.5
          %v2214 = vmul.f32 %v2154, 0.5
          %v2215 = vmul.f32 %v2155, 0.5
          %v2216 = vmul.f32 %v2160, 0.5
          %v2217 = vmul.f32 %v2161, 0.5
          %v2218 = vmul.f32 %v2162, 0.5
          %v2219 = vmul.f32 %v2163, 0.5
          %v2220 = vmul.f32 %v2168, 0.5
          %v2221 = vmul.f32 %v2169, 0.5
          %v2222 = vmul.f32 %v2170, 0.5
          %v2223 = vmul.f32 %v2171, 0.5
          %v2224 = vmul.f32 %v2176, 0.5
          %v2225 = vmul.f32 %v2177, 0.5
          %v2226 = vmul.f32 %v2178, 0.5
          %v2227 = vmul.f32 %v2179, 0.5
          %v2228 = vmul.f32 %v2184, 0.5
          %v2229 = vmul.f32 %v2185, 0.5
          %v2230 = vmul.f32 %v2186, 0.5
          %v2231 = vmul.f32 %v2187, 0.5
          %v2232 = vmul.f32 %v2192, 0.5
          %v2233 = vmul.f32 %v2193, 0.5
          %v2234 = vmul.f32 %v2194, 0.5
          %v2235 = vmul.f32 %v2195, 0.5
          %v2236 = vmul.f32 %v2200, 0.5
          %v2237 = vmul.f32 %v2201, 0.5
          %v2238 = vmul.f32 %v2202, 0.5
          %v2239 = vmul.f32 %v2203, 0.5
          %v2240 = vtanh.pop %v2208
          %v2241 = vtanh.pop %v2209
          %v2242 = vtanh.pop %v2210
          %v2243 = vtanh.pop %v2211
          %v2244 = vtanh.pop %v2212
          %v2245 = vtanh.pop %v2213
          %v2246 = vtanh.pop %v2214
          %v2247 = vtanh.pop %v2215
          %v2248 = vtanh.pop %v2216
          %v2249 = vtanh.pop %v2217
          %v2250 = vtanh.pop %v2218
          %v2251 = vtanh.pop %v2219
          %v2252 = vtanh.pop %v2220
          %v2253 = vtanh.pop %v2221
          %v2254 = vtanh.pop %v2222
          %v2255 = vtanh.pop %v2223
          %v2256 = vtanh.pop %v2224
          %v2257 = vtanh.pop %v2225
          %v2258 = vtanh.pop %v2226
          %v2259 = vtanh.pop %v2227
          %v2260 = vtanh.pop %v2228
          %v2261 = vtanh.pop %v2229
          %v2262 = vtanh.pop %v2230
          %v2263 = vtanh.pop %v2231
          %v2264 = vtanh.pop %v2232
          %v2265 = vtanh.pop %v2233
          %v2266 = vtanh.pop %v2234
          %v2267 = vtanh.pop %v2235
          %v2268 = vtanh.pop %v2236
          %v2269 = vtanh.pop %v2237
          %v2270 = vtanh.pop %v2238
          %v2271 = vtanh.pop %v2239
          %v2272 = vmul.f32 %v2240, 0.5
          %v2273 = vmul.f32 %v2241, 0.5
          %v2274 = vmul.f32 %v2242, 0.5
          %v2275 = vmul.f32 %v2243, 0.5
          %v2276 = vmul.f32 %v2244, 0.5
          %v2277 = vmul.f32 %v2245, 0.5
          %v2278 = vmul.f32 %v2246, 0.5
          %v2279 = vmul.f32 %v2247, 0.5
          %v2280 = vmul.f32 %v2248, 0.5
          %v2281 = vmul.f32 %v2249, 0.5
          %v2282 = vmul.f32 %v2250, 0.5
          %v2283 = vmul.f32 %v2251, 0.5
          %v2284 = vmul.f32 %v2252, 0.5
          %v2285 = vmul.f32 %v2253, 0.5
          %v2286 = vmul.f32 %v2254, 0.5
          %v2287 = vmul.f32 %v2255, 0.5
          %v2288 = vmul.f32 %v2256, 0.5
          %v2289 = vmul.f32 %v2257, 0.5
          %v2290 = vmul.f32 %v2258, 0.5
          %v2291 = vmul.f32 %v2259, 0.5
          %v2292 = vmul.f32 %v2260, 0.5
          %v2293 = vmul.f32 %v2261, 0.5
          %v2294 = vmul.f32 %v2262, 0.5
          %v2295 = vmul.f32 %v2263, 0.5
          %v2296 = vmul.f32 %v2264, 0.5
          %v2297 = vmul.f32 %v2265, 0.5
          %v2298 = vmul.f32 %v2266, 0.5
          %v2299 = vmul.f32 %v2267, 0.5
          %v2300 = vmul.f32 %v2268, 0.5
          %v2301 = vmul.f32 %v2269, 0.5
          %v2302 = vmul.f32 %v2270, 0.5
          %v2303 = vmul.f32 %v2271, 0.5
          %v2304 = vadd.f32 %v2272, 0.5
          %v2305 = vadd.f32 %v2273, 0.5
          %v2306 = vadd.f32 %v2274, 0.5
          %v2307 = vadd.f32 %v2275, 0.5
          %v2308 = vadd.f32 %v2276, 0.5
          %v2309 = vadd.f32 %v2277, 0.5
          %v2310 = vadd.f32 %v2278, 0.5
          %v2311 = vadd.f32 %v2279, 0.5
          %v2312 = vadd.f32 %v2280, 0.5
          %v2313 = vadd.f32 %v2281, 0.5
          %v2314 = vadd.f32 %v2282, 0.5
          %v2315 = vadd.f32 %v2283, 0.5
          %v2316 = vadd.f32 %v2284, 0.5
          %v2317 = vadd.f32 %v2285, 0.5
          %v2318 = vadd.f32 %v2286, 0.5
          %v2319 = vadd.f32 %v2287, 0.5
          %v2320 = vadd.f32 %v2288, 0.5
          %v2321 = vadd.f32 %v2289, 0.5
          %v2322 = vadd.f32 %v2290, 0.5
          %v2323 = vadd.f32 %v2291, 0.5
          %v2324 = vadd.f32 %v2292, 0.5
          %v2325 = vadd.f32 %v2293, 0.5
          %v2326 = vadd.f32 %v2294, 0.5
          %v2327 = vadd.f32 %v2295, 0.5
          %v2328 = vadd.f32 %v2296, 0.5
          %v2329 = vadd.f32 %v2297, 0.5
          %v2330 = vadd.f32 %v2298, 0.5
          %v2331 = vadd.f32 %v2299, 0.5
          %v2332 = vadd.f32 %v2300, 0.5
          %v2333 = vadd.f32 %v2301, 0.5
          %v2334 = vadd.f32 %v2302, 0.5
          %v2335 = vadd.f32 %v2303, 0.5
          %vm2336 = vcmp.gt.f32.partialorder %v2148, 20.0
          %vm2337 = vcmp.gt.f32.partialorder %v2149, 20.0
          %vm2338 = vcmp.gt.f32.partialorder %v2150, 20.0
          %vm2339 = vcmp.gt.f32.partialorder %v2151, 20.0
          %vm2340 = vcmp.gt.f32.partialorder %v2156, 20.0
          %vm2341 = vcmp.gt.f32.partialorder %v2157, 20.0
          %vm2342 = vcmp.gt.f32.partialorder %v2158, 20.0
          %vm2343 = vcmp.gt.f32.partialorder %v2159, 20.0
          %vm2344 = vcmp.gt.f32.partialorder %v2164, 20.0
          %vm2345 = vcmp.gt.f32.partialorder %v2165, 20.0
          %vm2346 = vcmp.gt.f32.partialorder %v2166, 20.0
          %vm2347 = vcmp.gt.f32.partialorder %v2167, 20.0
          %vm2348 = vcmp.gt.f32.partialorder %v2172, 20.0
          %vm2349 = vcmp.gt.f32.partialorder %v2173, 20.0
          %vm2350 = vcmp.gt.f32.partialorder %v2174, 20.0
          %vm2351 = vcmp.gt.f32.partialorder %v2175, 20.0
          %vm2352 = vcmp.gt.f32.partialorder %v2180, 20.0
          %vm2353 = vcmp.gt.f32.partialorder %v2181, 20.0
          %vm2354 = vcmp.gt.f32.partialorder %v2182, 20.0
          %vm2355 = vcmp.gt.f32.partialorder %v2183, 20.0
          %vm2356 = vcmp.gt.f32.partialorder %v2188, 20.0
          %vm2357 = vcmp.gt.f32.partialorder %v2189, 20.0
          %vm2358 = vcmp.gt.f32.partialorder %v2190, 20.0
          %vm2359 = vcmp.gt.f32.partialorder %v2191, 20.0
          %vm2360 = vcmp.gt.f32.partialorder %v2196, 20.0
          %vm2361 = vcmp.gt.f32.partialorder %v2197, 20.0
          %vm2362 = vcmp.gt.f32.partialorder %v2198, 20.0
          %vm2363 = vcmp.gt.f32.partialorder %v2199, 20.0
          %vm2364 = vcmp.gt.f32.partialorder %v2204, 20.0
          %vm2365 = vcmp.gt.f32.partialorder %v2205, 20.0
          %vm2366 = vcmp.gt.f32.partialorder %v2206, 20.0
          %vm2367 = vcmp.gt.f32.partialorder %v2207, 20.0
          %v2368 = vmin.f32 %v2148, 20.0
          %v2369 = vmin.f32 %v2149, 20.0
          %v2370 = vmin.f32 %v2150, 20.0
          %v2371 = vmin.f32 %v2151, 20.0
          %v2372 = vmin.f32 %v2156, 20.0
          %v2373 = vmin.f32 %v2157, 20.0
          %v2374 = vmin.f32 %v2158, 20.0
          %v2375 = vmin.f32 %v2159, 20.0
          %v2376 = vmin.f32 %v2164, 20.0
          %v2377 = vmin.f32 %v2165, 20.0
          %v2378 = vmin.f32 %v2166, 20.0
          %v2379 = vmin.f32 %v2167, 20.0
          %v2380 = vmin.f32 %v2172, 20.0
          %v2381 = vmin.f32 %v2173, 20.0
          %v2382 = vmin.f32 %v2174, 20.0
          %v2383 = vmin.f32 %v2175, 20.0
          %v2384 = vmin.f32 %v2180, 20.0
          %v2385 = vmin.f32 %v2181, 20.0
          %v2386 = vmin.f32 %v2182, 20.0
          %v2387 = vmin.f32 %v2183, 20.0
          %v2388 = vmin.f32 %v2188, 20.0
          %v2389 = vmin.f32 %v2189, 20.0
          %v2390 = vmin.f32 %v2190, 20.0
          %v2391 = vmin.f32 %v2191, 20.0
          %v2392 = vmin.f32 %v2196, 20.0
          %v2393 = vmin.f32 %v2197, 20.0
          %v2394 = vmin.f32 %v2198, 20.0
          %v2395 = vmin.f32 %v2199, 20.0
          %v2396 = vmin.f32 %v2204, 20.0
          %v2397 = vmin.f32 %v2205, 20.0
          %v2398 = vmin.f32 %v2206, 20.0
          %v2399 = vmin.f32 %v2207, 20.0
          %v2400 = vmul.f32 %v2368, 1.442695
          %v2401 = vpow.pop %v2400
          %v2402 = vmul.f32 %v2369, 1.442695
          %v2403 = vpow.pop %v2402
          %v2404 = vmul.f32 %v2370, 1.442695
          %v2405 = vpow.pop %v2404
          %v2406 = vmul.f32 %v2371, 1.442695
          %v2407 = vpow.pop %v2406
          %v2408 = vmul.f32 %v2372, 1.442695
          %v2409 = vpow.pop %v2408
          %v2410 = vmul.f32 %v2373, 1.442695
          %v2411 = vpow.pop %v2410
          %v2412 = vmul.f32 %v2374, 1.442695
          %v2413 = vpow.pop %v2412
          %v2414 = vmul.f32 %v2375, 1.442695
          %v2415 = vpow.pop %v2414
          %v2416 = vmul.f32 %v2376, 1.442695
          %v2417 = vpow.pop %v2416
          %v2418 = vmul.f32 %v2377, 1.442695
          %v2419 = vpow.pop %v2418
          %v2420 = vmul.f32 %v2378, 1.442695
          %v2421 = vpow.pop %v2420
          %v2422 = vmul.f32 %v2379, 1.442695
          %v2423 = vpow.pop %v2422
          %v2424 = vmul.f32 %v2380, 1.442695
          %v2425 = vpow.pop %v2424
          %v2426 = vmul.f32 %v2381, 1.442695
          %v2427 = vpow.pop %v2426
          %v2428 = vmul.f32 %v2382, 1.442695
          %v2429 = vpow.pop %v2428
          %v2430 = vmul.f32 %v2383, 1.442695
          %v2431 = vpow.pop %v2430
          %v2432 = vmul.f32 %v2384, 1.442695
          %v2433 = vpow.pop %v2432
          %v2434 = vmul.f32 %v2385, 1.442695
          %v2435 = vpow.pop %v2434
          %v2436 = vmul.f32 %v2386, 1.442695
          %v2437 = vpow.pop %v2436
          %v2438 = vmul.f32 %v2387, 1.442695
          %v2439 = vpow.pop %v2438
          %v2440 = vmul.f32 %v2388, 1.442695
          %v2441 = vpow.pop %v2440
          %v2442 = vmul.f32 %v2389, 1.442695
          %v2443 = vpow.pop %v2442
          %v2444 = vmul.f32 %v2390, 1.442695
          %v2445 = vpow.pop %v2444
          %v2446 = vmul.f32 %v2391, 1.442695
          %v2447 = vpow.pop %v2446
          %v2448 = vmul.f32 %v2392, 1.442695
          %v2449 = vpow.pop %v2448
          %v2450 = vmul.f32 %v2393, 1.442695
          %v2451 = vpow.pop %v2450
          %v2452 = vmul.f32 %v2394, 1.442695
          %v2453 = vpow.pop %v2452
          %v2454 = vmul.f32 %v2395, 1.442695
          %v2455 = vpow.pop %v2454
          %v2456 = vmul.f32 %v2396, 1.442695
          %v2457 = vpow.pop %v2456
          %v2458 = vmul.f32 %v2397, 1.442695
          %v2459 = vpow.pop %v2458
          %v2460 = vmul.f32 %v2398, 1.442695
          %v2461 = vpow.pop %v2460
          %v2462 = vmul.f32 %v2399, 1.442695
          %v2463 = vpow.pop %v2462
          %v2464 = vadd.f32 %v2401, 1.0
          %v2465 = vadd.f32 %v2403, 1.0
          %v2466 = vadd.f32 %v2405, 1.0
          %v2467 = vadd.f32 %v2407, 1.0
          %v2468 = vadd.f32 %v2409, 1.0
          %v2469 = vadd.f32 %v2411, 1.0
          %v2470 = vadd.f32 %v2413, 1.0
          %v2471 = vadd.f32 %v2415, 1.0
          %v2472 = vadd.f32 %v2417, 1.0
          %v2473 = vadd.f32 %v2419, 1.0
          %v2474 = vadd.f32 %v2421, 1.0
          %v2475 = vadd.f32 %v2423, 1.0
          %v2476 = vadd.f32 %v2425, 1.0
          %v2477 = vadd.f32 %v2427, 1.0
          %v2478 = vadd.f32 %v2429, 1.0
          %v2479 = vadd.f32 %v2431, 1.0
          %v2480 = vadd.f32 %v2433, 1.0
          %v2481 = vadd.f32 %v2435, 1.0
          %v2482 = vadd.f32 %v2437, 1.0
          %v2483 = vadd.f32 %v2439, 1.0
          %v2484 = vadd.f32 %v2441, 1.0
          %v2485 = vadd.f32 %v2443, 1.0
          %v2486 = vadd.f32 %v2445, 1.0
          %v2487 = vadd.f32 %v2447, 1.0
          %v2488 = vadd.f32 %v2449, 1.0
          %v2489 = vadd.f32 %v2451, 1.0
          %v2490 = vadd.f32 %v2453, 1.0
          %v2491 = vadd.f32 %v2455, 1.0
          %v2492 = vadd.f32 %v2457, 1.0
          %v2493 = vadd.f32 %v2459, 1.0
          %v2494 = vadd.f32 %v2461, 1.0
          %v2495 = vadd.f32 %v2463, 1.0
          %v2496 = vlog2.pop %v2464
          %v2497 = vmul.f32 %v2496, 0.6931472
          %v2498 = vlog2.pop %v2465
          %v2499 = vmul.f32 %v2498, 0.6931472
          %v2500 = vlog2.pop %v2466
          %v2501 = vmul.f32 %v2500, 0.6931472
          %v2502 = vlog2.pop %v2467
          %v2503 = vmul.f32 %v2502, 0.6931472
          %v2504 = vlog2.pop %v2468
          %v2505 = vmul.f32 %v2504, 0.6931472
          %v2506 = vlog2.pop %v2469
          %v2507 = vmul.f32 %v2506, 0.6931472
          %v2508 = vlog2.pop %v2470
          %v2509 = vmul.f32 %v2508, 0.6931472
          %v2510 = vlog2.pop %v2471
          %v2511 = vmul.f32 %v2510, 0.6931472
          %v2512 = vlog2.pop %v2472
          %v2513 = vmul.f32 %v2512, 0.6931472
          %v2514 = vlog2.pop %v2473
          %v2515 = vmul.f32 %v2514, 0.6931472
          %v2516 = vlog2.pop %v2474
          %v2517 = vmul.f32 %v2516, 0.6931472
          %v2518 = vlog2.pop %v2475
          %v2519 = vmul.f32 %v2518, 0.6931472
          %v2520 = vlog2.pop %v2476
          %v2521 = vmul.f32 %v2520, 0.6931472
          %v2522 = vlog2.pop %v2477
          %v2523 = vmul.f32 %v2522, 0.6931472
          %v2524 = vlog2.pop %v2478
          %v2525 = vmul.f32 %v2524, 0.6931472
          %v2526 = vlog2.pop %v2479
          %v2527 = vmul.f32 %v2526, 0.6931472
          %v2528 = vlog2.pop %v2480
          %v2529 = vmul.f32 %v2528, 0.6931472
          %v2530 = vlog2.pop %v2481
          %v2531 = vmul.f32 %v2530, 0.6931472
          %v2532 = vlog2.pop %v2482
          %v2533 = vmul.f32 %v2532, 0.6931472
          %v2534 = vlog2.pop %v2483
          %v2535 = vmul.f32 %v2534, 0.6931472
          %v2536 = vlog2.pop %v2484
          %v2537 = vmul.f32 %v2536, 0.6931472
          %v2538 = vlog2.pop %v2485
          %v2539 = vmul.f32 %v2538, 0.6931472
          %v2540 = vlog2.pop %v2486
          %v2541 = vmul.f32 %v2540, 0.6931472
          %v2542 = vlog2.pop %v2487
          %v2543 = vmul.f32 %v2542, 0.6931472
          %v2544 = vlog2.pop %v2488
          %v2545 = vmul.f32 %v2544, 0.6931472
          %v2546 = vlog2.pop %v2489
          %v2547 = vmul.f32 %v2546, 0.6931472
          %v2548 = vlog2.pop %v2490
          %v2549 = vmul.f32 %v2548, 0.6931472
          %v2550 = vlog2.pop %v2491
          %v2551 = vmul.f32 %v2550, 0.6931472
          %v2552 = vlog2.pop %v2492
          %v2553 = vmul.f32 %v2552, 0.6931472
          %v2554 = vlog2.pop %v2493
          %v2555 = vmul.f32 %v2554, 0.6931472
          %v2556 = vlog2.pop %v2494
          %v2557 = vmul.f32 %v2556, 0.6931472
          %v2558 = vlog2.pop %v2495
          %v2559 = vmul.f32 %v2558, 0.6931472
          %v2560 = vsel %vm2336, %v2148, %v2497
          %v2561 = vsel %vm2337, %v2149, %v2499
          %v2562 = vsel %vm2338, %v2150, %v2501
          %v2563 = vsel %vm2339, %v2151, %v2503
          %v2564 = vsel %vm2340, %v2156, %v2505
          %v2565 = vsel %vm2341, %v2157, %v2507
          %v2566 = vsel %vm2342, %v2158, %v2509
          %v2567 = vsel %vm2343, %v2159, %v2511
          %v2568 = vsel %vm2344, %v2164, %v2513
          %v2569 = vsel %vm2345, %v2165, %v2515
          %v2570 = vsel %vm2346, %v2166, %v2517
          %v2571 = vsel %vm2347, %v2167, %v2519
          %v2572 = vsel %vm2348, %v2172, %v2521
          %v2573 = vsel %vm2349, %v2173, %v2523
          %v2574 = vsel %vm2350, %v2174, %v2525
          %v2575 = vsel %vm2351, %v2175, %v2527
          %v2576 = vsel %vm2352, %v2180, %v2529
          %v2577 = vsel %vm2353, %v2181, %v2531
          %v2578 = vsel %vm2354, %v2182, %v2533
          %v2579 = vsel %vm2355, %v2183, %v2535
          %v2580 = vsel %vm2356, %v2188, %v2537
          %v2581 = vsel %vm2357, %v2189, %v2539
          %v2582 = vsel %vm2358, %v2190, %v2541
          %v2583 = vsel %vm2359, %v2191, %v2543
          %v2584 = vsel %vm2360, %v2196, %v2545
          %v2585 = vsel %vm2361, %v2197, %v2547
          %v2586 = vsel %vm2362, %v2198, %v2549
          %v2587 = vsel %vm2363, %v2199, %v2551
          %v2588 = vsel %vm2364, %v2204, %v2553
          %v2589 = vsel %vm2365, %v2205, %v2555
          %v2590 = vsel %vm2366, %v2206, %v2557
          %v2591 = vsel %vm2367, %v2207, %v2559
          %v2592 = vlaneseq
          %v2593 = vshrl.u32 %v2592, 7
          %v2594 = vlaneseq
          %v2595 = vand.u32 %v2594, 127
          %v2596 = vstv %s1824
          %v2597 = vadd.s32 %v2595, %v2596
          %v2598 = vstv %s1823
          %vm2599 = vcmp.lt.s32.totalorder %v2593, %v2598
          %vm2600 = vcmp.lt.s32.totalorder %v2597, %v2598
          %vm2601 = vmand %vm2599, %vm2600
          %vm2602 = vcmp.ne.s32.totalorder %v2593, %v2597
          %vm2603 = vmand %vm2601, %vm2602
          %v2604 = vsel %vm2603, 1, 0
          %v2605 = vcvt.s32.f32 %v2604
          %v2606 = vld [vmem:[#allocation4] sm:$0xff]
          %v2607 = vmul.f32 %v2304, %v2560
          %v2608 = vmul.f32 %v2305, %v2561
          %v2609 = vmul.f32 %v2306, %v2562
          %v2610 = vmul.f32 %v2307, %v2563
          %v2611 = vmul.f32 %v2308, %v2564
          %v2612 = vmul.f32 %v2309, %v2565
          %v2613 = vmul.f32 %v2310, %v2566
          %v2614 = vmul.f32 %v2311, %v2567
          %v2615 = vmul.f32 %v2312, %v2568
          %v2616 = vmul.f32 %v2313, %v2569
          %v2617 = vmul.f32 %v2314, %v2570
          %v2618 = vmul.f32 %v2315, %v2571
          %v2619 = vmul.f32 %v2316, %v2572
          %v2620 = vmul.f32 %v2317, %v2573
          %v2621 = vmul.f32 %v2318, %v2574
          %v2622 = vmul.f32 %v2319, %v2575
          %v2623 = vmul.f32 %v2320, %v2576
          %v2624 = vmul.f32 %v2321, %v2577
          %v2625 = vmul.f32 %v2322, %v2578
          %v2626 = vmul.f32 %v2323, %v2579
          %v2627 = vmul.f32 %v2324, %v2580
          %v2628 = vmul.f32 %v2325, %v2581
          %v2629 = vmul.f32 %v2326, %v2582
          %v2630 = vmul.f32 %v2327, %v2583
          %v2631 = vmul.f32 %v2328, %v2584
          %v2632 = vmul.f32 %v2329, %v2585
          %v2633 = vmul.f32 %v2330, %v2586
          %v2634 = vmul.f32 %v2331, %v2587
          %v2635 = vmul.f32 %v2332, %v2588
          %v2636 = vmul.f32 %v2333, %v2589
          %v2637 = vmul.f32 %v2334, %v2590
          %v2638 = vmul.f32 %v2335, %v2591
          %v2640 = vcombine.high %v2605, %v2605
          %v2642 = vunpack.c.l.s4 1966171168
          %v2643 = vunpack.c.0.s8 %v2642
          %v2644 = vlaneseq
          %v2645 = vshrl.u32 %v2644, 7
          %v2646 = vsub.s32 %v2643, %v2645
          %v2647 = vrot.slane %v2605, %v2646
          %v2649 = vunpack.c.l.s4 1966171168
          %v2650 = vunpack.c.0.s8 %v2649
          %v2651 = vlaneseq
          %v2652 = vshrl.u32 %v2651, 7
          %v2653 = vsub.s32 %v2650, %v2652
          %v2654 = vrot.slane %v2640, %v2653
          %v2655 = vcombine.high %v2647, %v2647
          %v2656 = vcombine.high %v2654, %v2654
          %v2658 = vunpack.c.l.s4 1966171168
          %v2659 = vunpack.c.0.s8 %v2658
          %v2660 = vlaneseq
          %v2661 = vshrl.u32 %v2660, 7
          %v2662 = vsub.s32 %v2659, %v2661
          %v2663 = vrot.slane %v2647, %v2662
          %v2665 = vunpack.c.l.s4 1966171168
          %v2666 = vunpack.c.0.s8 %v2665
          %v2667 = vlaneseq
          %v2668 = vshrl.u32 %v2667, 7
          %v2669 = vsub.s32 %v2666, %v2668
          %v2670 = vrot.slane %v2654, %v2669
          %v2672 = vunpack.c.l.s4 1966171168
          %v2673 = vunpack.c.0.s8 %v2672
          %v2674 = vlaneseq
          %v2675 = vshrl.u32 %v2674, 7
          %v2676 = vsub.s32 %v2673, %v2675
          %v2677 = vrot.slane %v2655, %v2676
          %v2679 = vunpack.c.l.s4 1966171168
          %v2680 = vunpack.c.0.s8 %v2679
          %v2681 = vlaneseq
          %v2682 = vshrl.u32 %v2681, 7
          %v2683 = vsub.s32 %v2680, %v2682
          %v2684 = vrot.slane %v2656, %v2683
          %v2685 = vcombine.high %v2663, %v2663
          %v2686 = vcombine.high %v2670, %v2670
          %v2687 = vcombine.high %v2677, %v2677
          %v2688 = vcombine.high %v2684, %v2684
          %v2689 = vlaneseq
          %v2690 = vshrl.u32 %v2689, 7
          %v2691 = vsub.s32 0, %v2690
          %v2692 = vrot.slane %v2663, %v2691
          %v2693 = vlaneseq
          %v2694 = vshrl.u32 %v2693, 7
          %v2695 = vsub.s32 0, %v2694
          %v2696 = vrot.slane %v2677, %v2695
          %v2697 = vlaneseq
          %v2698 = vshrl.u32 %v2697, 7
          %v2699 = vsub.s32 0, %v2698
          %v2700 = vrot.slane %v2685, %v2699
          %v2701 = vlaneseq
          %v2702 = vshrl.u32 %v2701, 7
          %v2703 = vsub.s32 0, %v2702
          %v2704 = vrot.slane %v2687, %v2703
          %v2705 = vlaneseq
          %v2706 = vshrl.u32 %v2705, 7
          %v2707 = vsub.s32 0, %v2706
          %v2708 = vrot.slane %v2670, %v2707
          %v2709 = vlaneseq
          %v2710 = vshrl.u32 %v2709, 7
          %v2711 = vsub.s32 0, %v2710
          %v2712 = vrot.slane %v2684, %v2711
          %v2713 = vlaneseq
          %v2714 = vshrl.u32 %v2713, 7
          %v2715 = vsub.s32 0, %v2714
          %v2716 = vrot.slane %v2686, %v2715
          %v2717 = vlaneseq
          %v2718 = vshrl.u32 %v2717, 7
          %v2719 = vsub.s32 0, %v2718
          %v2720 = vrot.slane %v2688, %v2719
          %v2729 = vmul.f32 %v2607, %v2692
          %v2730 = vmul.f32 %v2608, %v2692
          %v2731 = vmul.f32 %v2609, %v2692
          %v2732 = vmul.f32 %v2610, %v2692
          %v2733 = vmul.f32 %v2611, %v2696
          %v2734 = vmul.f32 %v2612, %v2696
          %v2735 = vmul.f32 %v2613, %v2696
          %v2736 = vmul.f32 %v2614, %v2696
          %v2737 = vmul.f32 %v2615, %v2700
          %v2738 = vmul.f32 %v2616, %v2700
          %v2739 = vmul.f32 %v2617, %v2700
          %v2740 = vmul.f32 %v2618, %v2700
          %v2741 = vmul.f32 %v2619, %v2704
          %v2742 = vmul.f32 %v2620, %v2704
          %v2743 = vmul.f32 %v2621, %v2704
          %v2744 = vmul.f32 %v2622, %v2704
          %v2745 = vmul.f32 %v2623, %v2708
          %v2746 = vmul.f32 %v2624, %v2708
          %v2747 = vmul.f32 %v2625, %v2708
          %v2748 = vmul.f32 %v2626, %v2708
          %v2749 = vmul.f32 %v2627, %v2712
          %v2750 = vmul.f32 %v2628, %v2712
          %v2751 = vmul.f32 %v2629, %v2712
          %v2752 = vmul.f32 %v2630, %v2712
          %v2753 = vmul.f32 %v2631, %v2716
          %v2754 = vmul.f32 %v2632, %v2716
          %v2755 = vmul.f32 %v2633, %v2716
          %v2756 = vmul.f32 %v2634, %v2716
          %v2757 = vmul.f32 %v2635, %v2720
          %v2758 = vmul.f32 %v2636, %v2720
          %v2759 = vmul.f32 %v2637, %v2720
          %v2760 = vmul.f32 %v2638, %v2720
          %vm2761 = vcmask 64512
          %v2762 = vsel %vm2761, %v2729, 0.0
          %2763 = vadd.xlane.f32.xlu0 %v2762
          %v2764 = vpop.xlane.xlu0 %2763
          %v2765 = vsel %vm2761, %v2730, 0.0
          %2766 = vadd.xlane.f32.xlu0 %v2765
          %v2767 = vpop.xlane.xlu0 %2766
          %v2768 = vsel %vm2761, %v2731, 0.0
          %2769 = vadd.xlane.f32.xlu0 %v2768
          %v2770 = vpop.xlane.xlu0 %2769
          %v2771 = vsel %vm2761, %v2732, 0.0
          %2772 = vadd.xlane.f32.xlu0 %v2771
          %v2773 = vpop.xlane.xlu0 %2772
          %v2774 = vsel %vm2761, %v2733, 0.0
          %2775 = vadd.xlane.f32.xlu0 %v2774
          %v2776 = vpop.xlane.xlu0 %2775
          %v2777 = vsel %vm2761, %v2734, 0.0
          %2778 = vadd.xlane.f32.xlu0 %v2777
          %v2779 = vpop.xlane.xlu0 %2778
          %v2780 = vsel %vm2761, %v2735, 0.0
          %2781 = vadd.xlane.f32.xlu0 %v2780
          %v2782 = vpop.xlane.xlu0 %2781
          %v2783 = vsel %vm2761, %v2736, 0.0
          %2784 = vadd.xlane.f32.xlu0 %v2783
          %v2785 = vpop.xlane.xlu0 %2784
          %v2786 = vsel %vm2761, %v2737, 0.0
          %2787 = vadd.xlane.f32.xlu0 %v2786
          %v2788 = vpop.xlane.xlu0 %2787
          %v2789 = vsel %vm2761, %v2738, 0.0
          %2790 = vadd.xlane.f32.xlu0 %v2789
          %v2791 = vpop.xlane.xlu0 %2790
          %v2792 = vsel %vm2761, %v2739, 0.0
          %2793 = vadd.xlane.f32.xlu0 %v2792
          %v2794 = vpop.xlane.xlu0 %2793
          %v2795 = vsel %vm2761, %v2740, 0.0
          %2796 = vadd.xlane.f32.xlu0 %v2795
          %v2797 = vpop.xlane.xlu0 %2796
          %v2798 = vsel %vm2761, %v2741, 0.0
          %2799 = vadd.xlane.f32.xlu0 %v2798
          %v2800 = vpop.xlane.xlu0 %2799
          %v2801 = vsel %vm2761, %v2742, 0.0
          %2802 = vadd.xlane.f32.xlu0 %v2801
          %v2803 = vpop.xlane.xlu0 %2802
          %v2804 = vsel %vm2761, %v2743, 0.0
          %2805 = vadd.xlane.f32.xlu0 %v2804
          %v2806 = vpop.xlane.xlu0 %2805
          %v2807 = vsel %vm2761, %v2744, 0.0
          %2808 = vadd.xlane.f32.xlu0 %v2807
          %v2809 = vpop.xlane.xlu0 %2808
          %v2810 = vsel %vm2761, %v2745, 0.0
          %2811 = vadd.xlane.f32.xlu0 %v2810
          %v2812 = vpop.xlane.xlu0 %2811
          %v2813 = vsel %vm2761, %v2746, 0.0
          %2814 = vadd.xlane.f32.xlu0 %v2813
          %v2815 = vpop.xlane.xlu0 %2814
          %v2816 = vsel %vm2761, %v2747, 0.0
          %2817 = vadd.xlane.f32.xlu0 %v2816
          %v2818 = vpop.xlane.xlu0 %2817
          %v2819 = vsel %vm2761, %v2748, 0.0
          %2820 = vadd.xlane.f32.xlu0 %v2819
          %v2821 = vpop.xlane.xlu0 %2820
          %v2822 = vsel %vm2761, %v2749, 0.0
          %2823 = vadd.xlane.f32.xlu0 %v2822
          %v2824 = vpop.xlane.xlu0 %2823
          %v2825 = vsel %vm2761, %v2750, 0.0
          %2826 = vadd.xlane.f32.xlu0 %v2825
          %v2827 = vpop.xlane.xlu0 %2826
          %v2828 = vsel %vm2761, %v2751, 0.0
          %2829 = vadd.xlane.f32.xlu0 %v2828
          %v2830 = vpop.xlane.xlu0 %2829
          %v2831 = vsel %vm2761, %v2752, 0.0
          %2832 = vadd.xlane.f32.xlu0 %v2831
          %v2833 = vpop.xlane.xlu0 %2832
          %v2834 = vsel %vm2761, %v2753, 0.0
          %2835 = vadd.xlane.f32.xlu0 %v2834
          %v2836 = vpop.xlane.xlu0 %2835
          %v2837 = vsel %vm2761, %v2754, 0.0
          %2838 = vadd.xlane.f32.xlu0 %v2837
          %v2839 = vpop.xlane.xlu0 %2838
          %v2840 = vsel %vm2761, %v2755, 0.0
          %2841 = vadd.xlane.f32.xlu0 %v2840
          %v2842 = vpop.xlane.xlu0 %2841
          %v2843 = vsel %vm2761, %v2756, 0.0
          %2844 = vadd.xlane.f32.xlu0 %v2843
          %v2845 = vpop.xlane.xlu0 %2844
          %v2846 = vsel %vm2761, %v2757, 0.0
          %2847 = vadd.xlane.f32.xlu0 %v2846
          %v2848 = vpop.xlane.xlu0 %2847
          %v2849 = vsel %vm2761, %v2758, 0.0
          %2850 = vadd.xlane.f32.xlu0 %v2849
          %v2851 = vpop.xlane.xlu0 %2850
          %v2852 = vsel %vm2761, %v2759, 0.0
          %2853 = vadd.xlane.f32.xlu0 %v2852
          %v2854 = vpop.xlane.xlu0 %2853
          %v2855 = vsel %vm2761, %v2760, 0.0
          %2856 = vadd.xlane.f32.xlu0 %v2855
          %v2857 = vpop.xlane.xlu0 %2856
          %v2890 = vlaneseq
          %v2891 = vshrl.u32 %v2890, 7
          %v2892 = vsub.s32 %v2595, %v2891
          %v2893 = vrot.slane %v2764, %v2892
          %v2894 = vadd.s32 %v2595, 4294967288
          %v2895 = vlaneseq
          %v2896 = vshrl.u32 %v2895, 7
          %v2897 = vsub.s32 %v2894, %v2896
          %v2898 = vrot.slane %v2767, %v2897
          %vm2899 = vcmask 130112
          %v2900 = vsel %vm2899, %v2898, %v2893
          %v2901 = vadd.s32 %v2595, 4294967280
          %v2902 = vlaneseq
          %v2903 = vshrl.u32 %v2902, 7
          %v2904 = vsub.s32 %v2901, %v2903
          %v2905 = vrot.slane %v2770, %v2904
          %vm2906 = vcmask 195712
          %v2907 = vsel %vm2906, %v2905, %v2900
          %v2908 = vadd.s32 %v2595, 4294967272
          %v2909 = vlaneseq
          %v2910 = vshrl.u32 %v2909, 7
          %v2911 = vsub.s32 %v2908, %v2910
          %v2912 = vrot.slane %v2773, %v2911
          %vm2913 = vcmask 261312
          %v2914 = vsel %vm2913, %v2912, %v2907
          %v2915 = vlaneseq
          %v2916 = vshrl.u32 %v2915, 7
          %v2917 = vsub.s32 %v2595, %v2916
          %v2918 = vrot.slane %v2776, %v2917
          %v2919 = vlaneseq
          %v2920 = vshrl.u32 %v2919, 7
          %v2921 = vsub.s32 %v2894, %v2920
          %v2922 = vrot.slane %v2779, %v2921
          %v2923 = vsel %vm2899, %v2922, %v2918
          %v2924 = vlaneseq
          %v2925 = vshrl.u32 %v2924, 7
          %v2926 = vsub.s32 %v2901, %v2925
          %v2927 = vrot.slane %v2782, %v2926
          %v2928 = vsel %vm2906, %v2927, %v2923
          %v2929 = vlaneseq
          %v2930 = vshrl.u32 %v2929, 7
          %v2931 = vsub.s32 %v2908, %v2930
          %v2932 = vrot.slane %v2785, %v2931
          %v2933 = vsel %vm2913, %v2932, %v2928
          %v2934 = vlaneseq
          %v2935 = vshrl.u32 %v2934, 7
          %v2936 = vsub.s32 %v2595, %v2935
          %v2937 = vrot.slane %v2788, %v2936
          %v2938 = vlaneseq
          %v2939 = vshrl.u32 %v2938, 7
          %v2940 = vsub.s32 %v2894, %v2939
          %v2941 = vrot.slane %v2791, %v2940
          %v2942 = vsel %vm2899, %v2941, %v2937
          %v2943 = vlaneseq
          %v2944 = vshrl.u32 %v2943, 7
          %v2945 = vsub.s32 %v2901, %v2944
          %v2946 = vrot.slane %v2794, %v2945
          %v2947 = vsel %vm2906, %v2946, %v2942
          %v2948 = vlaneseq
          %v2949 = vshrl.u32 %v2948, 7
          %v2950 = vsub.s32 %v2908, %v2949
          %v2951 = vrot.slane %v2797, %v2950
          %v2952 = vsel %vm2913, %v2951, %v2947
          %v2953 = vlaneseq
          %v2954 = vshrl.u32 %v2953, 7
          %v2955 = vsub.s32 %v2595, %v2954
          %v2956 = vrot.slane %v2800, %v2955
          %v2957 = vlaneseq
          %v2958 = vshrl.u32 %v2957, 7
          %v2959 = vsub.s32 %v2894, %v2958
          %v2960 = vrot.slane %v2803, %v2959
          %v2961 = vsel %vm2899, %v2960, %v2956
          %v2962 = vlaneseq
          %v2963 = vshrl.u32 %v2962, 7
          %v2964 = vsub.s32 %v2901, %v2963
          %v2965 = vrot.slane %v2806, %v2964
          %v2966 = vsel %vm2906, %v2965, %v2961
          %v2967 = vlaneseq
          %v2968 = vshrl.u32 %v2967, 7
          %v2969 = vsub.s32 %v2908, %v2968
          %v2970 = vrot.slane %v2809, %v2969
          %v2971 = vsel %vm2913, %v2970, %v2966
          %v2972 = vlaneseq
          %v2973 = vshrl.u32 %v2972, 7
          %v2974 = vsub.s32 %v2595, %v2973
          %v2975 = vrot.slane %v2812, %v2974
          %v2976 = vlaneseq
          %v2977 = vshrl.u32 %v2976, 7
          %v2978 = vsub.s32 %v2894, %v2977
          %v2979 = vrot.slane %v2815, %v2978
          %v2980 = vsel %vm2899, %v2979, %v2975
          %v2981 = vlaneseq
          %v2982 = vshrl.u32 %v2981, 7
          %v2983 = vsub.s32 %v2901, %v2982
          %v2984 = vrot.slane %v2818, %v2983
          %v2985 = vsel %vm2906, %v2984, %v2980
          %v2986 = vlaneseq
          %v2987 = vshrl.u32 %v2986, 7
          %v2988 = vsub.s32 %v2908, %v2987
          %v2989 = vrot.slane %v2821, %v2988
          %v2990 = vsel %vm2913, %v2989, %v2985
          %v2991 = vlaneseq
          %v2992 = vshrl.u32 %v2991, 7
          %v2993 = vsub.s32 %v2595, %v2992
          %v2994 = vrot.slane %v2824, %v2993
          %v2995 = vlaneseq
          %v2996 = vshrl.u32 %v2995, 7
          %v2997 = vsub.s32 %v2894, %v2996
          %v2998 = vrot.slane %v2827, %v2997
          %v2999 = vsel %vm2899, %v2998, %v2994
          %v3000 = vlaneseq
          %v3001 = vshrl.u32 %v3000, 7
          %v3002 = vsub.s32 %v2901, %v3001
          %v3003 = vrot.slane %v2830, %v3002
          %v3004 = vsel %vm2906, %v3003, %v2999
          %v3005 = vlaneseq
          %v3006 = vshrl.u32 %v3005, 7
          %v3007 = vsub.s32 %v2908, %v3006
          %v3008 = vrot.slane %v2833, %v3007
          %v3009 = vsel %vm2913, %v3008, %v3004
          %v3010 = vlaneseq
          %v3011 = vshrl.u32 %v3010, 7
          %v3012 = vsub.s32 %v2595, %v3011
          %v3013 = vrot.slane %v2836, %v3012
          %v3014 = vlaneseq
          %v3015 = vshrl.u32 %v3014, 7
          %v3016 = vsub.s32 %v2894, %v3015
          %v3017 = vrot.slane %v2839, %v3016
          %v3018 = vsel %vm2899, %v3017, %v3013
          %v3019 = vlaneseq
          %v3020 = vshrl.u32 %v3019, 7
          %v3021 = vsub.s32 %v2901, %v3020
          %v3022 = vrot.slane %v2842, %v3021
          %v3023 = vsel %vm2906, %v3022, %v3018
          %v3024 = vlaneseq
          %v3025 = vshrl.u32 %v3024, 7
          %v3026 = vsub.s32 %v2908, %v3025
          %v3027 = vrot.slane %v2845, %v3026
          %v3028 = vsel %vm2913, %v3027, %v3023
          %v3029 = vlaneseq
          %v3030 = vshrl.u32 %v3029, 7
          %v3031 = vsub.s32 %v2595, %v3030
          %v3032 = vrot.slane %v2848, %v3031
          %v3033 = vlaneseq
          %v3034 = vshrl.u32 %v3033, 7
          %v3035 = vsub.s32 %v2894, %v3034
          %v3036 = vrot.slane %v2851, %v3035
          %v3037 = vsel %vm2899, %v3036, %v3032
          %v3038 = vlaneseq
          %v3039 = vshrl.u32 %v3038, 7
          %v3040 = vsub.s32 %v2901, %v3039
          %v3041 = vrot.slane %v2854, %v3040
          %v3042 = vsel %vm2906, %v3041, %v3037
          %v3043 = vlaneseq
          %v3044 = vshrl.u32 %v3043, 7
          %v3045 = vsub.s32 %v2908, %v3044
          %v3046 = vrot.slane %v2857, %v3045
          %v3047 = vsel %vm2913, %v3046, %v3042
          %vm3048 = vcmask 1041409
          %v3049 = vsel %vm3048, %v2933, %v2914
          %vm3050 = vcmask 1042434
          %v3051 = vsel %vm3050, %v2952, %v3049
          %vm3052 = vcmask 1043459
          %v3053 = vsel %vm3052, %v2971, %v3051
          %vm3054 = vcmask 1044484
          %v3055 = vsel %vm3054, %v2990, %v3053
          %vm3056 = vcmask 1045509
          %v3057 = vsel %vm3056, %v3009, %v3055
          %vm3058 = vcmask 1046534
          %v3059 = vsel %vm3058, %v3028, %v3057
          %vm3060 = vcmask 1047559
          %v3061 = vsel %vm3060, %v3047, %v3059
          %v3063 = vadd.f32 %v2606, %v3061
          %vm3064 = vcmask 261120
          %3065 = vst.msk [vmem:[#allocation4] sm:$0xff] %vm3064, %v3063
        $region68: #{agent_gnn_forward.2} parent=51 // pred_fallthru
          _
        // Predicated region
        $region69: #{agent_gnn_forward.2} parent=51 // pred_check
          %p3066 = pneg %p367
        $region70: #{agent_gnn_forward.2} parent=51 // pred_check_branch
          %3068 = sbr.rel (%p3066) target = $region72
        $region71: #{agent_gnn_forward.2} parent=51 // pred_region
          %v3069 = vld [vmem:[#allocation4] sm:$0xff]
          %v3070 = vld [vmem:[%s7] sm:$0x1]
          %v3072 = vlaneseq
          %v3073 = vshrl.u32 %v3072, 7
          %v3074 = vsub.s32 0, %v3073
          %v3075 = vrot.slane %v3070, %v3074
          %v3077 = vmul.f32 %v3069, %v3075
          %v3078 = vld [vmem:[%s8] sm:$0x1]
          %v3080 = vlaneseq
          %v3081 = vshrl.u32 %v3080, 7
          %v3082 = vsub.s32 0, %v3081
          %v3083 = vrot.slane %v3078, %v3082
          %v3085 = vadd.f32 %v3077, %v3083
          %v3086 = vld [vmem:[%s358] sm:$0xff]
          %v3087 = vadd.f32 %v3085, %v3086
          %v3088 = vmax.f32 %v3087, 0.0
          %vm3089 = vcmask 261120
          %3090 = vst.msk [vmem:[%s366] sm:$0xff] %vm3089, %v3088
        $region72: #{agent_gnn_forward.2} parent=51 // pred_fallthru
          _
        %p3091 = scmp.lt.s32.totalorder %s32, 1
        %s3092 = scalar_select %p3091, %s32, 1
        %s3093 = smul.addr %s3092, 8
        %s3094 = scalar_lea.vmem %s9, %s3093
        // Predicated region
        $region73: #{agent_gnn_forward.2} parent=51 // pred_check
          %p3095 = pneg %p236
        $region74: #{agent_gnn_forward.2} parent=51 // pred_check_branch
          %3097 = sbr.rel (%p3095) target = $region76
        $region75: #{agent_gnn_forward.2} parent=51 // pred_region
          _
        $region76: #{agent_gnn_forward.2} parent=51 // pred_fallthru
          _
      $region52: #{agent_gnn_forward.2} parent=5 // pred_fallthru
        _
      %p3098 = scmp.le.s32.totalorder 2, %s23
      // Predicated region
      $region77: #{agent_gnn_forward.2} parent=5 // pred_check
        %p3099 = pneg %p3098
      $region78: #{agent_gnn_forward.2} parent=5 // pred_check_branch
        %3101 = sbr.rel (%p3099) target = $region80
      $region79: #{agent_gnn_forward.2} parent=5 // pred_region
        %s3102 = ssub.s32 %s23, 2
        // Predicated region
        $region81: #{agent_gnn_forward.2} parent=79 // pred_check
          %p3103 = pneg %p242
        $region82: #{agent_gnn_forward.2} parent=79 // pred_check_branch
          %3105 = sbr.rel (%p3103) target = $region84
        $region83: #{agent_gnn_forward.2} parent=79 // pred_region
          %p3106 = scmp.lt.s32.totalorder %s34, 1
          %s3107 = scalar_select %p3106, %s34, 1
          %s3108 = smul.addr %s3107, 8
          %s3109 = scalar_lea.vmem %s9, %s3108
        $region84: #{agent_gnn_forward.2} parent=79 // pred_fallthru
          _
      $region80: #{agent_gnn_forward.2} parent=5 // pred_fallthru
        _
    $region6: #{agent_gnn_forward.2} parent=1 // loop_footer
      %s27 = sadd.s32 1, %s23
    $region7: #{agent_gnn_forward.2} parent=1 // loop_footer_branch
      %22 = sbr.rel target = $region3
    $region8: #{agent_gnn_forward.2} parent=1 // loop_exit
      _
    %3110 = vsyncpa [#allocation8], 1
    %s3111 = scalar_lea.sflag [#allocation8], 1
    %3112 = vsyncpa %s3111, 1
    %3113 = vsyncpa [#allocation10], 1

</llo_original>
